<compile_context>
chip_gen: v5e
topology: v5e:2x2
jax: 0.10.0
libtpu: 0.0.40
codegen_flags: <defaults>
</compile_context>

<pallas_src>
import jax
import jax.numpy as jnp
from jax import lax
from jax.experimental import pallas as pl
from jax.experimental.pallas import tpu as pltpu

CPAD = 128  # lane-dense channel padding (one full lane tile)

_VMEM = pl.BlockSpec(memory_space=pltpu.MemorySpace.VMEM)


# ----------------------------------------------------------------------------
# In-kernel helpers (traced inside the single fused kernel)
# ----------------------------------------------------------------------------
def _divmod_const(x, d):
    """divmod of a non-negative int32 array by a python int (pow2 fast path)."""
    if d & (d - 1) == 0:
        shift = d.bit_length() - 1
        return x >> shift, x & (d - 1)
    q = x // d
    return q, x - q * d


def _conv_relu_pool(xp_ref, w_ref, b_ref, h, w):
    """conv(3x3,s1,p1) + bias + ReLU + maxpool(2x2,s2), fully VMEM-resident.

    xp_ref : ((h+2)*(w+2), CPAD) zero-padded input; rows = flattened padded
             spatial positions (row-major), lanes = channels (padded to CPAD).
    w_ref  : (9*CPAD, CPAD)  rows ordered (kh, kw, cin), cols = cout.
    b_ref  : (1, CPAD)
    returns (h//2 * w//2, CPAD) pooled activation (rows = pooled spatial).
    """
    wp = w + 2
    nr = (h - 1) * wp + w          # conv-output rows needed (junk cols included)
    base = wp + 1                  # flat index of padded position (1, 1)

    # In-kernel im2col: 9 statically shifted windows, concatenated along lanes.
    taps = [xp_ref[pl.ds(base + (kh - 1) * wp + (kw - 1), nr), :]
            for kh in range(3) for kw in range(3)]
    patches = jnp.concatenate(taps, axis=1)                       # (nr, 9*CPAD)
    y = jnp.dot(patches, w_ref[...], preferred_element_type=jnp.float32)

    # 2x2 max-pool: gather the 4 pooling partners of every pooled position with
    # 0/1 selection matmuls (iota-built), then max, bias, ReLU once.
    ho, wo = h // 2, w // 2
    rows = ho * wo
    p_ids = lax.broadcasted_iota(jnp.int32, (rows, nr), 0)
    r_ids = lax.broadcasted_iota(jnp.int32, (rows, nr), 1)
    pi, pj = _divmod_const(p_ids, wo)
    pooled = None
    for a in range(2):
        for b in range(2):
            tgt = (2 * pi + a) * wp + (2 * pj + b)
            sel = jnp.where(r_ids == tgt, 1.0, 0.0).astype(jnp.float32)
            g = jnp.dot(sel, y, preferred_element_type=jnp.float32)
            pooled = g if pooled is None else jnp.maximum(pooled, g)
    return jnp.maximum(pooled + b_ref[...], 0.0)                  # (rows, CPAD)


def _pad_place(pooled, hn, wn):
    """Scatter (hn*wn, CPAD) pooled rows into a zero-bordered
    ((hn+2)*(wn+2), CPAD) padded layout via a 0/1 placement matmul."""
    wp = wn + 2
    rows_out = (hn + 2) * wp
    r_ids = lax.broadcasted_iota(jnp.int32, (rows_out, hn * wn), 0)
    p_ids = lax.broadcasted_iota(jnp.int32, (rows_out, hn * wn), 1)
    pi, pj = _divmod_const(p_ids, wn)
    t = jnp.where(r_ids == (pi + 1) * wp + (pj + 1), 1.0, 0.0).astype(jnp.float32)
    return jnp.dot(t, pooled, preferred_element_type=jnp.float32)


def _build_kernel(h, w):
    h2, w2 = h // 2, w // 2
    h3, w3 = h2 // 2, w2 // 2

    def kernel(x_ref, w1_ref, b1_ref, w2_ref, b2_ref, w3_ref, b3_ref,
               wh_ref, bh_ref, o_ref, xp2_ref, xp3_ref):
        p1 = _conv_relu_pool(x_ref, w1_ref, b1_ref, h, w)
        xp2_ref[...] = _pad_place(p1, h2, w2)
        p2 = _conv_relu_pool(xp2_ref, w2_ref, b2_ref, h2, w2)
        xp3_ref[...] = _pad_place(p2, h3, w3)
        p3 = _conv_relu_pool(xp3_ref, w3_ref, b3_ref, h3, w3)
        # Folded head (fc2∘fc1 has no intermediate nonlinearity in the
        # reference forward) + sigmoid: weighted full reduction.
        s = jnp.sum(p3 * wh_ref[...], axis=0, keepdims=True)      # (1, CPAD)
        s = jnp.sum(s, axis=1, keepdims=True) + bh_ref[...]       # (1, 1)
        o_ref[...] = 1.0 / (1.0 + jnp.exp(-s))

    return kernel


# ----------------------------------------------------------------------------
# Offline parameter packing (one-time, outside the hot path)
# ----------------------------------------------------------------------------
def pack_params(params):
    def pack_w(wgt):
        cout, cin, kh, kw = wgt.shape
        assert (kh, kw) == (3, 3) and cin <= CPAD and cout <= CPAD
        wt = jnp.transpose(wgt, (2, 3, 1, 0))                      # (kh,kw,cin,cout)
        wt = jnp.pad(wt, ((0, 0), (0, 0), (0, CPAD - cin), (0, CPAD - cout)))
        return wt.reshape(kh * kw * CPAD, CPAD).astype(jnp.float32)

    def pack_b(b):
        return jnp.pad(b, (0, CPAD - b.shape[0])).reshape(1, CPAD).astype(jnp.float32)

    c3 = params["w3"].shape[0]
    f = params["fw1"].shape[1]
    hw3 = f // c3
    # y = (x @ fw1.T + fb1) @ fw2.T + fb2 == x @ (fw1.T @ fw2.T) + (fb1 @ fw2.T + fb2)
    w_head = params["fw1"].T @ params["fw2"].T                     # (f, 1)
    b_head = params["fb1"] @ params["fw2"].T + params["fb2"]       # (1,)
    # torch flattens (c, h, w); our final activation is (spatial rows, channel lanes)
    wh = w_head.reshape(c3, hw3).T                                 # (hw3, c3)
    wh = jnp.pad(wh, ((0, 0), (0, CPAD - c3))).astype(jnp.float32)
    return {
        "w1": pack_w(params["w1"]), "b1": pack_b(params["b1"]),
        "w2": pack_w(params["w2"]), "b2": pack_b(params["b2"]),
        "w3": pack_w(params["w3"]), "b3": pack_b(params["b3"]),
        "wh": wh, "bh": b_head.reshape(1, 1).astype(jnp.float32),
    }


# ----------------------------------------------------------------------------
# Forward (single fused pallas_call)
# ----------------------------------------------------------------------------
def pruned_cnn_forward(x_nchw, packed):
    n, c0, h, w = x_nchw.shape
    assert n == 1, "reference forward does x.view(1, -1)"
    assert h % 8 == 0 and w % 8 == 0 and c0 <= CPAD

    # One tiny pre-kernel relayout: NCHW -> zero-padded, lane-dense HWC, flattened.
    x = jnp.transpose(x_nchw[0], (1, 2, 0))
    x = jnp.pad(x, ((1, 1), (1, 1), (0, CPAD - c0)))
    x = x.reshape((h + 2) * (w + 2), CPAD).astype(jnp.float32)

    h2, w2 = h // 2, w // 2
    h3, w3 = h2 // 2, w2 // 2

    # Rough cost hint so XLA schedules the tiny custom call tightly.
    flops, hh, ww = 0, h, w
    for _ in range(3):
        wp = ww + 2
        nr = (hh - 1) * wp + ww
        ho, wo = hh // 2, ww // 2
        flops += 2 * nr * 9 * CPAD * CPAD                 # conv matmul
        flops += 2 * 4 * ho * wo * nr * CPAD              # pooling gathers
        flops += 2 * (ho + 2) * (wo + 2) * ho * wo * CPAD  # re-padding placement
        hh, ww = ho, wo
    bytes_accessed = 4 * ((h + 2) * (w + 2) * CPAD
                          + 3 * (9 * CPAD * CPAD + CPAD)
                          + h3 * w3 * CPAD + 2)

    # TODO(synk): if run at realistic image sizes, add a gridded/parallel
    # spatial axis and re-derive tiles for v7x's 64 MiB VMEM; not needed here.
    return pl.pallas_call(
        _build_kernel(h, w),
        out_shape=jax.ShapeDtypeStruct((1, 1), jnp.float32),
        in_specs=[_VMEM] * 9,
        out_specs=_VMEM,
        scratch_shapes=[
            pltpu.VMEM(((h2 + 2) * (w2 + 2), CPAD), jnp.float32),
            pltpu.VMEM(((h3 + 2) * (w3 + 2), CPAD), jnp.float32),
        ],
        compiler_params=pltpu.CompilerParams(vmem_limit_bytes=32 * 1024 * 1024),
        cost_estimate=pl.CostEstimate(flops=flops, transcendentals=1,
                                      bytes_accessed=bytes_accessed),
    )(x, packed["w1"], packed["b1"], packed["w2"], packed["b2"],
      packed["w3"], packed["b3"], packed["wh"], packed["bh"])


# ----------------------------------------------------------------------------
# Pure-JAX reference (correctness check only)
# ----------------------------------------------------------------------------
def reference_forward(x_nchw, params):
    def block(x, w, b):
        y = lax.conv_general_dilated(
            x, w, (1, 1), ((1, 1), (1, 1)),
            dimension_numbers=("NCHW", "OIHW", "NCHW"))
        y = jnp.maximum(y + b.reshape(1, -1, 1, 1), 0.0)
        return lax.reduce_window(y, -jnp.inf, lax.max,
                                 (1, 1, 2, 2), (1, 1, 2, 2), "VALID")

    x = block(x_nchw, params["w1"], params["b1"])
    x = block(x, params["w2"], params["b2"])
    x = block(x, params["w3"], params["b3"])
    x = x.reshape(1, -1)
    hid = x @ params["fw1"].T + params["fb1"]
    y = hid @ params["fw2"].T + params["fb2"]
    return jax.nn.sigmoid(y)


# ----------------------------------------------------------------------------
# Main
# ----------------------------------------------------------------------------
if __name__ == "__main__":
    key = jax.random.PRNGKey(0)
    ks = jax.random.split(key, 9)

    # synthetic "pruned" channel counts (active neurons kept per conv layer)
    C0, C1, C2, C3 = 3, 8, 16, 16
    H = W = 16
    F = C3 * (H // 8) * (W // 8)          # flattened size after 3 pools

    params = {
        "w1": 0.1 * jax.random.normal(ks[0], (C1, C0, 3, 3), jnp.float32),
        "b1": 0.1 * jax.random.normal(ks[1], (C1,), jnp.float32),
        "w2": 0.1 * jax.random.normal(ks[2], (C2, C1, 3, 3), jnp.float32),
        "b2": 0.1 * jax.random.normal(ks[3], (C2,), jnp.float32),
        "w3": 0.1 * jax.random.normal(ks[4], (C3, C2, 3, 3), jnp.float32),
        "b3": 0.1 * jax.random.normal(ks[5], (C3,), jnp.float32),
        "fw1": 0.1 * jax.random.normal(ks[6], (128, F), jnp.float32),
        "fb1": jnp.zeros((128,), jnp.float32),
        "fw2": 0.1 * jax.random.normal(ks[7], (1, 128), jnp.float32),
        "fb2": jnp.zeros((1,), jnp.float32),
    }

    x = jax.random.normal(ks[8], (1, C0, H, W), jnp.float32)

    packed = pack_params(params)
    fwd = jax.jit(pruned_cnn_forward)
    out = jax.block_until_ready(fwd(x, packed))

    ref = jax.block_until_ready(reference_forward(x, params))
    assert out.shape == (1, 1) and out.dtype == jnp.float32
    assert jnp.allclose(out, ref, rtol=2e-3, atol=2e-3), (out, ref)

    # TODO(synk): the __init__-time pruning (get_active_neurons on an
    # original_model) is parameter construction, not forward compute; it is
    # replaced here by deterministic synthetic channel counts / weights.
    print("KERNEL_OK")
</pallas_src>

<mosaic_0001>
module attributes {stable_mosaic.version = 11 : i64} {
  func.func @kernel(%arg0: memref<324x128xf32, #tpu.memory_space<vmem>>, %arg1: memref<1152x128xf32, #tpu.memory_space<vmem>>, %arg2: memref<1x128xf32, #tpu.memory_space<vmem>>, %arg3: memref<1152x128xf32, #tpu.memory_space<vmem>>, %arg4: memref<1x128xf32, #tpu.memory_space<vmem>>, %arg5: memref<1152x128xf32, #tpu.memory_space<vmem>>, %arg6: memref<1x128xf32, #tpu.memory_space<vmem>>, %arg7: memref<4x128xf32, #tpu.memory_space<vmem>>, %arg8: memref<1x1xf32, #tpu.memory_space<vmem>>, %arg9: memref<1x1xf32, #tpu.memory_space<vmem>>, %arg10: memref<100x128xf32, #tpu.memory_space<vmem>>, %arg11: memref<36x128xf32, #tpu.memory_space<vmem>>) attributes {dimension_semantics = [], scalar_prefetch = 0 : i64, scratch_operands = 2 : i64, tpu.core_type = #tpu.core_type<tc>} {
    %c0 = arith.constant 0 : index
    %c0_0 = arith.constant 0 : index
    %0 = vector.load %arg0[%c0, %c0_0] : memref<324x128xf32, #tpu.memory_space<vmem>>, vector<286x128xf32>
    %c1 = arith.constant 1 : index
    %c0_1 = arith.constant 0 : index
    %1 = vector.load %arg0[%c1, %c0_1] : memref<324x128xf32, #tpu.memory_space<vmem>>, vector<286x128xf32>
    %c2 = arith.constant 2 : index
    %c0_2 = arith.constant 0 : index
    %2 = vector.load %arg0[%c2, %c0_2] : memref<324x128xf32, #tpu.memory_space<vmem>>, vector<286x128xf32>
    %c18 = arith.constant 18 : index
    %c0_3 = arith.constant 0 : index
    %3 = vector.load %arg0[%c18, %c0_3] : memref<324x128xf32, #tpu.memory_space<vmem>>, vector<286x128xf32>
    %c19 = arith.constant 19 : index
    %c0_4 = arith.constant 0 : index
    %4 = vector.load %arg0[%c19, %c0_4] : memref<324x128xf32, #tpu.memory_space<vmem>>, vector<286x128xf32>
    %c20 = arith.constant 20 : index
    %c0_5 = arith.constant 0 : index
    %5 = vector.load %arg0[%c20, %c0_5] : memref<324x128xf32, #tpu.memory_space<vmem>>, vector<286x128xf32>
    %c36 = arith.constant 36 : index
    %c0_6 = arith.constant 0 : index
    %6 = vector.load %arg0[%c36, %c0_6] : memref<324x128xf32, #tpu.memory_space<vmem>>, vector<286x128xf32>
    %c37 = arith.constant 37 : index
    %c0_7 = arith.constant 0 : index
    %7 = vector.load %arg0[%c37, %c0_7] : memref<324x128xf32, #tpu.memory_space<vmem>>, vector<286x128xf32>
    %c38 = arith.constant 38 : index
    %c0_8 = arith.constant 0 : index
    %8 = vector.load %arg0[%c38, %c0_8] : memref<324x128xf32, #tpu.memory_space<vmem>>, vector<286x128xf32>
    %9 = tpu.concatenate %0, %1, %2, %3, %4, %5, %6, %7, %8 in 1 : vector<286x128xf32>, vector<286x128xf32>, vector<286x128xf32>, vector<286x128xf32>, vector<286x128xf32>, vector<286x128xf32>, vector<286x128xf32>, vector<286x128xf32>, vector<286x128xf32> -> vector<286x1152xf32>
    %c0_9 = arith.constant 0 : index
    %c0_10 = arith.constant 0 : index
    %10 = vector.load %arg1[%c0_9, %c0_10] : memref<1152x128xf32, #tpu.memory_space<vmem>>, vector<1152x128xf32>
    %cst = arith.constant dense<0.000000e+00> : vector<286x128xf32>
    %11 = tpu.matmul %9, %10, %cst {dimension_numbers = #tpu.dot_dimension_numbers<[1], [0], [0], [1], [0, 0, 1, 1], [], []>} : vector<286x1152xf32>, vector<1152x128xf32>, vector<286x128xf32> -> vector<286x128xf32>
    %12 = tpu.iota {dimensions = array<i32: 0>} : vector<64x286xi32>
    %13 = tpu.iota {dimensions = array<i32: 1>} : vector<64x286xi32>
    %c3_i32 = arith.constant 3 : i32
    %14 = vector.broadcast %c3_i32 : i32 to vector<64x286xi32>
    %15 = arith.shrsi %12, %14 : vector<64x286xi32>
    %c7_i32 = arith.constant 7 : i32
    %16 = vector.broadcast %c7_i32 : i32 to vector<64x286xi32>
    %17 = arith.andi %12, %16 : vector<64x286xi32>
    %c2_i32 = arith.constant 2 : i32
    %18 = vector.broadcast %c2_i32 : i32 to vector<64x286xi32>
    %19 = arith.muli %18, %15 : vector<64x286xi32>
    %c0_i32 = arith.constant 0 : i32
    %20 = vector.broadcast %c0_i32 : i32 to vector<64x286xi32>
    %21 = arith.addi %19, %20 : vector<64x286xi32>
    %c18_i32 = arith.constant 18 : i32
    %22 = vector.broadcast %c18_i32 : i32 to vector<64x286xi32>
    %23 = arith.muli %21, %22 : vector<64x286xi32>
    %c2_i32_11 = arith.constant 2 : i32
    %24 = vector.broadcast %c2_i32_11 : i32 to vector<64x286xi32>
    %25 = arith.muli %24, %17 : vector<64x286xi32>
    %c0_i32_12 = arith.constant 0 : i32
    %26 = vector.broadcast %c0_i32_12 : i32 to vector<64x286xi32>
    %27 = arith.addi %25, %26 : vector<64x286xi32>
    %28 = arith.addi %23, %27 : vector<64x286xi32>
    %29 = arith.cmpi eq, %13, %28 : vector<64x286xi32>
    %cst_13 = arith.constant 1.000000e+00 : f32
    %cst_14 = arith.constant 0.000000e+00 : f32
    %30 = vector.broadcast %cst_13 : f32 to vector<64x286xf32>
    %31 = vector.broadcast %cst_14 : f32 to vector<64x286xf32>
    %32 = arith.select %29, %30, %31 : vector<64x286xi1>, vector<64x286xf32>
    %cst_15 = arith.constant dense<0.000000e+00> : vector<64x128xf32>
    %33 = tpu.matmul %32, %11, %cst_15 {dimension_numbers = #tpu.dot_dimension_numbers<[1], [0], [0], [1], [0, 0, 1, 1], [], []>} : vector<64x286xf32>, vector<286x128xf32>, vector<64x128xf32> -> vector<64x128xf32>
    %c2_i32_16 = arith.constant 2 : i32
    %34 = vector.broadcast %c2_i32_16 : i32 to vector<64x286xi32>
    %35 = arith.muli %34, %15 : vector<64x286xi32>
    %c0_i32_17 = arith.constant 0 : i32
    %36 = vector.broadcast %c0_i32_17 : i32 to vector<64x286xi32>
    %37 = arith.addi %35, %36 : vector<64x286xi32>
    %c18_i32_18 = arith.constant 18 : i32
    %38 = vector.broadcast %c18_i32_18 : i32 to vector<64x286xi32>
    %39 = arith.muli %37, %38 : vector<64x286xi32>
    %c2_i32_19 = arith.constant 2 : i32
    %40 = vector.broadcast %c2_i32_19 : i32 to vector<64x286xi32>
    %41 = arith.muli %40, %17 : vector<64x286xi32>
    %c1_i32 = arith.constant 1 : i32
    %42 = vector.broadcast %c1_i32 : i32 to vector<64x286xi32>
    %43 = arith.addi %41, %42 : vector<64x286xi32>
    %44 = arith.addi %39, %43 : vector<64x286xi32>
    %45 = arith.cmpi eq, %13, %44 : vector<64x286xi32>
    %cst_20 = arith.constant 1.000000e+00 : f32
    %cst_21 = arith.constant 0.000000e+00 : f32
    %46 = vector.broadcast %cst_20 : f32 to vector<64x286xf32>
    %47 = vector.broadcast %cst_21 : f32 to vector<64x286xf32>
    %48 = arith.select %45, %46, %47 : vector<64x286xi1>, vector<64x286xf32>
    %cst_22 = arith.constant dense<0.000000e+00> : vector<64x128xf32>
    %49 = tpu.matmul %48, %11, %cst_22 {dimension_numbers = #tpu.dot_dimension_numbers<[1], [0], [0], [1], [0, 0, 1, 1], [], []>} : vector<64x286xf32>, vector<286x128xf32>, vector<64x128xf32> -> vector<64x128xf32>
    %50 = arith.maximumf %33, %49 : vector<64x128xf32>
    %c2_i32_23 = arith.constant 2 : i32
    %51 = vector.broadcast %c2_i32_23 : i32 to vector<64x286xi32>
    %52 = arith.muli %51, %15 : vector<64x286xi32>
    %c1_i32_24 = arith.constant 1 : i32
    %53 = vector.broadcast %c1_i32_24 : i32 to vector<64x286xi32>
    %54 = arith.addi %52, %53 : vector<64x286xi32>
    %c18_i32_25 = arith.constant 18 : i32
    %55 = vector.broadcast %c18_i32_25 : i32 to vector<64x286xi32>
    %56 = arith.muli %54, %55 : vector<64x286xi32>
    %c2_i32_26 = arith.constant 2 : i32
    %57 = vector.broadcast %c2_i32_26 : i32 to vector<64x286xi32>
    %58 = arith.muli %57, %17 : vector<64x286xi32>
    %c0_i32_27 = arith.constant 0 : i32
    %59 = vector.broadcast %c0_i32_27 : i32 to vector<64x286xi32>
    %60 = arith.addi %58, %59 : vector<64x286xi32>
    %61 = arith.addi %56, %60 : vector<64x286xi32>
    %62 = arith.cmpi eq, %13, %61 : vector<64x286xi32>
    %cst_28 = arith.constant 1.000000e+00 : f32
    %cst_29 = arith.constant 0.000000e+00 : f32
    %63 = vector.broadcast %cst_28 : f32 to vector<64x286xf32>
    %64 = vector.broadcast %cst_29 : f32 to vector<64x286xf32>
    %65 = arith.select %62, %63, %64 : vector<64x286xi1>, vector<64x286xf32>
    %cst_30 = arith.constant dense<0.000000e+00> : vector<64x128xf32>
    %66 = tpu.matmul %65, %11, %cst_30 {dimension_numbers = #tpu.dot_dimension_numbers<[1], [0], [0], [1], [0, 0, 1, 1], [], []>} : vector<64x286xf32>, vector<286x128xf32>, vector<64x128xf32> -> vector<64x128xf32>
    %67 = arith.maximumf %50, %66 : vector<64x128xf32>
    %c2_i32_31 = arith.constant 2 : i32
    %68 = vector.broadcast %c2_i32_31 : i32 to vector<64x286xi32>
    %69 = arith.muli %68, %15 : vector<64x286xi32>
    %c1_i32_32 = arith.constant 1 : i32
    %70 = vector.broadcast %c1_i32_32 : i32 to vector<64x286xi32>
    %71 = arith.addi %69, %70 : vector<64x286xi32>
    %c18_i32_33 = arith.constant 18 : i32
    %72 = vector.broadcast %c18_i32_33 : i32 to vector<64x286xi32>
    %73 = arith.muli %71, %72 : vector<64x286xi32>
    %c2_i32_34 = arith.constant 2 : i32
    %74 = vector.broadcast %c2_i32_34 : i32 to vector<64x286xi32>
    %75 = arith.muli %74, %17 : vector<64x286xi32>
    %c1_i32_35 = arith.constant 1 : i32
    %76 = vector.broadcast %c1_i32_35 : i32 to vector<64x286xi32>
    %77 = arith.addi %75, %76 : vector<64x286xi32>
    %78 = arith.addi %73, %77 : vector<64x286xi32>
    %79 = arith.cmpi eq, %13, %78 : vector<64x286xi32>
    %cst_36 = arith.constant 1.000000e+00 : f32
    %cst_37 = arith.constant 0.000000e+00 : f32
    %80 = vector.broadcast %cst_36 : f32 to vector<64x286xf32>
    %81 = vector.broadcast %cst_37 : f32 to vector<64x286xf32>
    %82 = arith.select %79, %80, %81 : vector<64x286xi1>, vector<64x286xf32>
    %cst_38 = arith.constant dense<0.000000e+00> : vector<64x128xf32>
    %83 = tpu.matmul %82, %11, %cst_38 {dimension_numbers = #tpu.dot_dimension_numbers<[1], [0], [0], [1], [0, 0, 1, 1], [], []>} : vector<64x286xf32>, vector<286x128xf32>, vector<64x128xf32> -> vector<64x128xf32>
    %84 = arith.maximumf %67, %83 : vector<64x128xf32>
    %c0_39 = arith.constant 0 : index
    %c0_40 = arith.constant 0 : index
    %85 = vector.load %arg2[%c0_39, %c0_40] : memref<1x128xf32, #tpu.memory_space<vmem>>, vector<1x128xf32>
    %86 = vector.broadcast %85 : vector<1x128xf32> to vector<64x128xf32>
    %87 = arith.addf %84, %86 : vector<64x128xf32>
    %cst_41 = arith.constant 0.000000e+00 : f32
    %88 = vector.broadcast %cst_41 : f32 to vector<64x128xf32>
    %89 = arith.maximumf %87, %88 : vector<64x128xf32>
    %90 = tpu.iota {dimensions = array<i32: 0>} : vector<100x64xi32>
    %91 = tpu.iota {dimensions = array<i32: 1>} : vector<100x64xi32>
    %c3_i32_42 = arith.constant 3 : i32
    %92 = vector.broadcast %c3_i32_42 : i32 to vector<100x64xi32>
    %93 = arith.shrsi %91, %92 : vector<100x64xi32>
    %c7_i32_43 = arith.constant 7 : i32
    %94 = vector.broadcast %c7_i32_43 : i32 to vector<100x64xi32>
    %95 = arith.andi %91, %94 : vector<100x64xi32>
    %c1_i32_44 = arith.constant 1 : i32
    %96 = vector.broadcast %c1_i32_44 : i32 to vector<100x64xi32>
    %97 = arith.addi %93, %96 : vector<100x64xi32>
    %c10_i32 = arith.constant 10 : i32
    %98 = vector.broadcast %c10_i32 : i32 to vector<100x64xi32>
    %99 = arith.muli %97, %98 : vector<100x64xi32>
    %c1_i32_45 = arith.constant 1 : i32
    %100 = vector.broadcast %c1_i32_45 : i32 to vector<100x64xi32>
    %101 = arith.addi %95, %100 : vector<100x64xi32>
    %102 = arith.addi %99, %101 : vector<100x64xi32>
    %103 = arith.cmpi eq, %90, %102 : vector<100x64xi32>
    %cst_46 = arith.constant 1.000000e+00 : f32
    %cst_47 = arith.constant 0.000000e+00 : f32
    %104 = vector.broadcast %cst_46 : f32 to vector<100x64xf32>
    %105 = vector.broadcast %cst_47 : f32 to vector<100x64xf32>
    %106 = arith.select %103, %104, %105 : vector<100x64xi1>, vector<100x64xf32>
    %cst_48 = arith.constant dense<0.000000e+00> : vector<100x128xf32>
    %107 = tpu.matmul %106, %89, %cst_48 {dimension_numbers = #tpu.dot_dimension_numbers<[1], [0], [0], [1], [0, 0, 1, 1], [], []>} : vector<100x64xf32>, vector<64x128xf32>, vector<100x128xf32> -> vector<100x128xf32>
    %c0_49 = arith.constant 0 : index
    %c0_50 = arith.constant 0 : index
    %108 = vector.load %arg10[%c0_49, %c0_50] : memref<100x128xf32, #tpu.memory_space<vmem>>, vector<100x128xf32>
    tpu.vector_store %arg10[%c0_49, %c0_50], %107 {strides = array<i32>} : memref<100x128xf32, #tpu.memory_space<vmem>>, vector<100x128xf32>,
    %c0_51 = arith.constant 0 : index
    %c0_52 = arith.constant 0 : index
    %109 = vector.load %arg10[%c0_51, %c0_52] : memref<100x128xf32, #tpu.memory_space<vmem>>, vector<78x128xf32>
    %c1_53 = arith.constant 1 : index
    %c0_54 = arith.constant 0 : index
    %110 = vector.load %arg10[%c1_53, %c0_54] : memref<100x128xf32, #tpu.memory_space<vmem>>, vector<78x128xf32>
    %c2_55 = arith.constant 2 : index
    %c0_56 = arith.constant 0 : index
    %111 = vector.load %arg10[%c2_55, %c0_56] : memref<100x128xf32, #tpu.memory_space<vmem>>, vector<78x128xf32>
    %c10 = arith.constant 10 : index
    %c0_57 = arith.constant 0 : index
    %112 = vector.load %arg10[%c10, %c0_57] : memref<100x128xf32, #tpu.memory_space<vmem>>, vector<78x128xf32>
    %c11 = arith.constant 11 : index
    %c0_58 = arith.constant 0 : index
    %113 = vector.load %arg10[%c11, %c0_58] : memref<100x128xf32, #tpu.memory_space<vmem>>, vector<78x128xf32>
    %c12 = arith.constant 12 : index
    %c0_59 = arith.constant 0 : index
    %114 = vector.load %arg10[%c12, %c0_59] : memref<100x128xf32, #tpu.memory_space<vmem>>, vector<78x128xf32>
    %c20_60 = arith.constant 20 : index
    %c0_61 = arith.constant 0 : index
    %115 = vector.load %arg10[%c20_60, %c0_61] : memref<100x128xf32, #tpu.memory_space<vmem>>, vector<78x128xf32>
    %c21 = arith.constant 21 : index
    %c0_62 = arith.constant 0 : index
    %116 = vector.load %arg10[%c21, %c0_62] : memref<100x128xf32, #tpu.memory_space<vmem>>, vector<78x128xf32>
    %c22 = arith.constant 22 : index
    %c0_63 = arith.constant 0 : index
    %117 = vector.load %arg10[%c22, %c0_63] : memref<100x128xf32, #tpu.memory_space<vmem>>, vector<78x128xf32>
    %118 = tpu.concatenate %109, %110, %111, %112, %113, %114, %115, %116, %117 in 1 : vector<78x128xf32>, vector<78x128xf32>, vector<78x128xf32>, vector<78x128xf32>, vector<78x128xf32>, vector<78x128xf32>, vector<78x128xf32>, vector<78x128xf32>, vector<78x128xf32> -> vector<78x1152xf32>
    %c0_64 = arith.constant 0 : index
    %c0_65 = arith.constant 0 : index
    %119 = vector.load %arg3[%c0_64, %c0_65] : memref<1152x128xf32, #tpu.memory_space<vmem>>, vector<1152x128xf32>
    %cst_66 = arith.constant dense<0.000000e+00> : vector<78x128xf32>
    %120 = tpu.matmul %118, %119, %cst_66 {dimension_numbers = #tpu.dot_dimension_numbers<[1], [0], [0], [1], [0, 0, 1, 1], [], []>} : vector<78x1152xf32>, vector<1152x128xf32>, vector<78x128xf32> -> vector<78x128xf32>
    %121 = tpu.iota {dimensions = array<i32: 0>} : vector<16x78xi32>
    %122 = tpu.iota {dimensions = array<i32: 1>} : vector<16x78xi32>
    %c2_i32_67 = arith.constant 2 : i32
    %123 = vector.broadcast %c2_i32_67 : i32 to vector<16x78xi32>
    %124 = arith.shrsi %121, %123 : vector<16x78xi32>
    %c3_i32_68 = arith.constant 3 : i32
    %125 = vector.broadcast %c3_i32_68 : i32 to vector<16x78xi32>
    %126 = arith.andi %121, %125 : vector<16x78xi32>
    %c2_i32_69 = arith.constant 2 : i32
    %127 = vector.broadcast %c2_i32_69 : i32 to vector<16x78xi32>
    %128 = arith.muli %127, %124 : vector<16x78xi32>
    %c0_i32_70 = arith.constant 0 : i32
    %129 = vector.broadcast %c0_i32_70 : i32 to vector<16x78xi32>
    %130 = arith.addi %128, %129 : vector<16x78xi32>
    %c10_i32_71 = arith.constant 10 : i32
    %131 = vector.broadcast %c10_i32_71 : i32 to vector<16x78xi32>
    %132 = arith.muli %130, %131 : vector<16x78xi32>
    %c2_i32_72 = arith.constant 2 : i32
    %133 = vector.broadcast %c2_i32_72 : i32 to vector<16x78xi32>
    %134 = arith.muli %133, %126 : vector<16x78xi32>
    %c0_i32_73 = arith.constant 0 : i32
    %135 = vector.broadcast %c0_i32_73 : i32 to vector<16x78xi32>
    %136 = arith.addi %134, %135 : vector<16x78xi32>
    %137 = arith.addi %132, %136 : vector<16x78xi32>
    %138 = arith.cmpi eq, %122, %137 : vector<16x78xi32>
    %cst_74 = arith.constant 1.000000e+00 : f32
    %cst_75 = arith.constant 0.000000e+00 : f32
    %139 = vector.broadcast %cst_74 : f32 to vector<16x78xf32>
    %140 = vector.broadcast %cst_75 : f32 to vector<16x78xf32>
    %141 = arith.select %138, %139, %140 : vector<16x78xi1>, vector<16x78xf32>
    %cst_76 = arith.constant dense<0.000000e+00> : vector<16x128xf32>
    %142 = tpu.matmul %141, %120, %cst_76 {dimension_numbers = #tpu.dot_dimension_numbers<[1], [0], [0], [1], [0, 0, 1, 1], [], []>} : vector<16x78xf32>, vector<78x128xf32>, vector<16x128xf32> -> vector<16x128xf32>
    %c2_i32_77 = arith.constant 2 : i32
    %143 = vector.broadcast %c2_i32_77 : i32 to vector<16x78xi32>
    %144 = arith.muli %143, %124 : vector<16x78xi32>
    %c0_i32_78 = arith.constant 0 : i32
    %145 = vector.broadcast %c0_i32_78 : i32 to vector<16x78xi32>
    %146 = arith.addi %144, %145 : vector<16x78xi32>
    %c10_i32_79 = arith.constant 10 : i32
    %147 = vector.broadcast %c10_i32_79 : i32 to vector<16x78xi32>
    %148 = arith.muli %146, %147 : vector<16x78xi32>
    %c2_i32_80 = arith.constant 2 : i32
    %149 = vector.broadcast %c2_i32_80 : i32 to vector<16x78xi32>
    %150 = arith.muli %149, %126 : vector<16x78xi32>
    %c1_i32_81 = arith.constant 1 : i32
    %151 = vector.broadcast %c1_i32_81 : i32 to vector<16x78xi32>
    %152 = arith.addi %150, %151 : vector<16x78xi32>
    %153 = arith.addi %148, %152 : vector<16x78xi32>
    %154 = arith.cmpi eq, %122, %153 : vector<16x78xi32>
    %cst_82 = arith.constant 1.000000e+00 : f32
    %cst_83 = arith.constant 0.000000e+00 : f32
    %155 = vector.broadcast %cst_82 : f32 to vector<16x78xf32>
    %156 = vector.broadcast %cst_83 : f32 to vector<16x78xf32>
    %157 = arith.select %154, %155, %156 : vector<16x78xi1>, vector<16x78xf32>
    %cst_84 = arith.constant dense<0.000000e+00> : vector<16x128xf32>
    %158 = tpu.matmul %157, %120, %cst_84 {dimension_numbers = #tpu.dot_dimension_numbers<[1], [0], [0], [1], [0, 0, 1, 1], [], []>} : vector<16x78xf32>, vector<78x128xf32>, vector<16x128xf32> -> vector<16x128xf32>
    %159 = arith.maximumf %142, %158 : vector<16x128xf32>
    %c2_i32_85 = arith.constant 2 : i32
    %160 = vector.broadcast %c2_i32_85 : i32 to vector<16x78xi32>
    %161 = arith.muli %160, %124 : vector<16x78xi32>
    %c1_i32_86 = arith.constant 1 : i32
    %162 = vector.broadcast %c1_i32_86 : i32 to vector<16x78xi32>
    %163 = arith.addi %161, %162 : vector<16x78xi32>
    %c10_i32_87 = arith.constant 10 : i32
    %164 = vector.broadcast %c10_i32_87 : i32 to vector<16x78xi32>
    %165 = arith.muli %163, %164 : vector<16x78xi32>
    %c2_i32_88 = arith.constant 2 : i32
    %166 = vector.broadcast %c2_i32_88 : i32 to vector<16x78xi32>
    %167 = arith.muli %166, %126 : vector<16x78xi32>
    %c0_i32_89 = arith.constant 0 : i32
    %168 = vector.broadcast %c0_i32_89 : i32 to vector<16x78xi32>
    %169 = arith.addi %167, %168 : vector<16x78xi32>
    %170 = arith.addi %165, %169 : vector<16x78xi32>
    %171 = arith.cmpi eq, %122, %170 : vector<16x78xi32>
    %cst_90 = arith.constant 1.000000e+00 : f32
    %cst_91 = arith.constant 0.000000e+00 : f32
    %172 = vector.broadcast %cst_90 : f32 to vector<16x78xf32>
    %173 = vector.broadcast %cst_91 : f32 to vector<16x78xf32>
    %174 = arith.select %171, %172, %173 : vector<16x78xi1>, vector<16x78xf32>
    %cst_92 = arith.constant dense<0.000000e+00> : vector<16x128xf32>
    %175 = tpu.matmul %174, %120, %cst_92 {dimension_numbers = #tpu.dot_dimension_numbers<[1], [0], [0], [1], [0, 0, 1, 1], [], []>} : vector<16x78xf32>, vector<78x128xf32>, vector<16x128xf32> -> vector<16x128xf32>
    %176 = arith.maximumf %159, %175 : vector<16x128xf32>
    %c2_i32_93 = arith.constant 2 : i32
    %177 = vector.broadcast %c2_i32_93 : i32 to vector<16x78xi32>
    %178 = arith.muli %177, %124 : vector<16x78xi32>
    %c1_i32_94 = arith.constant 1 : i32
    %179 = vector.broadcast %c1_i32_94 : i32 to vector<16x78xi32>
    %180 = arith.addi %178, %179 : vector<16x78xi32>
    %c10_i32_95 = arith.constant 10 : i32
    %181 = vector.broadcast %c10_i32_95 : i32 to vector<16x78xi32>
    %182 = arith.muli %180, %181 : vector<16x78xi32>
    %c2_i32_96 = arith.constant 2 : i32
    %183 = vector.broadcast %c2_i32_96 : i32 to vector<16x78xi32>
    %184 = arith.muli %183, %126 : vector<16x78xi32>
    %c1_i32_97 = arith.constant 1 : i32
    %185 = vector.broadcast %c1_i32_97 : i32 to vector<16x78xi32>
    %186 = arith.addi %184, %185 : vector<16x78xi32>
    %187 = arith.addi %182, %186 : vector<16x78xi32>
    %188 = arith.cmpi eq, %122, %187 : vector<16x78xi32>
    %cst_98 = arith.constant 1.000000e+00 : f32
    %cst_99 = arith.constant 0.000000e+00 : f32
    %189 = vector.broadcast %cst_98 : f32 to vector<16x78xf32>
    %190 = vector.broadcast %cst_99 : f32 to vector<16x78xf32>
    %191 = arith.select %188, %189, %190 : vector<16x78xi1>, vector<16x78xf32>
    %cst_100 = arith.constant dense<0.000000e+00> : vector<16x128xf32>
    %192 = tpu.matmul %191, %120, %cst_100 {dimension_numbers = #tpu.dot_dimension_numbers<[1], [0], [0], [1], [0, 0, 1, 1], [], []>} : vector<16x78xf32>, vector<78x128xf32>, vector<16x128xf32> -> vector<16x128xf32>
    %193 = arith.maximumf %176, %192 : vector<16x128xf32>
    %c0_101 = arith.constant 0 : index
    %c0_102 = arith.constant 0 : index
    %194 = vector.load %arg4[%c0_101, %c0_102] : memref<1x128xf32, #tpu.memory_space<vmem>>, vector<1x128xf32>
    %195 = vector.broadcast %194 : vector<1x128xf32> to vector<16x128xf32>
    %196 = arith.addf %193, %195 : vector<16x128xf32>
    %cst_103 = arith.constant 0.000000e+00 : f32
    %197 = vector.broadcast %cst_103 : f32 to vector<16x128xf32>
    %198 = arith.maximumf %196, %197 : vector<16x128xf32>
    %199 = tpu.iota {dimensions = array<i32: 0>} : vector<36x16xi32>
    %200 = tpu.iota {dimensions = array<i32: 1>} : vector<36x16xi32>
    %c2_i32_104 = arith.constant 2 : i32
    %201 = vector.broadcast %c2_i32_104 : i32 to vector<36x16xi32>
    %202 = arith.shrsi %200, %201 : vector<36x16xi32>
    %c3_i32_105 = arith.constant 3 : i32
    %203 = vector.broadcast %c3_i32_105 : i32 to vector<36x16xi32>
    %204 = arith.andi %200, %203 : vector<36x16xi32>
    %c1_i32_106 = arith.constant 1 : i32
    %205 = vector.broadcast %c1_i32_106 : i32 to vector<36x16xi32>
    %206 = arith.addi %202, %205 : vector<36x16xi32>
    %c6_i32 = arith.constant 6 : i32
    %207 = vector.broadcast %c6_i32 : i32 to vector<36x16xi32>
    %208 = arith.muli %206, %207 : vector<36x16xi32>
    %c1_i32_107 = arith.constant 1 : i32
    %209 = vector.broadcast %c1_i32_107 : i32 to vector<36x16xi32>
    %210 = arith.addi %204, %209 : vector<36x16xi32>
    %211 = arith.addi %208, %210 : vector<36x16xi32>
    %212 = arith.cmpi eq, %199, %211 : vector<36x16xi32>
    %cst_108 = arith.constant 1.000000e+00 : f32
    %cst_109 = arith.constant 0.000000e+00 : f32
    %213 = vector.broadcast %cst_108 : f32 to vector<36x16xf32>
    %214 = vector.broadcast %cst_109 : f32 to vector<36x16xf32>
    %215 = arith.select %212, %213, %214 : vector<36x16xi1>, vector<36x16xf32>
    %cst_110 = arith.constant dense<0.000000e+00> : vector<36x128xf32>
    %216 = tpu.matmul %215, %198, %cst_110 {dimension_numbers = #tpu.dot_dimension_numbers<[1], [0], [0], [1], [0, 0, 1, 1], [], []>} : vector<36x16xf32>, vector<16x128xf32>, vector<36x128xf32> -> vector<36x128xf32>
    %c0_111 = arith.constant 0 : index
    %c0_112 = arith.constant 0 : index
    %217 = vector.load %arg11[%c0_111, %c0_112] : memref<36x128xf32, #tpu.memory_space<vmem>>, vector<36x128xf32>
    tpu.vector_store %arg11[%c0_111, %c0_112], %216 {strides = array<i32>} : memref<36x128xf32, #tpu.memory_space<vmem>>, vector<36x128xf32>,
    %c0_113 = arith.constant 0 : index
    %c0_114 = arith.constant 0 : index
    %218 = vector.load %arg11[%c0_113, %c0_114] : memref<36x128xf32, #tpu.memory_space<vmem>>, vector<22x128xf32>
    %c1_115 = arith.constant 1 : index
    %c0_116 = arith.constant 0 : index
    %219 = vector.load %arg11[%c1_115, %c0_116] : memref<36x128xf32, #tpu.memory_space<vmem>>, vector<22x128xf32>
    %c2_117 = arith.constant 2 : index
    %c0_118 = arith.constant 0 : index
    %220 = vector.load %arg11[%c2_117, %c0_118] : memref<36x128xf32, #tpu.memory_space<vmem>>, vector<22x128xf32>
    %c6 = arith.constant 6 : index
    %c0_119 = arith.constant 0 : index
    %221 = vector.load %arg11[%c6, %c0_119] : memref<36x128xf32, #tpu.memory_space<vmem>>, vector<22x128xf32>
    %c7 = arith.constant 7 : index
    %c0_120 = arith.constant 0 : index
    %222 = vector.load %arg11[%c7, %c0_120] : memref<36x128xf32, #tpu.memory_space<vmem>>, vector<22x128xf32>
    %c8 = arith.constant 8 : index
    %c0_121 = arith.constant 0 : index
    %223 = vector.load %arg11[%c8, %c0_121] : memref<36x128xf32, #tpu.memory_space<vmem>>, vector<22x128xf32>
    %c12_122 = arith.constant 12 : index
    %c0_123 = arith.constant 0 : index
    %224 = vector.load %arg11[%c12_122, %c0_123] : memref<36x128xf32, #tpu.memory_space<vmem>>, vector<22x128xf32>
    %c13 = arith.constant 13 : index
    %c0_124 = arith.constant 0 : index
    %225 = vector.load %arg11[%c13, %c0_124] : memref<36x128xf32, #tpu.memory_space<vmem>>, vector<22x128xf32>
    %c14 = arith.constant 14 : index
    %c0_125 = arith.constant 0 : index
    %226 = vector.load %arg11[%c14, %c0_125] : memref<36x128xf32, #tpu.memory_space<vmem>>, vector<22x128xf32>
    %227 = tpu.concatenate %218, %219, %220, %221, %222, %223, %224, %225, %226 in 1 : vector<22x128xf32>, vector<22x128xf32>, vector<22x128xf32>, vector<22x128xf32>, vector<22x128xf32>, vector<22x128xf32>, vector<22x128xf32>, vector<22x128xf32>, vector<22x128xf32> -> vector<22x1152xf32>
    %c0_126 = arith.constant 0 : index
    %c0_127 = arith.constant 0 : index
    %228 = vector.load %arg5[%c0_126, %c0_127] : memref<1152x128xf32, #tpu.memory_space<vmem>>, vector<1152x128xf32>
    %cst_128 = arith.constant dense<0.000000e+00> : vector<22x128xf32>
    %229 = tpu.matmul %227, %228, %cst_128 {dimension_numbers = #tpu.dot_dimension_numbers<[1], [0], [0], [1], [0, 0, 1, 1], [], []>} : vector<22x1152xf32>, vector<1152x128xf32>, vector<22x128xf32> -> vector<22x128xf32>
    %230 = tpu.iota {dimensions = array<i32: 0>} : vector<4x22xi32>
    %231 = tpu.iota {dimensions = array<i32: 1>} : vector<4x22xi32>
    %c1_i32_129 = arith.constant 1 : i32
    %232 = vector.broadcast %c1_i32_129 : i32 to vector<4x22xi32>
    %233 = arith.shrsi %230, %232 : vector<4x22xi32>
    %c1_i32_130 = arith.constant 1 : i32
    %234 = vector.broadcast %c1_i32_130 : i32 to vector<4x22xi32>
    %235 = arith.andi %230, %234 : vector<4x22xi32>
    %c2_i32_131 = arith.constant 2 : i32
    %236 = vector.broadcast %c2_i32_131 : i32 to vector<4x22xi32>
    %237 = arith.muli %236, %233 : vector<4x22xi32>
    %c0_i32_132 = arith.constant 0 : i32
    %238 = vector.broadcast %c0_i32_132 : i32 to vector<4x22xi32>
    %239 = arith.addi %237, %238 : vector<4x22xi32>
    %c6_i32_133 = arith.constant 6 : i32
    %240 = vector.broadcast %c6_i32_133 : i32 to vector<4x22xi32>
    %241 = arith.muli %239, %240 : vector<4x22xi32>
    %c2_i32_134 = arith.constant 2 : i32
    %242 = vector.broadcast %c2_i32_134 : i32 to vector<4x22xi32>
    %243 = arith.muli %242, %235 : vector<4x22xi32>
    %c0_i32_135 = arith.constant 0 : i32
    %244 = vector.broadcast %c0_i32_135 : i32 to vector<4x22xi32>
    %245 = arith.addi %243, %244 : vector<4x22xi32>
    %246 = arith.addi %241, %245 : vector<4x22xi32>
    %247 = arith.cmpi eq, %231, %246 : vector<4x22xi32>
    %cst_136 = arith.constant 1.000000e+00 : f32
    %cst_137 = arith.constant 0.000000e+00 : f32
    %248 = vector.broadcast %cst_136 : f32 to vector<4x22xf32>
    %249 = vector.broadcast %cst_137 : f32 to vector<4x22xf32>
    %250 = arith.select %247, %248, %249 : vector<4x22xi1>, vector<4x22xf32>
    %cst_138 = arith.constant dense<0.000000e+00> : vector<4x128xf32>
    %251 = tpu.matmul %250, %229, %cst_138 {dimension_numbers = #tpu.dot_dimension_numbers<[1], [0], [0], [1], [0, 0, 1, 1], [], []>} : vector<4x22xf32>, vector<22x128xf32>, vector<4x128xf32> -> vector<4x128xf32>
    %c2_i32_139 = arith.constant 2 : i32
    %252 = vector.broadcast %c2_i32_139 : i32 to vector<4x22xi32>
    %253 = arith.muli %252, %233 : vector<4x22xi32>
    %c0_i32_140 = arith.constant 0 : i32
    %254 = vector.broadcast %c0_i32_140 : i32 to vector<4x22xi32>
    %255 = arith.addi %253, %254 : vector<4x22xi32>
    %c6_i32_141 = arith.constant 6 : i32
    %256 = vector.broadcast %c6_i32_141 : i32 to vector<4x22xi32>
    %257 = arith.muli %255, %256 : vector<4x22xi32>
    %c2_i32_142 = arith.constant 2 : i32
    %258 = vector.broadcast %c2_i32_142 : i32 to vector<4x22xi32>
    %259 = arith.muli %258, %235 : vector<4x22xi32>
    %c1_i32_143 = arith.constant 1 : i32
    %260 = vector.broadcast %c1_i32_143 : i32 to vector<4x22xi32>
    %261 = arith.addi %259, %260 : vector<4x22xi32>
    %262 = arith.addi %257, %261 : vector<4x22xi32>
    %263 = arith.cmpi eq, %231, %262 : vector<4x22xi32>
    %cst_144 = arith.constant 1.000000e+00 : f32
    %cst_145 = arith.constant 0.000000e+00 : f32
    %264 = vector.broadcast %cst_144 : f32 to vector<4x22xf32>
    %265 = vector.broadcast %cst_145 : f32 to vector<4x22xf32>
    %266 = arith.select %263, %264, %265 : vector<4x22xi1>, vector<4x22xf32>
    %cst_146 = arith.constant dense<0.000000e+00> : vector<4x128xf32>
    %267 = tpu.matmul %266, %229, %cst_146 {dimension_numbers = #tpu.dot_dimension_numbers<[1], [0], [0], [1], [0, 0, 1, 1], [], []>} : vector<4x22xf32>, vector<22x128xf32>, vector<4x128xf32> -> vector<4x128xf32>
    %268 = arith.maximumf %251, %267 : vector<4x128xf32>
    %c2_i32_147 = arith.constant 2 : i32
    %269 = vector.broadcast %c2_i32_147 : i32 to vector<4x22xi32>
    %270 = arith.muli %269, %233 : vector<4x22xi32>
    %c1_i32_148 = arith.constant 1 : i32
    %271 = vector.broadcast %c1_i32_148 : i32 to vector<4x22xi32>
    %272 = arith.addi %270, %271 : vector<4x22xi32>
    %c6_i32_149 = arith.constant 6 : i32
    %273 = vector.broadcast %c6_i32_149 : i32 to vector<4x22xi32>
    %274 = arith.muli %272, %273 : vector<4x22xi32>
    %c2_i32_150 = arith.constant 2 : i32
    %275 = vector.broadcast %c2_i32_150 : i32 to vector<4x22xi32>
    %276 = arith.muli %275, %235 : vector<4x22xi32>
    %c0_i32_151 = arith.constant 0 : i32
    %277 = vector.broadcast %c0_i32_151 : i32 to vector<4x22xi32>
    %278 = arith.addi %276, %277 : vector<4x22xi32>
    %279 = arith.addi %274, %278 : vector<4x22xi32>
    %280 = arith.cmpi eq, %231, %279 : vector<4x22xi32>
    %cst_152 = arith.constant 1.000000e+00 : f32
    %cst_153 = arith.constant 0.000000e+00 : f32
    %281 = vector.broadcast %cst_152 : f32 to vector<4x22xf32>
    %282 = vector.broadcast %cst_153 : f32 to vector<4x22xf32>
    %283 = arith.select %280, %281, %282 : vector<4x22xi1>, vector<4x22xf32>
    %cst_154 = arith.constant dense<0.000000e+00> : vector<4x128xf32>
    %284 = tpu.matmul %283, %229, %cst_154 {dimension_numbers = #tpu.dot_dimension_numbers<[1], [0], [0], [1], [0, 0, 1, 1], [], []>} : vector<4x22xf32>, vector<22x128xf32>, vector<4x128xf32> -> vector<4x128xf32>
    %285 = arith.maximumf %268, %284 : vector<4x128xf32>
    %c2_i32_155 = arith.constant 2 : i32
    %286 = vector.broadcast %c2_i32_155 : i32 to vector<4x22xi32>
    %287 = arith.muli %286, %233 : vector<4x22xi32>
    %c1_i32_156 = arith.constant 1 : i32
    %288 = vector.broadcast %c1_i32_156 : i32 to vector<4x22xi32>
    %289 = arith.addi %287, %288 : vector<4x22xi32>
    %c6_i32_157 = arith.constant 6 : i32
    %290 = vector.broadcast %c6_i32_157 : i32 to vector<4x22xi32>
    %291 = arith.muli %289, %290 : vector<4x22xi32>
    %c2_i32_158 = arith.constant 2 : i32
    %292 = vector.broadcast %c2_i32_158 : i32 to vector<4x22xi32>
    %293 = arith.muli %292, %235 : vector<4x22xi32>
    %c1_i32_159 = arith.constant 1 : i32
    %294 = vector.broadcast %c1_i32_159 : i32 to vector<4x22xi32>
    %295 = arith.addi %293, %294 : vector<4x22xi32>
    %296 = arith.addi %291, %295 : vector<4x22xi32>
    %297 = arith.cmpi eq, %231, %296 : vector<4x22xi32>
    %cst_160 = arith.constant 1.000000e+00 : f32
    %cst_161 = arith.constant 0.000000e+00 : f32
    %298 = vector.broadcast %cst_160 : f32 to vector<4x22xf32>
    %299 = vector.broadcast %cst_161 : f32 to vector<4x22xf32>
    %300 = arith.select %297, %298, %299 : vector<4x22xi1>, vector<4x22xf32>
    %cst_162 = arith.constant dense<0.000000e+00> : vector<4x128xf32>
    %301 = tpu.matmul %300, %229, %cst_162 {dimension_numbers = #tpu.dot_dimension_numbers<[1], [0], [0], [1], [0, 0, 1, 1], [], []>} : vector<4x22xf32>, vector<22x128xf32>, vector<4x128xf32> -> vector<4x128xf32>
    %302 = arith.maximumf %285, %301 : vector<4x128xf32>
    %c0_163 = arith.constant 0 : index
    %c0_164 = arith.constant 0 : index
    %303 = vector.load %arg6[%c0_163, %c0_164] : memref<1x128xf32, #tpu.memory_space<vmem>>, vector<1x128xf32>
    %304 = vector.broadcast %303 : vector<1x128xf32> to vector<4x128xf32>
    %305 = arith.addf %302, %304 : vector<4x128xf32>
    %cst_165 = arith.constant 0.000000e+00 : f32
    %306 = vector.broadcast %cst_165 : f32 to vector<4x128xf32>
    %307 = arith.maximumf %305, %306 : vector<4x128xf32>
    %c0_166 = arith.constant 0 : index
    %c0_167 = arith.constant 0 : index
    %308 = vector.load %arg7[%c0_166, %c0_167] : memref<4x128xf32, #tpu.memory_space<vmem>>, vector<4x128xf32>
    %309 = arith.mulf %307, %308 : vector<4x128xf32>
    %cst_168 = arith.constant dense<0.000000e+00> : vector<128xf32>
    %310 = vector.multi_reduction <add>, %309, %cst_168 [0] : vector<4x128xf32> to vector<128xf32>
    %311 = vector.shape_cast %310 : vector<128xf32> to vector<1x128xf32>
    %cst_169 = arith.constant dense<0.000000e+00> : vector<1xf32>
    %312 = vector.multi_reduction <add>, %311, %cst_169 [1] : vector<1x128xf32> to vector<1xf32>
    %313 = vector.shape_cast %312 : vector<1xf32> to vector<1x1xf32>
    %c0_170 = arith.constant 0 : index
    %c0_171 = arith.constant 0 : index
    %314 = vector.load %arg8[%c0_170, %c0_171] : memref<1x1xf32, #tpu.memory_space<vmem>>, vector<1x1xf32>
    %315 = arith.addf %313, %314 : vector<1x1xf32>
    %cst_172 = arith.constant 0.000000e+00 : f32
    %316 = vector.broadcast %cst_172 : f32 to vector<1x1xf32>
    %317 = arith.subf %316, %315 : vector<1x1xf32>
    %318 = math.exp %317 : vector<1x1xf32>
    %cst_173 = arith.constant 1.000000e+00 : f32
    %319 = vector.broadcast %cst_173 : f32 to vector<1x1xf32>
    %320 = arith.addf %319, %318 : vector<1x1xf32>
    %cst_174 = arith.constant 1.000000e+00 : f32
    %321 = vector.broadcast %cst_174 : f32 to vector<1x1xf32>
    %322 = arith.divf %321, %320 : vector<1x1xf32>
    %c0_175 = arith.constant 0 : index
    %c0_176 = arith.constant 0 : index
    %323 = vector.load %arg9[%c0_175, %c0_176] : memref<1x1xf32, #tpu.memory_space<vmem>>, vector<1x1xf32>
    tpu.vector_store %arg9[%c0_175, %c0_176], %322 {strides = array<i32>} : memref<1x1xf32, #tpu.memory_space<vmem>>, vector<1x1xf32>,
    return
  }
}

</mosaic_0001>

<llo_original>
// kernel: pruned_cnn_forward.1
$region0: #{pruned_cnn_forward.1}
  #allocation0 [shape = 'u32[]', space=smem, size = 0x4, offset = 0x4, fixed_abs, tag = 'smem constant byte address 0x4 - core index']
  #allocation1 [shape = 'u32[72,128]{1,0:T(1,128)}', space=vmem, size = 0x9000, scoped, tag = 'internal scratch']
  #allocation2 [shape = 'f32[100,128]{1,0:T(8,128)}', space=vmem, size = 0xd000, scoped, tag = 'scratch operand']
  #allocation3 [shape = 'f32[36,128]{1,0:T(8,128)}', space=vmem, size = 0x5000, scoped, tag = 'scratch operand']
  #allocation4 [shape = 'f32[1,1]{1,0:T(1,128)S(1)}', space=vmem, size = 0x200, scoped, tag = 'scoped memory for pruned_cnn_forward.1']
  %s0 = inlined_call_operand.vmem [shape: f32[324,128], index: 0, kind: input, shape index: {}]
  %s1 = inlined_call_operand.vmem [shape: f32[1152,128], index: 1, kind: input, shape index: {}]
  %s2 = inlined_call_operand.vmem [shape: f32[1,128], index: 2, kind: input, shape index: {}]
  %s3 = inlined_call_operand.vmem [shape: f32[1152,128], index: 3, kind: input, shape index: {}]
  %s4 = inlined_call_operand.vmem [shape: f32[1,128], index: 4, kind: input, shape index: {}]
  %s5 = inlined_call_operand.vmem [shape: f32[1152,128], index: 5, kind: input, shape index: {}]
  %s6 = inlined_call_operand.vmem [shape: f32[1,128], index: 6, kind: input, shape index: {}]
  %s7 = inlined_call_operand.vmem [shape: f32[4,128], index: 7, kind: input, shape index: {}]
  %s8 = inlined_call_operand.<no memory space> [shape: f32[1,1], index: 8, kind: input, shape index: {}]
  %s9 = inlined_call_operand.hbm [shape: f32[1,1], index: 9, kind: output, shape index: {}]
  %s10 = sld [smem:[#allocation0]]
  $region46: #{pruned_cnn_forward.1} parent=0
    _
  %s12 = ssub.s32 1, %s10
  %s13 = scalar_select 0, %s12, %s10
  %v14 = vstv %s8
  %15 = vst [vmem:[#allocation4] sm:$0x1] %v14
  $region1: #{pruned_cnn_forward.1} parent=0
    #allocation5 [shape = 'u8[512]{0}', space=vmem, size = 0x400, scoped, tag = 'output window, operand 0, single buffered']
    #allocation6 [shape = 's32[1]{0}', space=sflag, size = 0x4, scoped, tag = 'scoped memory for pruned_cnn_forward.1']
    %16 = vsyncpa [#allocation6], 0
    // Predicated region
    $region2: #{pruned_cnn_forward.1} parent=1 // pred_check
      _
    $region3: #{pruned_cnn_forward.1} parent=1 // pred_check_branch
      %18 = sbr.rel (0) target = $region5
    $region4: #{pruned_cnn_forward.1} parent=1 // pred_region
      _
    $region5: #{pruned_cnn_forward.1} parent=1 // pred_fallthru
      _
    // Predicated region
    $region6: #{pruned_cnn_forward.1} parent=1 // pred_check
      _
    $region7: #{pruned_cnn_forward.1} parent=1 // pred_check_branch
      %20 = sbr.rel (0) target = $region9
    $region8: #{pruned_cnn_forward.1} parent=1 // pred_region
      _
    $region9: #{pruned_cnn_forward.1} parent=1 // pred_fallthru
      _
    // Predicated region
    $region10: #{pruned_cnn_forward.1} parent=1 // pred_check
      _
    $region11: #{pruned_cnn_forward.1} parent=1 // pred_check_branch
      %22 = sbr.rel (0) target = $region13
    $region12: #{pruned_cnn_forward.1} parent=1 // pred_region
      _
    $region13: #{pruned_cnn_forward.1} parent=1 // pred_fallthru
      _
    // Predicated region
    $region14: #{pruned_cnn_forward.1} parent=1 // pred_check
      _
    $region15: #{pruned_cnn_forward.1} parent=1 // pred_check_branch
      %24 = sbr.rel (0) target = $region17
    $region16: #{pruned_cnn_forward.1} parent=1 // pred_region
      _
    $region17: #{pruned_cnn_forward.1} parent=1 // pred_fallthru
      _
    // Predicated region
    $region18: #{pruned_cnn_forward.1} parent=1 // pred_check
      _
    $region19: #{pruned_cnn_forward.1} parent=1 // pred_check_branch
      %26 = sbr.rel (0) target = $region21
    $region20: #{pruned_cnn_forward.1} parent=1 // pred_region
      _
    $region21: #{pruned_cnn_forward.1} parent=1 // pred_fallthru
      _
    // Predicated region
    $region22: #{pruned_cnn_forward.1} parent=1 // pred_check
      _
    $region23: #{pruned_cnn_forward.1} parent=1 // pred_check_branch
      %28 = sbr.rel (0) target = $region25
    $region24: #{pruned_cnn_forward.1} parent=1 // pred_region
      _
    $region25: #{pruned_cnn_forward.1} parent=1 // pred_fallthru
      _
    // Predicated region
    $region26: #{pruned_cnn_forward.1} parent=1 // pred_check
      _
    $region27: #{pruned_cnn_forward.1} parent=1 // pred_check_branch
      %30 = sbr.rel (0) target = $region29
    $region28: #{pruned_cnn_forward.1} parent=1 // pred_region
      _
    $region29: #{pruned_cnn_forward.1} parent=1 // pred_fallthru
      _
    // Predicated region
    $region30: #{pruned_cnn_forward.1} parent=1 // pred_check
      _
    $region31: #{pruned_cnn_forward.1} parent=1 // pred_check_branch
      %32 = sbr.rel (0) target = $region33
    $region32: #{pruned_cnn_forward.1} parent=1 // pred_region
      _
    $region33: #{pruned_cnn_forward.1} parent=1 // pred_fallthru
      _
    // Predicated region
    $region34: #{pruned_cnn_forward.1} parent=1 // pred_check
      _
    $region35: #{pruned_cnn_forward.1} parent=1 // pred_check_branch
      %34 = sbr.rel (0) target = $region37
    $region36: #{pruned_cnn_forward.1} parent=1 // pred_region
      _
    $region37: #{pruned_cnn_forward.1} parent=1 // pred_fallthru
      _
    %v35 = vld [vmem:[%s0] sm:$0xff]
    %v36 = vld [vmem:[%s0 + $0x8] sm:$0xff]
    %v37 = vld [vmem:[%s0 + $0x10] sm:$0xff]
    %v38 = vld [vmem:[%s0 + $0x18] sm:$0xff]
    %v39 = vld [vmem:[%s0 + $0x20] sm:$0xff]
    %v40 = vld [vmem:[%s0 + $0x28] sm:$0xff]
    %v41 = vld [vmem:[%s0 + $0x30] sm:$0xff]
    %v42 = vld [vmem:[%s0 + $0x38] sm:$0xff]
    %v43 = vld [vmem:[%s0 + $0x40] sm:$0xff]
    %v44 = vld [vmem:[%s0 + $0x48] sm:$0xff]
    %v45 = vld [vmem:[%s0 + $0x50] sm:$0xff]
    %v46 = vld [vmem:[%s0 + $0x58] sm:$0xff]
    %v47 = vld [vmem:[%s0 + $0x60] sm:$0xff]
    %v48 = vld [vmem:[%s0 + $0x68] sm:$0xff]
    %v49 = vld [vmem:[%s0 + $0x70] sm:$0xff]
    %v50 = vld [vmem:[%s0 + $0x78] sm:$0xff]
    %v51 = vld [vmem:[%s0 + $0x80] sm:$0xff]
    %v52 = vld [vmem:[%s0 + $0x88] sm:$0xff]
    %v53 = vld [vmem:[%s0 + $0x90] sm:$0xff]
    %v54 = vld [vmem:[%s0 + $0x98] sm:$0xff]
    %v55 = vld [vmem:[%s0 + $0xa0] sm:$0xff]
    %v56 = vld [vmem:[%s0 + $0xa8] sm:$0xff]
    %v57 = vld [vmem:[%s0 + $0xb0] sm:$0xff]
    %v58 = vld [vmem:[%s0 + $0xb8] sm:$0xff]
    %v59 = vld [vmem:[%s0 + $0xc0] sm:$0xff]
    %v60 = vld [vmem:[%s0 + $0xc8] sm:$0xff]
    %v61 = vld [vmem:[%s0 + $0xd0] sm:$0xff]
    %v62 = vld [vmem:[%s0 + $0xd8] sm:$0xff]
    %v63 = vld [vmem:[%s0 + $0xe0] sm:$0xff]
    %v64 = vld [vmem:[%s0 + $0xe8] sm:$0xff]
    %v65 = vld [vmem:[%s0 + $0xf0] sm:$0xff]
    %v66 = vld [vmem:[%s0 + $0xf8] sm:$0xff]
    %v67 = vld [vmem:[%s0 + $0x100] sm:$0xff]
    %v68 = vld [vmem:[%s0 + $0x108] sm:$0xff]
    %v69 = vld [vmem:[%s0 + $0x110] sm:$0xff]
    %v70 = vld [vmem:[%s0 + $0x118] sm:$0x3f]
    %v71 = vld [vmem:[%s0 + $0x1] sm:$0xff]
    %v72 = vld [vmem:[%s0 + $0x9] sm:$0xff]
    %v73 = vld [vmem:[%s0 + $0x11] sm:$0xff]
    %v74 = vld [vmem:[%s0 + $0x19] sm:$0xff]
    %v75 = vld [vmem:[%s0 + $0x21] sm:$0xff]
    %v76 = vld [vmem:[%s0 + $0x29] sm:$0xff]
    %v77 = vld [vmem:[%s0 + $0x31] sm:$0xff]
    %v78 = vld [vmem:[%s0 + $0x39] sm:$0xff]
    %v79 = vld [vmem:[%s0 + $0x41] sm:$0xff]
    %v80 = vld [vmem:[%s0 + $0x49] sm:$0xff]
    %v81 = vld [vmem:[%s0 + $0x51] sm:$0xff]
    %v82 = vld [vmem:[%s0 + $0x59] sm:$0xff]
    %v83 = vld [vmem:[%s0 + $0x61] sm:$0xff]
    %v84 = vld [vmem:[%s0 + $0x69] sm:$0xff]
    %v85 = vld [vmem:[%s0 + $0x71] sm:$0xff]
    %v86 = vld [vmem:[%s0 + $0x79] sm:$0xff]
    %v87 = vld [vmem:[%s0 + $0x81] sm:$0xff]
    %v88 = vld [vmem:[%s0 + $0x89] sm:$0xff]
    %v89 = vld [vmem:[%s0 + $0x91] sm:$0xff]
    %v90 = vld [vmem:[%s0 + $0x99] sm:$0xff]
    %v91 = vld [vmem:[%s0 + $0xa1] sm:$0xff]
    %v92 = vld [vmem:[%s0 + $0xa9] sm:$0xff]
    %v93 = vld [vmem:[%s0 + $0xb1] sm:$0xff]
    %v94 = vld [vmem:[%s0 + $0xb9] sm:$0xff]
    %v95 = vld [vmem:[%s0 + $0xc1] sm:$0xff]
    %v96 = vld [vmem:[%s0 + $0xc9] sm:$0xff]
    %v97 = vld [vmem:[%s0 + $0xd1] sm:$0xff]
    %v98 = vld [vmem:[%s0 + $0xd9] sm:$0xff]
    %v99 = vld [vmem:[%s0 + $0xe1] sm:$0xff]
    %v100 = vld [vmem:[%s0 + $0xe9] sm:$0xff]
    %v101 = vld [vmem:[%s0 + $0xf1] sm:$0xff]
    %v102 = vld [vmem:[%s0 + $0xf9] sm:$0xff]
    %v103 = vld [vmem:[%s0 + $0x101] sm:$0xff]
    %v104 = vld [vmem:[%s0 + $0x109] sm:$0xff]
    %v105 = vld [vmem:[%s0 + $0x111] sm:$0xff]
    %v106 = vld [vmem:[%s0 + $0x119] sm:$0x3f]
    %v107 = vld [vmem:[%s0 + $0x2] sm:$0xff]
    %v108 = vld [vmem:[%s0 + $0xa] sm:$0xff]
    %v109 = vld [vmem:[%s0 + $0x12] sm:$0xff]
    %v110 = vld [vmem:[%s0 + $0x1a] sm:$0xff]
    %v111 = vld [vmem:[%s0 + $0x22] sm:$0xff]
    %v112 = vld [vmem:[%s0 + $0x2a] sm:$0xff]
    %v113 = vld [vmem:[%s0 + $0x32] sm:$0xff]
    %v114 = vld [vmem:[%s0 + $0x3a] sm:$0xff]
    %v115 = vld [vmem:[%s0 + $0x42] sm:$0xff]
    %v116 = vld [vmem:[%s0 + $0x4a] sm:$0xff]
    %v117 = vld [vmem:[%s0 + $0x52] sm:$0xff]
    %v118 = vld [vmem:[%s0 + $0x5a] sm:$0xff]
    %v119 = vld [vmem:[%s0 + $0x62] sm:$0xff]
    %v120 = vld [vmem:[%s0 + $0x6a] sm:$0xff]
    %v121 = vld [vmem:[%s0 + $0x72] sm:$0xff]
    %v122 = vld [vmem:[%s0 + $0x7a] sm:$0xff]
    %v123 = vld [vmem:[%s0 + $0x82] sm:$0xff]
    %v124 = vld [vmem:[%s0 + $0x8a] sm:$0xff]
    %v125 = vld [vmem:[%s0 + $0x92] sm:$0xff]
    %v126 = vld [vmem:[%s0 + $0x9a] sm:$0xff]
    %v127 = vld [vmem:[%s0 + $0xa2] sm:$0xff]
    %v128 = vld [vmem:[%s0 + $0xaa] sm:$0xff]
    %v129 = vld [vmem:[%s0 + $0xb2] sm:$0xff]
    %v130 = vld [vmem:[%s0 + $0xba] sm:$0xff]
    %v131 = vld [vmem:[%s0 + $0xc2] sm:$0xff]
    %v132 = vld [vmem:[%s0 + $0xca] sm:$0xff]
    %v133 = vld [vmem:[%s0 + $0xd2] sm:$0xff]
    %v134 = vld [vmem:[%s0 + $0xda] sm:$0xff]
    %v135 = vld [vmem:[%s0 + $0xe2] sm:$0xff]
    %v136 = vld [vmem:[%s0 + $0xea] sm:$0xff]
    %v137 = vld [vmem:[%s0 + $0xf2] sm:$0xff]
    %v138 = vld [vmem:[%s0 + $0xfa] sm:$0xff]
    %v139 = vld [vmem:[%s0 + $0x102] sm:$0xff]
    %v140 = vld [vmem:[%s0 + $0x10a] sm:$0xff]
    %v141 = vld [vmem:[%s0 + $0x112] sm:$0xff]
    %v142 = vld [vmem:[%s0 + $0x11a] sm:$0x3f]
    %v143 = vld [vmem:[%s0 + $0x11a] sm:$0xff]
    %v144 = vld [vmem:[%s0 + $0x122] sm:$0xff]
    %v145 = vld [vmem:[%s0 + $0x12a] sm:$0x3f]
    %v146 = vld [vmem:[%s0 + $0x13] sm:$0xff]
    %v147 = vld [vmem:[%s0 + $0x1b] sm:$0xff]
    %v148 = vld [vmem:[%s0 + $0x23] sm:$0xff]
    %v149 = vld [vmem:[%s0 + $0x2b] sm:$0xff]
    %v150 = vld [vmem:[%s0 + $0x33] sm:$0xff]
    %v151 = vld [vmem:[%s0 + $0x3b] sm:$0xff]
    %v152 = vld [vmem:[%s0 + $0x43] sm:$0xff]
    %v153 = vld [vmem:[%s0 + $0x4b] sm:$0xff]
    %v154 = vld [vmem:[%s0 + $0x53] sm:$0xff]
    %v155 = vld [vmem:[%s0 + $0x5b] sm:$0xff]
    %v156 = vld [vmem:[%s0 + $0x63] sm:$0xff]
    %v157 = vld [vmem:[%s0 + $0x6b] sm:$0xff]
    %v158 = vld [vmem:[%s0 + $0x73] sm:$0xff]
    %v159 = vld [vmem:[%s0 + $0x7b] sm:$0xff]
    %v160 = vld [vmem:[%s0 + $0x83] sm:$0xff]
    %v161 = vld [vmem:[%s0 + $0x8b] sm:$0xff]
    %v162 = vld [vmem:[%s0 + $0x93] sm:$0xff]
    %v163 = vld [vmem:[%s0 + $0x9b] sm:$0xff]
    %v164 = vld [vmem:[%s0 + $0xa3] sm:$0xff]
    %v165 = vld [vmem:[%s0 + $0xab] sm:$0xff]
    %v166 = vld [vmem:[%s0 + $0xb3] sm:$0xff]
    %v167 = vld [vmem:[%s0 + $0xbb] sm:$0xff]
    %v168 = vld [vmem:[%s0 + $0xc3] sm:$0xff]
    %v169 = vld [vmem:[%s0 + $0xcb] sm:$0xff]
    %v170 = vld [vmem:[%s0 + $0xd3] sm:$0xff]
    %v171 = vld [vmem:[%s0 + $0xdb] sm:$0xff]
    %v172 = vld [vmem:[%s0 + $0xe3] sm:$0xff]
    %v173 = vld [vmem:[%s0 + $0xeb] sm:$0xff]
    %v174 = vld [vmem:[%s0 + $0xf3] sm:$0xff]
    %v175 = vld [vmem:[%s0 + $0xfb] sm:$0xff]
    %v176 = vld [vmem:[%s0 + $0x103] sm:$0xff]
    %v177 = vld [vmem:[%s0 + $0x10b] sm:$0xff]
    %v178 = vld [vmem:[%s0 + $0x113] sm:$0xff]
    %v179 = vld [vmem:[%s0 + $0x11b] sm:$0xff]
    %v180 = vld [vmem:[%s0 + $0x123] sm:$0xff]
    %v181 = vld [vmem:[%s0 + $0x12b] sm:$0x3f]
    %v182 = vld [vmem:[%s0 + $0x14] sm:$0xff]
    %v183 = vld [vmem:[%s0 + $0x1c] sm:$0xff]
    %v184 = vld [vmem:[%s0 + $0x24] sm:$0xff]
    %v185 = vld [vmem:[%s0 + $0x2c] sm:$0xff]
    %v186 = vld [vmem:[%s0 + $0x34] sm:$0xff]
    %v187 = vld [vmem:[%s0 + $0x3c] sm:$0xff]
    %v188 = vld [vmem:[%s0 + $0x44] sm:$0xff]
    %v189 = vld [vmem:[%s0 + $0x4c] sm:$0xff]
    %v190 = vld [vmem:[%s0 + $0x54] sm:$0xff]
    %v191 = vld [vmem:[%s0 + $0x5c] sm:$0xff]
    %v192 = vld [vmem:[%s0 + $0x64] sm:$0xff]
    %v193 = vld [vmem:[%s0 + $0x6c] sm:$0xff]
    %v194 = vld [vmem:[%s0 + $0x74] sm:$0xff]
    %v195 = vld [vmem:[%s0 + $0x7c] sm:$0xff]
    %v196 = vld [vmem:[%s0 + $0x84] sm:$0xff]
    %v197 = vld [vmem:[%s0 + $0x8c] sm:$0xff]
    %v198 = vld [vmem:[%s0 + $0x94] sm:$0xff]
    %v199 = vld [vmem:[%s0 + $0x9c] sm:$0xff]
    %v200 = vld [vmem:[%s0 + $0xa4] sm:$0xff]
    %v201 = vld [vmem:[%s0 + $0xac] sm:$0xff]
    %v202 = vld [vmem:[%s0 + $0xb4] sm:$0xff]
    %v203 = vld [vmem:[%s0 + $0xbc] sm:$0xff]
    %v204 = vld [vmem:[%s0 + $0xc4] sm:$0xff]
    %v205 = vld [vmem:[%s0 + $0xcc] sm:$0xff]
    %v206 = vld [vmem:[%s0 + $0xd4] sm:$0xff]
    %v207 = vld [vmem:[%s0 + $0xdc] sm:$0xff]
    %v208 = vld [vmem:[%s0 + $0xe4] sm:$0xff]
    %v209 = vld [vmem:[%s0 + $0xec] sm:$0xff]
    %v210 = vld [vmem:[%s0 + $0xf4] sm:$0xff]
    %v211 = vld [vmem:[%s0 + $0xfc] sm:$0xff]
    %v212 = vld [vmem:[%s0 + $0x104] sm:$0xff]
    %v213 = vld [vmem:[%s0 + $0x10c] sm:$0xff]
    %v214 = vld [vmem:[%s0 + $0x114] sm:$0xff]
    %v215 = vld [vmem:[%s0 + $0x11c] sm:$0xff]
    %v216 = vld [vmem:[%s0 + $0x124] sm:$0xff]
    %v217 = vld [vmem:[%s0 + $0x12c] sm:$0x3f]
    %v218 = vld [vmem:[%s0 + $0x12c] sm:$0xff]
    %v219 = vld [vmem:[%s0 + $0x134] sm:$0xff]
    %v220 = vld [vmem:[%s0 + $0x13c] sm:$0x3f]
    %v221 = vld [vmem:[%s0 + $0x25] sm:$0xff]
    %v222 = vld [vmem:[%s0 + $0x2d] sm:$0xff]
    %v223 = vld [vmem:[%s0 + $0x35] sm:$0xff]
    %v224 = vld [vmem:[%s0 + $0x3d] sm:$0xff]
    %v225 = vld [vmem:[%s0 + $0x45] sm:$0xff]
    %v226 = vld [vmem:[%s0 + $0x4d] sm:$0xff]
    %v227 = vld [vmem:[%s0 + $0x55] sm:$0xff]
    %v228 = vld [vmem:[%s0 + $0x5d] sm:$0xff]
    %v229 = vld [vmem:[%s0 + $0x65] sm:$0xff]
    %v230 = vld [vmem:[%s0 + $0x6d] sm:$0xff]
    %v231 = vld [vmem:[%s0 + $0x75] sm:$0xff]
    %v232 = vld [vmem:[%s0 + $0x7d] sm:$0xff]
    %v233 = vld [vmem:[%s0 + $0x85] sm:$0xff]
    %v234 = vld [vmem:[%s0 + $0x8d] sm:$0xff]
    %v235 = vld [vmem:[%s0 + $0x95] sm:$0xff]
    %v236 = vld [vmem:[%s0 + $0x9d] sm:$0xff]
    %v237 = vld [vmem:[%s0 + $0xa5] sm:$0xff]
    %v238 = vld [vmem:[%s0 + $0xad] sm:$0xff]
    %v239 = vld [vmem:[%s0 + $0xb5] sm:$0xff]
    %v240 = vld [vmem:[%s0 + $0xbd] sm:$0xff]
    %v241 = vld [vmem:[%s0 + $0xc5] sm:$0xff]
    %v242 = vld [vmem:[%s0 + $0xcd] sm:$0xff]
    %v243 = vld [vmem:[%s0 + $0xd5] sm:$0xff]
    %v244 = vld [vmem:[%s0 + $0xdd] sm:$0xff]
    %v245 = vld [vmem:[%s0 + $0xe5] sm:$0xff]
    %v246 = vld [vmem:[%s0 + $0xed] sm:$0xff]
    %v247 = vld [vmem:[%s0 + $0xf5] sm:$0xff]
    %v248 = vld [vmem:[%s0 + $0xfd] sm:$0xff]
    %v249 = vld [vmem:[%s0 + $0x105] sm:$0xff]
    %v250 = vld [vmem:[%s0 + $0x10d] sm:$0xff]
    %v251 = vld [vmem:[%s0 + $0x115] sm:$0xff]
    %v252 = vld [vmem:[%s0 + $0x11d] sm:$0xff]
    %v253 = vld [vmem:[%s0 + $0x125] sm:$0xff]
    %v254 = vld [vmem:[%s0 + $0x12d] sm:$0xff]
    %v255 = vld [vmem:[%s0 + $0x135] sm:$0xff]
    %v256 = vld [vmem:[%s0 + $0x13d] sm:$0x3f]
    %v257 = vld [vmem:[%s0 + $0x26] sm:$0xff]
    %v258 = vld [vmem:[%s0 + $0x2e] sm:$0xff]
    %v259 = vld [vmem:[%s0 + $0x36] sm:$0xff]
    %v260 = vld [vmem:[%s0 + $0x3e] sm:$0xff]
    %v261 = vld [vmem:[%s0 + $0x46] sm:$0xff]
    %v262 = vld [vmem:[%s0 + $0x4e] sm:$0xff]
    %v263 = vld [vmem:[%s0 + $0x56] sm:$0xff]
    %v264 = vld [vmem:[%s0 + $0x5e] sm:$0xff]
    %v265 = vld [vmem:[%s0 + $0x66] sm:$0xff]
    %v266 = vld [vmem:[%s0 + $0x6e] sm:$0xff]
    %v267 = vld [vmem:[%s0 + $0x76] sm:$0xff]
    %v268 = vld [vmem:[%s0 + $0x7e] sm:$0xff]
    %v269 = vld [vmem:[%s0 + $0x86] sm:$0xff]
    %v270 = vld [vmem:[%s0 + $0x8e] sm:$0xff]
    %v271 = vld [vmem:[%s0 + $0x96] sm:$0xff]
    %v272 = vld [vmem:[%s0 + $0x9e] sm:$0xff]
    %v273 = vld [vmem:[%s0 + $0xa6] sm:$0xff]
    %v274 = vld [vmem:[%s0 + $0xae] sm:$0xff]
    %v275 = vld [vmem:[%s0 + $0xb6] sm:$0xff]
    %v276 = vld [vmem:[%s0 + $0xbe] sm:$0xff]
    %v277 = vld [vmem:[%s0 + $0xc6] sm:$0xff]
    %v278 = vld [vmem:[%s0 + $0xce] sm:$0xff]
    %v279 = vld [vmem:[%s0 + $0xd6] sm:$0xff]
    %v280 = vld [vmem:[%s0 + $0xde] sm:$0xff]
    %v281 = vld [vmem:[%s0 + $0xe6] sm:$0xff]
    %v282 = vld [vmem:[%s0 + $0xee] sm:$0xff]
    %v283 = vld [vmem:[%s0 + $0xf6] sm:$0xff]
    %v284 = vld [vmem:[%s0 + $0xfe] sm:$0xff]
    %v285 = vld [vmem:[%s0 + $0x106] sm:$0xff]
    %v286 = vld [vmem:[%s0 + $0x10e] sm:$0xff]
    %v287 = vld [vmem:[%s0 + $0x116] sm:$0xff]
    %v288 = vld [vmem:[%s0 + $0x11e] sm:$0xff]
    %v289 = vld [vmem:[%s0 + $0x126] sm:$0xff]
    %v290 = vld [vmem:[%s0 + $0x12e] sm:$0xff]
    %v291 = vld [vmem:[%s0 + $0x136] sm:$0xff]
    %v292 = vld [vmem:[%s0 + $0x13e] sm:$0x3f]
    %v293 = vld [vmem:[%s1] sm:$0xff]
    %v294 = vld [vmem:[%s1 + $0x8] sm:$0xff]
    %v295 = vld [vmem:[%s1 + $0x10] sm:$0xff]
    %v296 = vld [vmem:[%s1 + $0x18] sm:$0xff]
    %v297 = vld [vmem:[%s1 + $0x20] sm:$0xff]
    %v298 = vld [vmem:[%s1 + $0x28] sm:$0xff]
    %v299 = vld [vmem:[%s1 + $0x30] sm:$0xff]
    %v300 = vld [vmem:[%s1 + $0x38] sm:$0xff]
    %v301 = vld [vmem:[%s1 + $0x40] sm:$0xff]
    %v302 = vld [vmem:[%s1 + $0x48] sm:$0xff]
    %v303 = vld [vmem:[%s1 + $0x50] sm:$0xff]
    %v304 = vld [vmem:[%s1 + $0x58] sm:$0xff]
    %v305 = vld [vmem:[%s1 + $0x60] sm:$0xff]
    %v306 = vld [vmem:[%s1 + $0x68] sm:$0xff]
    %v307 = vld [vmem:[%s1 + $0x70] sm:$0xff]
    %v308 = vld [vmem:[%s1 + $0x78] sm:$0xff]
    %v309 = vld [vmem:[%s1 + $0x80] sm:$0xff]
    %v310 = vld [vmem:[%s1 + $0x88] sm:$0xff]
    %v311 = vld [vmem:[%s1 + $0x90] sm:$0xff]
    %v312 = vld [vmem:[%s1 + $0x98] sm:$0xff]
    %v313 = vld [vmem:[%s1 + $0xa0] sm:$0xff]
    %v314 = vld [vmem:[%s1 + $0xa8] sm:$0xff]
    %v315 = vld [vmem:[%s1 + $0xb0] sm:$0xff]
    %v316 = vld [vmem:[%s1 + $0xb8] sm:$0xff]
    %v317 = vld [vmem:[%s1 + $0xc0] sm:$0xff]
    %v318 = vld [vmem:[%s1 + $0xc8] sm:$0xff]
    %v319 = vld [vmem:[%s1 + $0xd0] sm:$0xff]
    %v320 = vld [vmem:[%s1 + $0xd8] sm:$0xff]
    %v321 = vld [vmem:[%s1 + $0xe0] sm:$0xff]
    %v322 = vld [vmem:[%s1 + $0xe8] sm:$0xff]
    %v323 = vld [vmem:[%s1 + $0xf0] sm:$0xff]
    %v324 = vld [vmem:[%s1 + $0xf8] sm:$0xff]
    %v325 = vld [vmem:[%s1 + $0x100] sm:$0xff]
    %v326 = vld [vmem:[%s1 + $0x108] sm:$0xff]
    %v327 = vld [vmem:[%s1 + $0x110] sm:$0xff]
    %v328 = vld [vmem:[%s1 + $0x118] sm:$0xff]
    %v329 = vld [vmem:[%s1 + $0x120] sm:$0xff]
    %v330 = vld [vmem:[%s1 + $0x128] sm:$0xff]
    %v331 = vld [vmem:[%s1 + $0x130] sm:$0xff]
    %v332 = vld [vmem:[%s1 + $0x138] sm:$0xff]
    %v333 = vld [vmem:[%s1 + $0x140] sm:$0xff]
    %v334 = vld [vmem:[%s1 + $0x148] sm:$0xff]
    %v335 = vld [vmem:[%s1 + $0x150] sm:$0xff]
    %v336 = vld [vmem:[%s1 + $0x158] sm:$0xff]
    %v337 = vld [vmem:[%s1 + $0x160] sm:$0xff]
    %v338 = vld [vmem:[%s1 + $0x168] sm:$0xff]
    %v339 = vld [vmem:[%s1 + $0x170] sm:$0xff]
    %v340 = vld [vmem:[%s1 + $0x178] sm:$0xff]
    %v341 = vld [vmem:[%s1 + $0x180] sm:$0xff]
    %v342 = vld [vmem:[%s1 + $0x188] sm:$0xff]
    %v343 = vld [vmem:[%s1 + $0x190] sm:$0xff]
    %v344 = vld [vmem:[%s1 + $0x198] sm:$0xff]
    %v345 = vld [vmem:[%s1 + $0x1a0] sm:$0xff]
    %v346 = vld [vmem:[%s1 + $0x1a8] sm:$0xff]
    %v347 = vld [vmem:[%s1 + $0x1b0] sm:$0xff]
    %v348 = vld [vmem:[%s1 + $0x1b8] sm:$0xff]
    %v349 = vld [vmem:[%s1 + $0x1c0] sm:$0xff]
    %v350 = vld [vmem:[%s1 + $0x1c8] sm:$0xff]
    %v351 = vld [vmem:[%s1 + $0x1d0] sm:$0xff]
    %v352 = vld [vmem:[%s1 + $0x1d8] sm:$0xff]
    %v353 = vld [vmem:[%s1 + $0x1e0] sm:$0xff]
    %v354 = vld [vmem:[%s1 + $0x1e8] sm:$0xff]
    %v355 = vld [vmem:[%s1 + $0x1f0] sm:$0xff]
    %v356 = vld [vmem:[%s1 + $0x1f8] sm:$0xff]
    %v357 = vld [vmem:[%s1 + $0x200] sm:$0xff]
    %v358 = vld [vmem:[%s1 + $0x208] sm:$0xff]
    %v359 = vld [vmem:[%s1 + $0x210] sm:$0xff]
    %v360 = vld [vmem:[%s1 + $0x218] sm:$0xff]
    %v361 = vld [vmem:[%s1 + $0x220] sm:$0xff]
    %v362 = vld [vmem:[%s1 + $0x228] sm:$0xff]
    %v363 = vld [vmem:[%s1 + $0x230] sm:$0xff]
    %v364 = vld [vmem:[%s1 + $0x238] sm:$0xff]
    %v365 = vld [vmem:[%s1 + $0x240] sm:$0xff]
    %v366 = vld [vmem:[%s1 + $0x248] sm:$0xff]
    %v367 = vld [vmem:[%s1 + $0x250] sm:$0xff]
    %v368 = vld [vmem:[%s1 + $0x258] sm:$0xff]
    %v369 = vld [vmem:[%s1 + $0x260] sm:$0xff]
    %v370 = vld [vmem:[%s1 + $0x268] sm:$0xff]
    %v371 = vld [vmem:[%s1 + $0x270] sm:$0xff]
    %v372 = vld [vmem:[%s1 + $0x278] sm:$0xff]
    %v373 = vld [vmem:[%s1 + $0x280] sm:$0xff]
    %v374 = vld [vmem:[%s1 + $0x288] sm:$0xff]
    %v375 = vld [vmem:[%s1 + $0x290] sm:$0xff]
    %v376 = vld [vmem:[%s1 + $0x298] sm:$0xff]
    %v377 = vld [vmem:[%s1 + $0x2a0] sm:$0xff]
    %v378 = vld [vmem:[%s1 + $0x2a8] sm:$0xff]
    %v379 = vld [vmem:[%s1 + $0x2b0] sm:$0xff]
    %v380 = vld [vmem:[%s1 + $0x2b8] sm:$0xff]
    %v381 = vld [vmem:[%s1 + $0x2c0] sm:$0xff]
    %v382 = vld [vmem:[%s1 + $0x2c8] sm:$0xff]
    %v383 = vld [vmem:[%s1 + $0x2d0] sm:$0xff]
    %v384 = vld [vmem:[%s1 + $0x2d8] sm:$0xff]
    %v385 = vld [vmem:[%s1 + $0x2e0] sm:$0xff]
    %v386 = vld [vmem:[%s1 + $0x2e8] sm:$0xff]
    %v387 = vld [vmem:[%s1 + $0x2f0] sm:$0xff]
    %v388 = vld [vmem:[%s1 + $0x2f8] sm:$0xff]
    %v389 = vld [vmem:[%s1 + $0x300] sm:$0xff]
    %v390 = vld [vmem:[%s1 + $0x308] sm:$0xff]
    %v391 = vld [vmem:[%s1 + $0x310] sm:$0xff]
    %v392 = vld [vmem:[%s1 + $0x318] sm:$0xff]
    %v393 = vld [vmem:[%s1 + $0x320] sm:$0xff]
    %v394 = vld [vmem:[%s1 + $0x328] sm:$0xff]
    %v395 = vld [vmem:[%s1 + $0x330] sm:$0xff]
    %v396 = vld [vmem:[%s1 + $0x338] sm:$0xff]
    %v397 = vld [vmem:[%s1 + $0x340] sm:$0xff]
    %v398 = vld [vmem:[%s1 + $0x348] sm:$0xff]
    %v399 = vld [vmem:[%s1 + $0x350] sm:$0xff]
    %v400 = vld [vmem:[%s1 + $0x358] sm:$0xff]
    %v401 = vld [vmem:[%s1 + $0x360] sm:$0xff]
    %v402 = vld [vmem:[%s1 + $0x368] sm:$0xff]
    %v403 = vld [vmem:[%s1 + $0x370] sm:$0xff]
    %v404 = vld [vmem:[%s1 + $0x378] sm:$0xff]
    %v405 = vld [vmem:[%s1 + $0x380] sm:$0xff]
    %v406 = vld [vmem:[%s1 + $0x388] sm:$0xff]
    %v407 = vld [vmem:[%s1 + $0x390] sm:$0xff]
    %v408 = vld [vmem:[%s1 + $0x398] sm:$0xff]
    %v409 = vld [vmem:[%s1 + $0x3a0] sm:$0xff]
    %v410 = vld [vmem:[%s1 + $0x3a8] sm:$0xff]
    %v411 = vld [vmem:[%s1 + $0x3b0] sm:$0xff]
    %v412 = vld [vmem:[%s1 + $0x3b8] sm:$0xff]
    %v413 = vld [vmem:[%s1 + $0x3c0] sm:$0xff]
    %v414 = vld [vmem:[%s1 + $0x3c8] sm:$0xff]
    %v415 = vld [vmem:[%s1 + $0x3d0] sm:$0xff]
    %v416 = vld [vmem:[%s1 + $0x3d8] sm:$0xff]
    %v417 = vld [vmem:[%s1 + $0x3e0] sm:$0xff]
    %v418 = vld [vmem:[%s1 + $0x3e8] sm:$0xff]
    %v419 = vld [vmem:[%s1 + $0x3f0] sm:$0xff]
    %v420 = vld [vmem:[%s1 + $0x3f8] sm:$0xff]
    %v421 = vld [vmem:[%s1 + $0x400] sm:$0xff]
    %v422 = vld [vmem:[%s1 + $0x408] sm:$0xff]
    %v423 = vld [vmem:[%s1 + $0x410] sm:$0xff]
    %v424 = vld [vmem:[%s1 + $0x418] sm:$0xff]
    %v425 = vld [vmem:[%s1 + $0x420] sm:$0xff]
    %v426 = vld [vmem:[%s1 + $0x428] sm:$0xff]
    %v427 = vld [vmem:[%s1 + $0x430] sm:$0xff]
    %v428 = vld [vmem:[%s1 + $0x438] sm:$0xff]
    %v429 = vld [vmem:[%s1 + $0x440] sm:$0xff]
    %v430 = vld [vmem:[%s1 + $0x448] sm:$0xff]
    %v431 = vld [vmem:[%s1 + $0x450] sm:$0xff]
    %v432 = vld [vmem:[%s1 + $0x458] sm:$0xff]
    %v433 = vld [vmem:[%s1 + $0x460] sm:$0xff]
    %v434 = vld [vmem:[%s1 + $0x468] sm:$0xff]
    %v435 = vld [vmem:[%s1 + $0x470] sm:$0xff]
    %v436 = vld [vmem:[%s1 + $0x478] sm:$0xff]
    %437 = vmatpush.msra.mxu0 %v308
    %438 = vmatpush.msra.mxu0 %v307
    %439 = vmatpush.msra.mxu0 %v306
    %440 = vmatpush.msra.mxu0 %v305
    %441 = vmatpush.msra.mxu0 %v304
    %442 = vmatpush.msra.mxu0 %v303
    %443 = vmatpush.msra.mxu0 %v302
    %444 = vmatpush.msra.mxu0 %v301
    %445 = vmatpush.msra.mxu0 %v300
    %446 = vmatpush.msra.mxu0 %v299
    %447 = vmatpush.msra.mxu0 %v298
    %448 = vmatpush.msra.mxu0 %v297
    %449 = vmatpush.msra.mxu0 %v296
    %450 = vmatpush.msra.mxu0 %v295
    %451 = vmatpush.msra.mxu0 %v294
    %452 = vmatpush.msra.mxu0 %v293
    %453 = vmatmul.f32.gmra.mxu0 %v35
    %v454 = vpop.f32.mrf.mxu0
    %v455 = vadd.f32 0.0, %v454
    %456 = vmatmul.f32.gmra.mxu0 %v36
    %v457 = vpop.f32.mrf.mxu0
    %v458 = vadd.f32 0.0, %v457
    %459 = vmatmul.f32.gmra.mxu0 %v37
    %v460 = vpop.f32.mrf.mxu0
    %v461 = vadd.f32 0.0, %v460
    %462 = vmatmul.f32.gmra.mxu0 %v38
    %v463 = vpop.f32.mrf.mxu0
    %v464 = vadd.f32 0.0, %v463
    %465 = vmatmul.f32.gmra.mxu0 %v39
    %v466 = vpop.f32.mrf.mxu0
    %v467 = vadd.f32 0.0, %v466
    %468 = vmatmul.f32.gmra.mxu0 %v40
    %v469 = vpop.f32.mrf.mxu0
    %v470 = vadd.f32 0.0, %v469
    %471 = vmatmul.f32.gmra.mxu0 %v41
    %v472 = vpop.f32.mrf.mxu0
    %v473 = vadd.f32 0.0, %v472
    %474 = vmatmul.f32.gmra.mxu0 %v42
    %v475 = vpop.f32.mrf.mxu0
    %v476 = vadd.f32 0.0, %v475
    %477 = vmatmul.f32.gmra.mxu0 %v43
    %v478 = vpop.f32.mrf.mxu0
    %v479 = vadd.f32 0.0, %v478
    %480 = vmatmul.f32.gmra.mxu0 %v44
    %v481 = vpop.f32.mrf.mxu0
    %v482 = vadd.f32 0.0, %v481
    %483 = vmatmul.f32.gmra.mxu0 %v45
    %v484 = vpop.f32.mrf.mxu0
    %v485 = vadd.f32 0.0, %v484
    %486 = vmatmul.f32.gmra.mxu0 %v46
    %v487 = vpop.f32.mrf.mxu0
    %v488 = vadd.f32 0.0, %v487
    %489 = vmatmul.f32.gmra.mxu0 %v47
    %v490 = vpop.f32.mrf.mxu0
    %v491 = vadd.f32 0.0, %v490
    %492 = vmatmul.f32.gmra.mxu0 %v48
    %v493 = vpop.f32.mrf.mxu0
    %v494 = vadd.f32 0.0, %v493
    %495 = vmatmul.f32.gmra.mxu0 %v49
    %v496 = vpop.f32.mrf.mxu0
    %v497 = vadd.f32 0.0, %v496
    %498 = vmatmul.f32.gmra.mxu0 %v50
    %v499 = vpop.f32.mrf.mxu0
    %v500 = vadd.f32 0.0, %v499
    %501 = vmatmul.f32.gmra.mxu0 %v51
    %v502 = vpop.f32.mrf.mxu0
    %v503 = vadd.f32 0.0, %v502
    %504 = vmatmul.f32.gmra.mxu0 %v52
    %v505 = vpop.f32.mrf.mxu0
    %v506 = vadd.f32 0.0, %v505
    %507 = vmatmul.f32.gmra.mxu0 %v53
    %v508 = vpop.f32.mrf.mxu0
    %v509 = vadd.f32 0.0, %v508
    %510 = vmatmul.f32.gmra.mxu0 %v54
    %v511 = vpop.f32.mrf.mxu0
    %v512 = vadd.f32 0.0, %v511
    %513 = vmatmul.f32.gmra.mxu0 %v55
    %v514 = vpop.f32.mrf.mxu0
    %v515 = vadd.f32 0.0, %v514
    %516 = vmatmul.f32.gmra.mxu0 %v56
    %v517 = vpop.f32.mrf.mxu0
    %v518 = vadd.f32 0.0, %v517
    %519 = vmatmul.f32.gmra.mxu0 %v57
    %v520 = vpop.f32.mrf.mxu0
    %v521 = vadd.f32 0.0, %v520
    %522 = vmatmul.f32.gmra.mxu0 %v58
    %v523 = vpop.f32.mrf.mxu0
    %v524 = vadd.f32 0.0, %v523
    %525 = vmatmul.f32.gmra.mxu0 %v59
    %v526 = vpop.f32.mrf.mxu0
    %v527 = vadd.f32 0.0, %v526
    %528 = vmatmul.f32.gmra.mxu0 %v60
    %v529 = vpop.f32.mrf.mxu0
    %v530 = vadd.f32 0.0, %v529
    %531 = vmatmul.f32.gmra.mxu0 %v61
    %v532 = vpop.f32.mrf.mxu0
    %v533 = vadd.f32 0.0, %v532
    %534 = vmatmul.f32.gmra.mxu0 %v62
    %v535 = vpop.f32.mrf.mxu0
    %v536 = vadd.f32 0.0, %v535
    %537 = vmatmul.f32.gmra.mxu0 %v63
    %v538 = vpop.f32.mrf.mxu0
    %v539 = vadd.f32 0.0, %v538
    %540 = vmatmul.f32.gmra.mxu0 %v64
    %v541 = vpop.f32.mrf.mxu0
    %v542 = vadd.f32 0.0, %v541
    %543 = vmatmul.f32.gmra.mxu0 %v65
    %v544 = vpop.f32.mrf.mxu0
    %v545 = vadd.f32 0.0, %v544
    %546 = vmatmul.f32.gmra.mxu0 %v66
    %v547 = vpop.f32.mrf.mxu0
    %v548 = vadd.f32 0.0, %v547
    %549 = vmatmul.f32.gmra.mxu0 %v67
    %v550 = vpop.f32.mrf.mxu0
    %v551 = vadd.f32 0.0, %v550
    %552 = vmatmul.f32.gmra.mxu0 %v68
    %v553 = vpop.f32.mrf.mxu0
    %v554 = vadd.f32 0.0, %v553
    %555 = vmatmul.f32.gmra.mxu0 %v69
    %v556 = vpop.f32.mrf.mxu0
    %v557 = vadd.f32 0.0, %v556
    %558 = vmatmul.f32.gmra.mxu0 %v70
    %v559 = vpop.f32.mrf.mxu0
    %v560 = vadd.f32 0.0, %v559
    %561 = vdwg.mxu0
    %562 = vmatpush.msra.mxu0 %v324
    %563 = vmatpush.msra.mxu0 %v323
    %564 = vmatpush.msra.mxu0 %v322
    %565 = vmatpush.msra.mxu0 %v321
    %566 = vmatpush.msra.mxu0 %v320
    %567 = vmatpush.msra.mxu0 %v319
    %568 = vmatpush.msra.mxu0 %v318
    %569 = vmatpush.msra.mxu0 %v317
    %570 = vmatpush.msra.mxu0 %v316
    %571 = vmatpush.msra.mxu0 %v315
    %572 = vmatpush.msra.mxu0 %v314
    %573 = vmatpush.msra.mxu0 %v313
    %574 = vmatpush.msra.mxu0 %v312
    %575 = vmatpush.msra.mxu0 %v311
    %576 = vmatpush.msra.mxu0 %v310
    %577 = vmatpush.msra.mxu0 %v309
    %578 = vmatmul.f32.gmra.mxu0 %v71
    %v579 = vpop.f32.mrf.mxu0
    %v580 = vadd.f32 %v455, %v579
    %581 = vmatmul.f32.gmra.mxu0 %v72
    %v582 = vpop.f32.mrf.mxu0
    %v583 = vadd.f32 %v458, %v582
    %584 = vmatmul.f32.gmra.mxu0 %v73
    %v585 = vpop.f32.mrf.mxu0
    %v586 = vadd.f32 %v461, %v585
    %587 = vmatmul.f32.gmra.mxu0 %v74
    %v588 = vpop.f32.mrf.mxu0
    %v589 = vadd.f32 %v464, %v588
    %590 = vmatmul.f32.gmra.mxu0 %v75
    %v591 = vpop.f32.mrf.mxu0
    %v592 = vadd.f32 %v467, %v591
    %593 = vmatmul.f32.gmra.mxu0 %v76
    %v594 = vpop.f32.mrf.mxu0
    %v595 = vadd.f32 %v470, %v594
    %596 = vmatmul.f32.gmra.mxu0 %v77
    %v597 = vpop.f32.mrf.mxu0
    %v598 = vadd.f32 %v473, %v597
    %599 = vmatmul.f32.gmra.mxu0 %v78
    %v600 = vpop.f32.mrf.mxu0
    %v601 = vadd.f32 %v476, %v600
    %602 = vmatmul.f32.gmra.mxu0 %v79
    %v603 = vpop.f32.mrf.mxu0
    %v604 = vadd.f32 %v479, %v603
    %605 = vmatmul.f32.gmra.mxu0 %v80
    %v606 = vpop.f32.mrf.mxu0
    %v607 = vadd.f32 %v482, %v606
    %608 = vmatmul.f32.gmra.mxu0 %v81
    %v609 = vpop.f32.mrf.mxu0
    %v610 = vadd.f32 %v485, %v609
    %611 = vmatmul.f32.gmra.mxu0 %v82
    %v612 = vpop.f32.mrf.mxu0
    %v613 = vadd.f32 %v488, %v612
    %614 = vmatmul.f32.gmra.mxu0 %v83
    %v615 = vpop.f32.mrf.mxu0
    %v616 = vadd.f32 %v491, %v615
    %617 = vmatmul.f32.gmra.mxu0 %v84
    %v618 = vpop.f32.mrf.mxu0
    %v619 = vadd.f32 %v494, %v618
    %620 = vmatmul.f32.gmra.mxu0 %v85
    %v621 = vpop.f32.mrf.mxu0
    %v622 = vadd.f32 %v497, %v621
    %623 = vmatmul.f32.gmra.mxu0 %v86
    %v624 = vpop.f32.mrf.mxu0
    %v625 = vadd.f32 %v500, %v624
    %626 = vmatmul.f32.gmra.mxu0 %v87
    %v627 = vpop.f32.mrf.mxu0
    %v628 = vadd.f32 %v503, %v627
    %629 = vmatmul.f32.gmra.mxu0 %v88
    %v630 = vpop.f32.mrf.mxu0
    %v631 = vadd.f32 %v506, %v630
    %632 = vmatmul.f32.gmra.mxu0 %v89
    %v633 = vpop.f32.mrf.mxu0
    %v634 = vadd.f32 %v509, %v633
    %635 = vmatmul.f32.gmra.mxu0 %v90
    %v636 = vpop.f32.mrf.mxu0
    %v637 = vadd.f32 %v512, %v636
    %638 = vmatmul.f32.gmra.mxu0 %v91
    %v639 = vpop.f32.mrf.mxu0
    %v640 = vadd.f32 %v515, %v639
    %641 = vmatmul.f32.gmra.mxu0 %v92
    %v642 = vpop.f32.mrf.mxu0
    %v643 = vadd.f32 %v518, %v642
    %644 = vmatmul.f32.gmra.mxu0 %v93
    %v645 = vpop.f32.mrf.mxu0
    %v646 = vadd.f32 %v521, %v645
    %647 = vmatmul.f32.gmra.mxu0 %v94
    %v648 = vpop.f32.mrf.mxu0
    %v649 = vadd.f32 %v524, %v648
    %650 = vmatmul.f32.gmra.mxu0 %v95
    %v651 = vpop.f32.mrf.mxu0
    %v652 = vadd.f32 %v527, %v651
    %653 = vmatmul.f32.gmra.mxu0 %v96
    %v654 = vpop.f32.mrf.mxu0
    %v655 = vadd.f32 %v530, %v654
    %656 = vmatmul.f32.gmra.mxu0 %v97
    %v657 = vpop.f32.mrf.mxu0
    %v658 = vadd.f32 %v533, %v657
    %659 = vmatmul.f32.gmra.mxu0 %v98
    %v660 = vpop.f32.mrf.mxu0
    %v661 = vadd.f32 %v536, %v660
    %662 = vmatmul.f32.gmra.mxu0 %v99
    %v663 = vpop.f32.mrf.mxu0
    %v664 = vadd.f32 %v539, %v663
    %665 = vmatmul.f32.gmra.mxu0 %v100
    %v666 = vpop.f32.mrf.mxu0
    %v667 = vadd.f32 %v542, %v666
    %668 = vmatmul.f32.gmra.mxu0 %v101
    %v669 = vpop.f32.mrf.mxu0
    %v670 = vadd.f32 %v545, %v669
    %671 = vmatmul.f32.gmra.mxu0 %v102
    %v672 = vpop.f32.mrf.mxu0
    %v673 = vadd.f32 %v548, %v672
    %674 = vmatmul.f32.gmra.mxu0 %v103
    %v675 = vpop.f32.mrf.mxu0
    %v676 = vadd.f32 %v551, %v675
    %677 = vmatmul.f32.gmra.mxu0 %v104
    %v678 = vpop.f32.mrf.mxu0
    %v679 = vadd.f32 %v554, %v678
    %680 = vmatmul.f32.gmra.mxu0 %v105
    %v681 = vpop.f32.mrf.mxu0
    %v682 = vadd.f32 %v557, %v681
    %683 = vmatmul.f32.gmra.mxu0 %v106
    %v684 = vpop.f32.mrf.mxu0
    %v685 = vadd.f32 %v560, %v684
    %686 = vdwg.mxu0
    %687 = vmatpush.msra.mxu0 %v340
    %688 = vmatpush.msra.mxu0 %v339
    %689 = vmatpush.msra.mxu0 %v338
    %690 = vmatpush.msra.mxu0 %v337
    %691 = vmatpush.msra.mxu0 %v336
    %692 = vmatpush.msra.mxu0 %v335
    %693 = vmatpush.msra.mxu0 %v334
    %694 = vmatpush.msra.mxu0 %v333
    %695 = vmatpush.msra.mxu0 %v332
    %696 = vmatpush.msra.mxu0 %v331
    %697 = vmatpush.msra.mxu0 %v330
    %698 = vmatpush.msra.mxu0 %v329
    %699 = vmatpush.msra.mxu0 %v328
    %700 = vmatpush.msra.mxu0 %v327
    %701 = vmatpush.msra.mxu0 %v326
    %702 = vmatpush.msra.mxu0 %v325
    %703 = vmatmul.f32.gmra.mxu0 %v107
    %v704 = vpop.f32.mrf.mxu0
    %v705 = vadd.f32 %v580, %v704
    %706 = vmatmul.f32.gmra.mxu0 %v108
    %v707 = vpop.f32.mrf.mxu0
    %v708 = vadd.f32 %v583, %v707
    %709 = vmatmul.f32.gmra.mxu0 %v109
    %v710 = vpop.f32.mrf.mxu0
    %v711 = vadd.f32 %v586, %v710
    %712 = vmatmul.f32.gmra.mxu0 %v110
    %v713 = vpop.f32.mrf.mxu0
    %v714 = vadd.f32 %v589, %v713
    %715 = vmatmul.f32.gmra.mxu0 %v111
    %v716 = vpop.f32.mrf.mxu0
    %v717 = vadd.f32 %v592, %v716
    %718 = vmatmul.f32.gmra.mxu0 %v112
    %v719 = vpop.f32.mrf.mxu0
    %v720 = vadd.f32 %v595, %v719
    %721 = vmatmul.f32.gmra.mxu0 %v113
    %v722 = vpop.f32.mrf.mxu0
    %v723 = vadd.f32 %v598, %v722
    %724 = vmatmul.f32.gmra.mxu0 %v114
    %v725 = vpop.f32.mrf.mxu0
    %v726 = vadd.f32 %v601, %v725
    %727 = vmatmul.f32.gmra.mxu0 %v115
    %v728 = vpop.f32.mrf.mxu0
    %v729 = vadd.f32 %v604, %v728
    %730 = vmatmul.f32.gmra.mxu0 %v116
    %v731 = vpop.f32.mrf.mxu0
    %v732 = vadd.f32 %v607, %v731
    %733 = vmatmul.f32.gmra.mxu0 %v117
    %v734 = vpop.f32.mrf.mxu0
    %v735 = vadd.f32 %v610, %v734
    %736 = vmatmul.f32.gmra.mxu0 %v118
    %v737 = vpop.f32.mrf.mxu0
    %v738 = vadd.f32 %v613, %v737
    %739 = vmatmul.f32.gmra.mxu0 %v119
    %v740 = vpop.f32.mrf.mxu0
    %v741 = vadd.f32 %v616, %v740
    %742 = vmatmul.f32.gmra.mxu0 %v120
    %v743 = vpop.f32.mrf.mxu0
    %v744 = vadd.f32 %v619, %v743
    %745 = vmatmul.f32.gmra.mxu0 %v121
    %v746 = vpop.f32.mrf.mxu0
    %v747 = vadd.f32 %v622, %v746
    %748 = vmatmul.f32.gmra.mxu0 %v122
    %v749 = vpop.f32.mrf.mxu0
    %v750 = vadd.f32 %v625, %v749
    %751 = vmatmul.f32.gmra.mxu0 %v123
    %v752 = vpop.f32.mrf.mxu0
    %v753 = vadd.f32 %v628, %v752
    %754 = vmatmul.f32.gmra.mxu0 %v124
    %v755 = vpop.f32.mrf.mxu0
    %v756 = vadd.f32 %v631, %v755
    %757 = vmatmul.f32.gmra.mxu0 %v125
    %v758 = vpop.f32.mrf.mxu0
    %v759 = vadd.f32 %v634, %v758
    %760 = vmatmul.f32.gmra.mxu0 %v126
    %v761 = vpop.f32.mrf.mxu0
    %v762 = vadd.f32 %v637, %v761
    %763 = vmatmul.f32.gmra.mxu0 %v127
    %v764 = vpop.f32.mrf.mxu0
    %v765 = vadd.f32 %v640, %v764
    %766 = vmatmul.f32.gmra.mxu0 %v128
    %v767 = vpop.f32.mrf.mxu0
    %v768 = vadd.f32 %v643, %v767
    %769 = vmatmul.f32.gmra.mxu0 %v129
    %v770 = vpop.f32.mrf.mxu0
    %v771 = vadd.f32 %v646, %v770
    %772 = vmatmul.f32.gmra.mxu0 %v130
    %v773 = vpop.f32.mrf.mxu0
    %v774 = vadd.f32 %v649, %v773
    %775 = vmatmul.f32.gmra.mxu0 %v131
    %v776 = vpop.f32.mrf.mxu0
    %v777 = vadd.f32 %v652, %v776
    %778 = vmatmul.f32.gmra.mxu0 %v132
    %v779 = vpop.f32.mrf.mxu0
    %v780 = vadd.f32 %v655, %v779
    %781 = vmatmul.f32.gmra.mxu0 %v133
    %v782 = vpop.f32.mrf.mxu0
    %v783 = vadd.f32 %v658, %v782
    %784 = vmatmul.f32.gmra.mxu0 %v134
    %v785 = vpop.f32.mrf.mxu0
    %v786 = vadd.f32 %v661, %v785
    %787 = vmatmul.f32.gmra.mxu0 %v135
    %v788 = vpop.f32.mrf.mxu0
    %v789 = vadd.f32 %v664, %v788
    %790 = vmatmul.f32.gmra.mxu0 %v136
    %v791 = vpop.f32.mrf.mxu0
    %v792 = vadd.f32 %v667, %v791
    %793 = vmatmul.f32.gmra.mxu0 %v137
    %v794 = vpop.f32.mrf.mxu0
    %v795 = vadd.f32 %v670, %v794
    %796 = vmatmul.f32.gmra.mxu0 %v138
    %v797 = vpop.f32.mrf.mxu0
    %v798 = vadd.f32 %v673, %v797
    %799 = vmatmul.f32.gmra.mxu0 %v139
    %v800 = vpop.f32.mrf.mxu0
    %v801 = vadd.f32 %v676, %v800
    %802 = vmatmul.f32.gmra.mxu0 %v140
    %v803 = vpop.f32.mrf.mxu0
    %v804 = vadd.f32 %v679, %v803
    %805 = vmatmul.f32.gmra.mxu0 %v141
    %v806 = vpop.f32.mrf.mxu0
    %v807 = vadd.f32 %v682, %v806
    %808 = vmatmul.f32.gmra.mxu0 %v142
    %v809 = vpop.f32.mrf.mxu0
    %v810 = vadd.f32 %v685, %v809
    %811 = vdwg.mxu0
    %812 = vmatpush.msra.mxu0 %v356
    %813 = vmatpush.msra.mxu0 %v355
    %814 = vmatpush.msra.mxu0 %v354
    %815 = vmatpush.msra.mxu0 %v353
    %816 = vmatpush.msra.mxu0 %v352
    %817 = vmatpush.msra.mxu0 %v351
    %818 = vmatpush.msra.mxu0 %v350
    %819 = vmatpush.msra.mxu0 %v349
    %820 = vmatpush.msra.mxu0 %v348
    %821 = vmatpush.msra.mxu0 %v347
    %822 = vmatpush.msra.mxu0 %v346
    %823 = vmatpush.msra.mxu0 %v345
    %824 = vmatpush.msra.mxu0 %v344
    %825 = vmatpush.msra.mxu0 %v343
    %826 = vmatpush.msra.mxu0 %v342
    %827 = vmatpush.msra.mxu0 %v341
    %828 = vmatmul.f32.gmra.mxu0 %v109
    %v829 = vpop.f32.mrf.mxu0
    %v830 = vadd.f32 %v705, %v829
    %831 = vmatmul.f32.gmra.mxu0 %v110
    %v832 = vpop.f32.mrf.mxu0
    %v833 = vadd.f32 %v708, %v832
    %834 = vmatmul.f32.gmra.mxu0 %v111
    %v835 = vpop.f32.mrf.mxu0
    %v836 = vadd.f32 %v711, %v835
    %837 = vmatmul.f32.gmra.mxu0 %v112
    %v838 = vpop.f32.mrf.mxu0
    %v839 = vadd.f32 %v714, %v838
    %840 = vmatmul.f32.gmra.mxu0 %v113
    %v841 = vpop.f32.mrf.mxu0
    %v842 = vadd.f32 %v717, %v841
    %843 = vmatmul.f32.gmra.mxu0 %v114
    %v844 = vpop.f32.mrf.mxu0
    %v845 = vadd.f32 %v720, %v844
    %846 = vmatmul.f32.gmra.mxu0 %v115
    %v847 = vpop.f32.mrf.mxu0
    %v848 = vadd.f32 %v723, %v847
    %849 = vmatmul.f32.gmra.mxu0 %v116
    %v850 = vpop.f32.mrf.mxu0
    %v851 = vadd.f32 %v726, %v850
    %852 = vmatmul.f32.gmra.mxu0 %v117
    %v853 = vpop.f32.mrf.mxu0
    %v854 = vadd.f32 %v729, %v853
    %855 = vmatmul.f32.gmra.mxu0 %v118
    %v856 = vpop.f32.mrf.mxu0
    %v857 = vadd.f32 %v732, %v856
    %858 = vmatmul.f32.gmra.mxu0 %v119
    %v859 = vpop.f32.mrf.mxu0
    %v860 = vadd.f32 %v735, %v859
    %861 = vmatmul.f32.gmra.mxu0 %v120
    %v862 = vpop.f32.mrf.mxu0
    %v863 = vadd.f32 %v738, %v862
    %864 = vmatmul.f32.gmra.mxu0 %v121
    %v865 = vpop.f32.mrf.mxu0
    %v866 = vadd.f32 %v741, %v865
    %867 = vmatmul.f32.gmra.mxu0 %v122
    %v868 = vpop.f32.mrf.mxu0
    %v869 = vadd.f32 %v744, %v868
    %870 = vmatmul.f32.gmra.mxu0 %v123
    %v871 = vpop.f32.mrf.mxu0
    %v872 = vadd.f32 %v747, %v871
    %873 = vmatmul.f32.gmra.mxu0 %v124
    %v874 = vpop.f32.mrf.mxu0
    %v875 = vadd.f32 %v750, %v874
    %876 = vmatmul.f32.gmra.mxu0 %v125
    %v877 = vpop.f32.mrf.mxu0
    %v878 = vadd.f32 %v753, %v877
    %879 = vmatmul.f32.gmra.mxu0 %v126
    %v880 = vpop.f32.mrf.mxu0
    %v881 = vadd.f32 %v756, %v880
    %882 = vmatmul.f32.gmra.mxu0 %v127
    %v883 = vpop.f32.mrf.mxu0
    %v884 = vadd.f32 %v759, %v883
    %885 = vmatmul.f32.gmra.mxu0 %v128
    %v886 = vpop.f32.mrf.mxu0
    %v887 = vadd.f32 %v762, %v886
    %888 = vmatmul.f32.gmra.mxu0 %v129
    %v889 = vpop.f32.mrf.mxu0
    %v890 = vadd.f32 %v765, %v889
    %891 = vmatmul.f32.gmra.mxu0 %v130
    %v892 = vpop.f32.mrf.mxu0
    %v893 = vadd.f32 %v768, %v892
    %894 = vmatmul.f32.gmra.mxu0 %v131
    %v895 = vpop.f32.mrf.mxu0
    %v896 = vadd.f32 %v771, %v895
    %897 = vmatmul.f32.gmra.mxu0 %v132
    %v898 = vpop.f32.mrf.mxu0
    %v899 = vadd.f32 %v774, %v898
    %900 = vmatmul.f32.gmra.mxu0 %v133
    %v901 = vpop.f32.mrf.mxu0
    %v902 = vadd.f32 %v777, %v901
    %903 = vmatmul.f32.gmra.mxu0 %v134
    %v904 = vpop.f32.mrf.mxu0
    %v905 = vadd.f32 %v780, %v904
    %906 = vmatmul.f32.gmra.mxu0 %v135
    %v907 = vpop.f32.mrf.mxu0
    %v908 = vadd.f32 %v783, %v907
    %909 = vmatmul.f32.gmra.mxu0 %v136
    %v910 = vpop.f32.mrf.mxu0
    %v911 = vadd.f32 %v786, %v910
    %912 = vmatmul.f32.gmra.mxu0 %v137
    %v913 = vpop.f32.mrf.mxu0
    %v914 = vadd.f32 %v789, %v913
    %915 = vmatmul.f32.gmra.mxu0 %v138
    %v916 = vpop.f32.mrf.mxu0
    %v917 = vadd.f32 %v792, %v916
    %918 = vmatmul.f32.gmra.mxu0 %v139
    %v919 = vpop.f32.mrf.mxu0
    %v920 = vadd.f32 %v795, %v919
    %921 = vmatmul.f32.gmra.mxu0 %v140
    %v922 = vpop.f32.mrf.mxu0
    %v923 = vadd.f32 %v798, %v922
    %924 = vmatmul.f32.gmra.mxu0 %v141
    %v925 = vpop.f32.mrf.mxu0
    %v926 = vadd.f32 %v801, %v925
    %927 = vmatmul.f32.gmra.mxu0 %v143
    %v928 = vpop.f32.mrf.mxu0
    %v929 = vadd.f32 %v804, %v928
    %930 = vmatmul.f32.gmra.mxu0 %v144
    %v931 = vpop.f32.mrf.mxu0
    %v932 = vadd.f32 %v807, %v931
    %933 = vmatmul.f32.gmra.mxu0 %v145
    %v934 = vpop.f32.mrf.mxu0
    %v935 = vadd.f32 %v810, %v934
    %936 = vdwg.mxu0
    %937 = vmatpush.msra.mxu0 %v372
    %938 = vmatpush.msra.mxu0 %v371
    %939 = vmatpush.msra.mxu0 %v370
    %940 = vmatpush.msra.mxu0 %v369
    %941 = vmatpush.msra.mxu0 %v368
    %942 = vmatpush.msra.mxu0 %v367
    %943 = vmatpush.msra.mxu0 %v366
    %944 = vmatpush.msra.mxu0 %v365
    %945 = vmatpush.msra.mxu0 %v364
    %946 = vmatpush.msra.mxu0 %v363
    %947 = vmatpush.msra.mxu0 %v362
    %948 = vmatpush.msra.mxu0 %v361
    %949 = vmatpush.msra.mxu0 %v360
    %950 = vmatpush.msra.mxu0 %v359
    %951 = vmatpush.msra.mxu0 %v358
    %952 = vmatpush.msra.mxu0 %v357
    %953 = vmatmul.f32.gmra.mxu0 %v146
    %v954 = vpop.f32.mrf.mxu0
    %v955 = vadd.f32 %v830, %v954
    %956 = vmatmul.f32.gmra.mxu0 %v147
    %v957 = vpop.f32.mrf.mxu0
    %v958 = vadd.f32 %v833, %v957
    %959 = vmatmul.f32.gmra.mxu0 %v148
    %v960 = vpop.f32.mrf.mxu0
    %v961 = vadd.f32 %v836, %v960
    %962 = vmatmul.f32.gmra.mxu0 %v149
    %v963 = vpop.f32.mrf.mxu0
    %v964 = vadd.f32 %v839, %v963
    %965 = vmatmul.f32.gmra.mxu0 %v150
    %v966 = vpop.f32.mrf.mxu0
    %v967 = vadd.f32 %v842, %v966
    %968 = vmatmul.f32.gmra.mxu0 %v151
    %v969 = vpop.f32.mrf.mxu0
    %v970 = vadd.f32 %v845, %v969
    %971 = vmatmul.f32.gmra.mxu0 %v152
    %v972 = vpop.f32.mrf.mxu0
    %v973 = vadd.f32 %v848, %v972
    %974 = vmatmul.f32.gmra.mxu0 %v153
    %v975 = vpop.f32.mrf.mxu0
    %v976 = vadd.f32 %v851, %v975
    %977 = vmatmul.f32.gmra.mxu0 %v154
    %v978 = vpop.f32.mrf.mxu0
    %v979 = vadd.f32 %v854, %v978
    %980 = vmatmul.f32.gmra.mxu0 %v155
    %v981 = vpop.f32.mrf.mxu0
    %v982 = vadd.f32 %v857, %v981
    %983 = vmatmul.f32.gmra.mxu0 %v156
    %v984 = vpop.f32.mrf.mxu0
    %v985 = vadd.f32 %v860, %v984
    %986 = vmatmul.f32.gmra.mxu0 %v157
    %v987 = vpop.f32.mrf.mxu0
    %v988 = vadd.f32 %v863, %v987
    %989 = vmatmul.f32.gmra.mxu0 %v158
    %v990 = vpop.f32.mrf.mxu0
    %v991 = vadd.f32 %v866, %v990
    %992 = vmatmul.f32.gmra.mxu0 %v159
    %v993 = vpop.f32.mrf.mxu0
    %v994 = vadd.f32 %v869, %v993
    %995 = vmatmul.f32.gmra.mxu0 %v160
    %v996 = vpop.f32.mrf.mxu0
    %v997 = vadd.f32 %v872, %v996
    %998 = vmatmul.f32.gmra.mxu0 %v161
    %v999 = vpop.f32.mrf.mxu0
    %v1000 = vadd.f32 %v875, %v999
    %1001 = vmatmul.f32.gmra.mxu0 %v162
    %v1002 = vpop.f32.mrf.mxu0
    %v1003 = vadd.f32 %v878, %v1002
    %1004 = vmatmul.f32.gmra.mxu0 %v163
    %v1005 = vpop.f32.mrf.mxu0
    %v1006 = vadd.f32 %v881, %v1005
    %1007 = vmatmul.f32.gmra.mxu0 %v164
    %v1008 = vpop.f32.mrf.mxu0
    %v1009 = vadd.f32 %v884, %v1008
    %1010 = vmatmul.f32.gmra.mxu0 %v165
    %v1011 = vpop.f32.mrf.mxu0
    %v1012 = vadd.f32 %v887, %v1011
    %1013 = vmatmul.f32.gmra.mxu0 %v166
    %v1014 = vpop.f32.mrf.mxu0
    %v1015 = vadd.f32 %v890, %v1014
    %1016 = vmatmul.f32.gmra.mxu0 %v167
    %v1017 = vpop.f32.mrf.mxu0
    %v1018 = vadd.f32 %v893, %v1017
    %1019 = vmatmul.f32.gmra.mxu0 %v168
    %v1020 = vpop.f32.mrf.mxu0
    %v1021 = vadd.f32 %v896, %v1020
    %1022 = vmatmul.f32.gmra.mxu0 %v169
    %v1023 = vpop.f32.mrf.mxu0
    %v1024 = vadd.f32 %v899, %v1023
    %1025 = vmatmul.f32.gmra.mxu0 %v170
    %v1026 = vpop.f32.mrf.mxu0
    %v1027 = vadd.f32 %v902, %v1026
    %1028 = vmatmul.f32.gmra.mxu0 %v171
    %v1029 = vpop.f32.mrf.mxu0
    %v1030 = vadd.f32 %v905, %v1029
    %1031 = vmatmul.f32.gmra.mxu0 %v172
    %v1032 = vpop.f32.mrf.mxu0
    %v1033 = vadd.f32 %v908, %v1032
    %1034 = vmatmul.f32.gmra.mxu0 %v173
    %v1035 = vpop.f32.mrf.mxu0
    %v1036 = vadd.f32 %v911, %v1035
    %1037 = vmatmul.f32.gmra.mxu0 %v174
    %v1038 = vpop.f32.mrf.mxu0
    %v1039 = vadd.f32 %v914, %v1038
    %1040 = vmatmul.f32.gmra.mxu0 %v175
    %v1041 = vpop.f32.mrf.mxu0
    %v1042 = vadd.f32 %v917, %v1041
    %1043 = vmatmul.f32.gmra.mxu0 %v176
    %v1044 = vpop.f32.mrf.mxu0
    %v1045 = vadd.f32 %v920, %v1044
    %1046 = vmatmul.f32.gmra.mxu0 %v177
    %v1047 = vpop.f32.mrf.mxu0
    %v1048 = vadd.f32 %v923, %v1047
    %1049 = vmatmul.f32.gmra.mxu0 %v178
    %v1050 = vpop.f32.mrf.mxu0
    %v1051 = vadd.f32 %v926, %v1050
    %1052 = vmatmul.f32.gmra.mxu0 %v179
    %v1053 = vpop.f32.mrf.mxu0
    %v1054 = vadd.f32 %v929, %v1053
    %1055 = vmatmul.f32.gmra.mxu0 %v180
    %v1056 = vpop.f32.mrf.mxu0
    %v1057 = vadd.f32 %v932, %v1056
    %1058 = vmatmul.f32.gmra.mxu0 %v181
    %v1059 = vpop.f32.mrf.mxu0
    %v1060 = vadd.f32 %v935, %v1059
    %1061 = vdwg.mxu0
    %1062 = vmatpush.msra.mxu0 %v388
    %1063 = vmatpush.msra.mxu0 %v387
    %1064 = vmatpush.msra.mxu0 %v386
    %1065 = vmatpush.msra.mxu0 %v385
    %1066 = vmatpush.msra.mxu0 %v384
    %1067 = vmatpush.msra.mxu0 %v383
    %1068 = vmatpush.msra.mxu0 %v382
    %1069 = vmatpush.msra.mxu0 %v381
    %1070 = vmatpush.msra.mxu0 %v380
    %1071 = vmatpush.msra.mxu0 %v379
    %1072 = vmatpush.msra.mxu0 %v378
    %1073 = vmatpush.msra.mxu0 %v377
    %1074 = vmatpush.msra.mxu0 %v376
    %1075 = vmatpush.msra.mxu0 %v375
    %1076 = vmatpush.msra.mxu0 %v374
    %1077 = vmatpush.msra.mxu0 %v373
    %1078 = vmatmul.f32.gmra.mxu0 %v182
    %v1079 = vpop.f32.mrf.mxu0
    %v1080 = vadd.f32 %v955, %v1079
    %1081 = vmatmul.f32.gmra.mxu0 %v183
    %v1082 = vpop.f32.mrf.mxu0
    %v1083 = vadd.f32 %v958, %v1082
    %1084 = vmatmul.f32.gmra.mxu0 %v184
    %v1085 = vpop.f32.mrf.mxu0
    %v1086 = vadd.f32 %v961, %v1085
    %1087 = vmatmul.f32.gmra.mxu0 %v185
    %v1088 = vpop.f32.mrf.mxu0
    %v1089 = vadd.f32 %v964, %v1088
    %1090 = vmatmul.f32.gmra.mxu0 %v186
    %v1091 = vpop.f32.mrf.mxu0
    %v1092 = vadd.f32 %v967, %v1091
    %1093 = vmatmul.f32.gmra.mxu0 %v187
    %v1094 = vpop.f32.mrf.mxu0
    %v1095 = vadd.f32 %v970, %v1094
    %1096 = vmatmul.f32.gmra.mxu0 %v188
    %v1097 = vpop.f32.mrf.mxu0
    %v1098 = vadd.f32 %v973, %v1097
    %1099 = vmatmul.f32.gmra.mxu0 %v189
    %v1100 = vpop.f32.mrf.mxu0
    %v1101 = vadd.f32 %v976, %v1100
    %1102 = vmatmul.f32.gmra.mxu0 %v190
    %v1103 = vpop.f32.mrf.mxu0
    %v1104 = vadd.f32 %v979, %v1103
    %1105 = vmatmul.f32.gmra.mxu0 %v191
    %v1106 = vpop.f32.mrf.mxu0
    %v1107 = vadd.f32 %v982, %v1106
    %1108 = vmatmul.f32.gmra.mxu0 %v192
    %v1109 = vpop.f32.mrf.mxu0
    %v1110 = vadd.f32 %v985, %v1109
    %1111 = vmatmul.f32.gmra.mxu0 %v193
    %v1112 = vpop.f32.mrf.mxu0
    %v1113 = vadd.f32 %v988, %v1112
    %1114 = vmatmul.f32.gmra.mxu0 %v194
    %v1115 = vpop.f32.mrf.mxu0
    %v1116 = vadd.f32 %v991, %v1115
    %1117 = vmatmul.f32.gmra.mxu0 %v195
    %v1118 = vpop.f32.mrf.mxu0
    %v1119 = vadd.f32 %v994, %v1118
    %1120 = vmatmul.f32.gmra.mxu0 %v196
    %v1121 = vpop.f32.mrf.mxu0
    %v1122 = vadd.f32 %v997, %v1121
    %1123 = vmatmul.f32.gmra.mxu0 %v197
    %v1124 = vpop.f32.mrf.mxu0
    %v1125 = vadd.f32 %v1000, %v1124
    %1126 = vmatmul.f32.gmra.mxu0 %v198
    %v1127 = vpop.f32.mrf.mxu0
    %v1128 = vadd.f32 %v1003, %v1127
    %1129 = vmatmul.f32.gmra.mxu0 %v199
    %v1130 = vpop.f32.mrf.mxu0
    %v1131 = vadd.f32 %v1006, %v1130
    %1132 = vmatmul.f32.gmra.mxu0 %v200
    %v1133 = vpop.f32.mrf.mxu0
    %v1134 = vadd.f32 %v1009, %v1133
    %1135 = vmatmul.f32.gmra.mxu0 %v201
    %v1136 = vpop.f32.mrf.mxu0
    %v1137 = vadd.f32 %v1012, %v1136
    %1138 = vmatmul.f32.gmra.mxu0 %v202
    %v1139 = vpop.f32.mrf.mxu0
    %v1140 = vadd.f32 %v1015, %v1139
    %1141 = vmatmul.f32.gmra.mxu0 %v203
    %v1142 = vpop.f32.mrf.mxu0
    %v1143 = vadd.f32 %v1018, %v1142
    %1144 = vmatmul.f32.gmra.mxu0 %v204
    %v1145 = vpop.f32.mrf.mxu0
    %v1146 = vadd.f32 %v1021, %v1145
    %1147 = vmatmul.f32.gmra.mxu0 %v205
    %v1148 = vpop.f32.mrf.mxu0
    %v1149 = vadd.f32 %v1024, %v1148
    %1150 = vmatmul.f32.gmra.mxu0 %v206
    %v1151 = vpop.f32.mrf.mxu0
    %v1152 = vadd.f32 %v1027, %v1151
    %1153 = vmatmul.f32.gmra.mxu0 %v207
    %v1154 = vpop.f32.mrf.mxu0
    %v1155 = vadd.f32 %v1030, %v1154
    %1156 = vmatmul.f32.gmra.mxu0 %v208
    %v1157 = vpop.f32.mrf.mxu0
    %v1158 = vadd.f32 %v1033, %v1157
    %1159 = vmatmul.f32.gmra.mxu0 %v209
    %v1160 = vpop.f32.mrf.mxu0
    %v1161 = vadd.f32 %v1036, %v1160
    %1162 = vmatmul.f32.gmra.mxu0 %v210
    %v1163 = vpop.f32.mrf.mxu0
    %v1164 = vadd.f32 %v1039, %v1163
    %1165 = vmatmul.f32.gmra.mxu0 %v211
    %v1166 = vpop.f32.mrf.mxu0
    %v1167 = vadd.f32 %v1042, %v1166
    %1168 = vmatmul.f32.gmra.mxu0 %v212
    %v1169 = vpop.f32.mrf.mxu0
    %v1170 = vadd.f32 %v1045, %v1169
    %1171 = vmatmul.f32.gmra.mxu0 %v213
    %v1172 = vpop.f32.mrf.mxu0
    %v1173 = vadd.f32 %v1048, %v1172
    %1174 = vmatmul.f32.gmra.mxu0 %v214
    %v1175 = vpop.f32.mrf.mxu0
    %v1176 = vadd.f32 %v1051, %v1175
    %1177 = vmatmul.f32.gmra.mxu0 %v215
    %v1178 = vpop.f32.mrf.mxu0
    %v1179 = vadd.f32 %v1054, %v1178
    %1180 = vmatmul.f32.gmra.mxu0 %v216
    %v1181 = vpop.f32.mrf.mxu0
    %v1182 = vadd.f32 %v1057, %v1181
    %1183 = vmatmul.f32.gmra.mxu0 %v217
    %v1184 = vpop.f32.mrf.mxu0
    %v1185 = vadd.f32 %v1060, %v1184
    %1186 = vdwg.mxu0
    %1187 = vmatpush.msra.mxu0 %v404
    %1188 = vmatpush.msra.mxu0 %v403
    %1189 = vmatpush.msra.mxu0 %v402
    %1190 = vmatpush.msra.mxu0 %v401
    %1191 = vmatpush.msra.mxu0 %v400
    %1192 = vmatpush.msra.mxu0 %v399
    %1193 = vmatpush.msra.mxu0 %v398
    %1194 = vmatpush.msra.mxu0 %v397
    %1195 = vmatpush.msra.mxu0 %v396
    %1196 = vmatpush.msra.mxu0 %v395
    %1197 = vmatpush.msra.mxu0 %v394
    %1198 = vmatpush.msra.mxu0 %v393
    %1199 = vmatpush.msra.mxu0 %v392
    %1200 = vmatpush.msra.mxu0 %v391
    %1201 = vmatpush.msra.mxu0 %v390
    %1202 = vmatpush.msra.mxu0 %v389
    %1203 = vmatmul.f32.gmra.mxu0 %v184
    %v1204 = vpop.f32.mrf.mxu0
    %v1205 = vadd.f32 %v1080, %v1204
    %1206 = vmatmul.f32.gmra.mxu0 %v185
    %v1207 = vpop.f32.mrf.mxu0
    %v1208 = vadd.f32 %v1083, %v1207
    %1209 = vmatmul.f32.gmra.mxu0 %v186
    %v1210 = vpop.f32.mrf.mxu0
    %v1211 = vadd.f32 %v1086, %v1210
    %1212 = vmatmul.f32.gmra.mxu0 %v187
    %v1213 = vpop.f32.mrf.mxu0
    %v1214 = vadd.f32 %v1089, %v1213
    %1215 = vmatmul.f32.gmra.mxu0 %v188
    %v1216 = vpop.f32.mrf.mxu0
    %v1217 = vadd.f32 %v1092, %v1216
    %1218 = vmatmul.f32.gmra.mxu0 %v189
    %v1219 = vpop.f32.mrf.mxu0
    %v1220 = vadd.f32 %v1095, %v1219
    %1221 = vmatmul.f32.gmra.mxu0 %v190
    %v1222 = vpop.f32.mrf.mxu0
    %v1223 = vadd.f32 %v1098, %v1222
    %1224 = vmatmul.f32.gmra.mxu0 %v191
    %v1225 = vpop.f32.mrf.mxu0
    %v1226 = vadd.f32 %v1101, %v1225
    %1227 = vmatmul.f32.gmra.mxu0 %v192
    %v1228 = vpop.f32.mrf.mxu0
    %v1229 = vadd.f32 %v1104, %v1228
    %1230 = vmatmul.f32.gmra.mxu0 %v193
    %v1231 = vpop.f32.mrf.mxu0
    %v1232 = vadd.f32 %v1107, %v1231
    %1233 = vmatmul.f32.gmra.mxu0 %v194
    %v1234 = vpop.f32.mrf.mxu0
    %v1235 = vadd.f32 %v1110, %v1234
    %1236 = vmatmul.f32.gmra.mxu0 %v195
    %v1237 = vpop.f32.mrf.mxu0
    %v1238 = vadd.f32 %v1113, %v1237
    %1239 = vmatmul.f32.gmra.mxu0 %v196
    %v1240 = vpop.f32.mrf.mxu0
    %v1241 = vadd.f32 %v1116, %v1240
    %1242 = vmatmul.f32.gmra.mxu0 %v197
    %v1243 = vpop.f32.mrf.mxu0
    %v1244 = vadd.f32 %v1119, %v1243
    %1245 = vmatmul.f32.gmra.mxu0 %v198
    %v1246 = vpop.f32.mrf.mxu0
    %v1247 = vadd.f32 %v1122, %v1246
    %1248 = vmatmul.f32.gmra.mxu0 %v199
    %v1249 = vpop.f32.mrf.mxu0
    %v1250 = vadd.f32 %v1125, %v1249
    %1251 = vmatmul.f32.gmra.mxu0 %v200
    %v1252 = vpop.f32.mrf.mxu0
    %v1253 = vadd.f32 %v1128, %v1252
    %1254 = vmatmul.f32.gmra.mxu0 %v201
    %v1255 = vpop.f32.mrf.mxu0
    %v1256 = vadd.f32 %v1131, %v1255
    %1257 = vmatmul.f32.gmra.mxu0 %v202
    %v1258 = vpop.f32.mrf.mxu0
    %v1259 = vadd.f32 %v1134, %v1258
    %1260 = vmatmul.f32.gmra.mxu0 %v203
    %v1261 = vpop.f32.mrf.mxu0
    %v1262 = vadd.f32 %v1137, %v1261
    %1263 = vmatmul.f32.gmra.mxu0 %v204
    %v1264 = vpop.f32.mrf.mxu0
    %v1265 = vadd.f32 %v1140, %v1264
    %1266 = vmatmul.f32.gmra.mxu0 %v205
    %v1267 = vpop.f32.mrf.mxu0
    %v1268 = vadd.f32 %v1143, %v1267
    %1269 = vmatmul.f32.gmra.mxu0 %v206
    %v1270 = vpop.f32.mrf.mxu0
    %v1271 = vadd.f32 %v1146, %v1270
    %1272 = vmatmul.f32.gmra.mxu0 %v207
    %v1273 = vpop.f32.mrf.mxu0
    %v1274 = vadd.f32 %v1149, %v1273
    %1275 = vmatmul.f32.gmra.mxu0 %v208
    %v1276 = vpop.f32.mrf.mxu0
    %v1277 = vadd.f32 %v1152, %v1276
    %1278 = vmatmul.f32.gmra.mxu0 %v209
    %v1279 = vpop.f32.mrf.mxu0
    %v1280 = vadd.f32 %v1155, %v1279
    %1281 = vmatmul.f32.gmra.mxu0 %v210
    %v1282 = vpop.f32.mrf.mxu0
    %v1283 = vadd.f32 %v1158, %v1282
    %1284 = vmatmul.f32.gmra.mxu0 %v211
    %v1285 = vpop.f32.mrf.mxu0
    %v1286 = vadd.f32 %v1161, %v1285
    %1287 = vmatmul.f32.gmra.mxu0 %v212
    %v1288 = vpop.f32.mrf.mxu0
    %v1289 = vadd.f32 %v1164, %v1288
    %1290 = vmatmul.f32.gmra.mxu0 %v213
    %v1291 = vpop.f32.mrf.mxu0
    %v1292 = vadd.f32 %v1167, %v1291
    %1293 = vmatmul.f32.gmra.mxu0 %v214
    %v1294 = vpop.f32.mrf.mxu0
    %v1295 = vadd.f32 %v1170, %v1294
    %1296 = vmatmul.f32.gmra.mxu0 %v215
    %v1297 = vpop.f32.mrf.mxu0
    %v1298 = vadd.f32 %v1173, %v1297
    %1299 = vmatmul.f32.gmra.mxu0 %v216
    %v1300 = vpop.f32.mrf.mxu0
    %v1301 = vadd.f32 %v1176, %v1300
    %1302 = vmatmul.f32.gmra.mxu0 %v218
    %v1303 = vpop.f32.mrf.mxu0
    %v1304 = vadd.f32 %v1179, %v1303
    %1305 = vmatmul.f32.gmra.mxu0 %v219
    %v1306 = vpop.f32.mrf.mxu0
    %v1307 = vadd.f32 %v1182, %v1306
    %1308 = vmatmul.f32.gmra.mxu0 %v220
    %v1309 = vpop.f32.mrf.mxu0
    %v1310 = vadd.f32 %v1185, %v1309
    %1311 = vdwg.mxu0
    %1312 = vmatpush.msra.mxu0 %v420
    %1313 = vmatpush.msra.mxu0 %v419
    %1314 = vmatpush.msra.mxu0 %v418
    %1315 = vmatpush.msra.mxu0 %v417
    %1316 = vmatpush.msra.mxu0 %v416
    %1317 = vmatpush.msra.mxu0 %v415
    %1318 = vmatpush.msra.mxu0 %v414
    %1319 = vmatpush.msra.mxu0 %v413
    %1320 = vmatpush.msra.mxu0 %v412
    %1321 = vmatpush.msra.mxu0 %v411
    %1322 = vmatpush.msra.mxu0 %v410
    %1323 = vmatpush.msra.mxu0 %v409
    %1324 = vmatpush.msra.mxu0 %v408
    %1325 = vmatpush.msra.mxu0 %v407
    %1326 = vmatpush.msra.mxu0 %v406
    %1327 = vmatpush.msra.mxu0 %v405
    %1328 = vmatmul.f32.gmra.mxu0 %v221
    %v1329 = vpop.f32.mrf.mxu0
    %v1330 = vadd.f32 %v1205, %v1329
    %1331 = vmatmul.f32.gmra.mxu0 %v222
    %v1332 = vpop.f32.mrf.mxu0
    %v1333 = vadd.f32 %v1208, %v1332
    %1334 = vmatmul.f32.gmra.mxu0 %v223
    %v1335 = vpop.f32.mrf.mxu0
    %v1336 = vadd.f32 %v1211, %v1335
    %1337 = vmatmul.f32.gmra.mxu0 %v224
    %v1338 = vpop.f32.mrf.mxu0
    %v1339 = vadd.f32 %v1214, %v1338
    %1340 = vmatmul.f32.gmra.mxu0 %v225
    %v1341 = vpop.f32.mrf.mxu0
    %v1342 = vadd.f32 %v1217, %v1341
    %1343 = vmatmul.f32.gmra.mxu0 %v226
    %v1344 = vpop.f32.mrf.mxu0
    %v1345 = vadd.f32 %v1220, %v1344
    %1346 = vmatmul.f32.gmra.mxu0 %v227
    %v1347 = vpop.f32.mrf.mxu0
    %v1348 = vadd.f32 %v1223, %v1347
    %1349 = vmatmul.f32.gmra.mxu0 %v228
    %v1350 = vpop.f32.mrf.mxu0
    %v1351 = vadd.f32 %v1226, %v1350
    %1352 = vmatmul.f32.gmra.mxu0 %v229
    %v1353 = vpop.f32.mrf.mxu0
    %v1354 = vadd.f32 %v1229, %v1353
    %1355 = vmatmul.f32.gmra.mxu0 %v230
    %v1356 = vpop.f32.mrf.mxu0
    %v1357 = vadd.f32 %v1232, %v1356
    %1358 = vmatmul.f32.gmra.mxu0 %v231
    %v1359 = vpop.f32.mrf.mxu0
    %v1360 = vadd.f32 %v1235, %v1359
    %1361 = vmatmul.f32.gmra.mxu0 %v232
    %v1362 = vpop.f32.mrf.mxu0
    %v1363 = vadd.f32 %v1238, %v1362
    %1364 = vmatmul.f32.gmra.mxu0 %v233
    %v1365 = vpop.f32.mrf.mxu0
    %v1366 = vadd.f32 %v1241, %v1365
    %1367 = vmatmul.f32.gmra.mxu0 %v234
    %v1368 = vpop.f32.mrf.mxu0
    %v1369 = vadd.f32 %v1244, %v1368
    %1370 = vmatmul.f32.gmra.mxu0 %v235
    %v1371 = vpop.f32.mrf.mxu0
    %v1372 = vadd.f32 %v1247, %v1371
    %1373 = vmatmul.f32.gmra.mxu0 %v236
    %v1374 = vpop.f32.mrf.mxu0
    %v1375 = vadd.f32 %v1250, %v1374
    %1376 = vmatmul.f32.gmra.mxu0 %v237
    %v1377 = vpop.f32.mrf.mxu0
    %v1378 = vadd.f32 %v1253, %v1377
    %1379 = vmatmul.f32.gmra.mxu0 %v238
    %v1380 = vpop.f32.mrf.mxu0
    %v1381 = vadd.f32 %v1256, %v1380
    %1382 = vmatmul.f32.gmra.mxu0 %v239
    %v1383 = vpop.f32.mrf.mxu0
    %v1384 = vadd.f32 %v1259, %v1383
    %1385 = vmatmul.f32.gmra.mxu0 %v240
    %v1386 = vpop.f32.mrf.mxu0
    %v1387 = vadd.f32 %v1262, %v1386
    %1388 = vmatmul.f32.gmra.mxu0 %v241
    %v1389 = vpop.f32.mrf.mxu0
    %v1390 = vadd.f32 %v1265, %v1389
    %1391 = vmatmul.f32.gmra.mxu0 %v242
    %v1392 = vpop.f32.mrf.mxu0
    %v1393 = vadd.f32 %v1268, %v1392
    %1394 = vmatmul.f32.gmra.mxu0 %v243
    %v1395 = vpop.f32.mrf.mxu0
    %v1396 = vadd.f32 %v1271, %v1395
    %1397 = vmatmul.f32.gmra.mxu0 %v244
    %v1398 = vpop.f32.mrf.mxu0
    %v1399 = vadd.f32 %v1274, %v1398
    %1400 = vmatmul.f32.gmra.mxu0 %v245
    %v1401 = vpop.f32.mrf.mxu0
    %v1402 = vadd.f32 %v1277, %v1401
    %1403 = vmatmul.f32.gmra.mxu0 %v246
    %v1404 = vpop.f32.mrf.mxu0
    %v1405 = vadd.f32 %v1280, %v1404
    %1406 = vmatmul.f32.gmra.mxu0 %v247
    %v1407 = vpop.f32.mrf.mxu0
    %v1408 = vadd.f32 %v1283, %v1407
    %1409 = vmatmul.f32.gmra.mxu0 %v248
    %v1410 = vpop.f32.mrf.mxu0
    %v1411 = vadd.f32 %v1286, %v1410
    %1412 = vmatmul.f32.gmra.mxu0 %v249
    %v1413 = vpop.f32.mrf.mxu0
    %v1414 = vadd.f32 %v1289, %v1413
    %1415 = vmatmul.f32.gmra.mxu0 %v250
    %v1416 = vpop.f32.mrf.mxu0
    %v1417 = vadd.f32 %v1292, %v1416
    %1418 = vmatmul.f32.gmra.mxu0 %v251
    %v1419 = vpop.f32.mrf.mxu0
    %v1420 = vadd.f32 %v1295, %v1419
    %1421 = vmatmul.f32.gmra.mxu0 %v252
    %v1422 = vpop.f32.mrf.mxu0
    %v1423 = vadd.f32 %v1298, %v1422
    %1424 = vmatmul.f32.gmra.mxu0 %v253
    %v1425 = vpop.f32.mrf.mxu0
    %v1426 = vadd.f32 %v1301, %v1425
    %1427 = vmatmul.f32.gmra.mxu0 %v254
    %v1428 = vpop.f32.mrf.mxu0
    %v1429 = vadd.f32 %v1304, %v1428
    %1430 = vmatmul.f32.gmra.mxu0 %v255
    %v1431 = vpop.f32.mrf.mxu0
    %v1432 = vadd.f32 %v1307, %v1431
    %1433 = vmatmul.f32.gmra.mxu0 %v256
    %v1434 = vpop.f32.mrf.mxu0
    %v1435 = vadd.f32 %v1310, %v1434
    %1436 = vdwg.mxu0
    %1437 = vmatpush.msra.mxu0 %v436
    %1438 = vmatpush.msra.mxu0 %v435
    %1439 = vmatpush.msra.mxu0 %v434
    %1440 = vmatpush.msra.mxu0 %v433
    %1441 = vmatpush.msra.mxu0 %v432
    %1442 = vmatpush.msra.mxu0 %v431
    %1443 = vmatpush.msra.mxu0 %v430
    %1444 = vmatpush.msra.mxu0 %v429
    %1445 = vmatpush.msra.mxu0 %v428
    %1446 = vmatpush.msra.mxu0 %v427
    %1447 = vmatpush.msra.mxu0 %v426
    %1448 = vmatpush.msra.mxu0 %v425
    %1449 = vmatpush.msra.mxu0 %v424
    %1450 = vmatpush.msra.mxu0 %v423
    %1451 = vmatpush.msra.mxu0 %v422
    %1452 = vmatpush.msra.mxu0 %v421
    %1453 = vmatmul.f32.gmra.mxu0 %v257
    %v1454 = vpop.f32.mrf.mxu0
    %v1455 = vadd.f32 %v1330, %v1454
    %1456 = vmatmul.f32.gmra.mxu0 %v258
    %v1457 = vpop.f32.mrf.mxu0
    %v1458 = vadd.f32 %v1333, %v1457
    %1459 = vmatmul.f32.gmra.mxu0 %v259
    %v1460 = vpop.f32.mrf.mxu0
    %v1461 = vadd.f32 %v1336, %v1460
    %1462 = vmatmul.f32.gmra.mxu0 %v260
    %v1463 = vpop.f32.mrf.mxu0
    %v1464 = vadd.f32 %v1339, %v1463
    %1465 = vmatmul.f32.gmra.mxu0 %v261
    %v1466 = vpop.f32.mrf.mxu0
    %v1467 = vadd.f32 %v1342, %v1466
    %1468 = vmatmul.f32.gmra.mxu0 %v262
    %v1469 = vpop.f32.mrf.mxu0
    %v1470 = vadd.f32 %v1345, %v1469
    %1471 = vmatmul.f32.gmra.mxu0 %v263
    %v1472 = vpop.f32.mrf.mxu0
    %v1473 = vadd.f32 %v1348, %v1472
    %1474 = vmatmul.f32.gmra.mxu0 %v264
    %v1475 = vpop.f32.mrf.mxu0
    %v1476 = vadd.f32 %v1351, %v1475
    %1477 = vmatmul.f32.gmra.mxu0 %v265
    %v1478 = vpop.f32.mrf.mxu0
    %v1479 = vadd.f32 %v1354, %v1478
    %1480 = vmatmul.f32.gmra.mxu0 %v266
    %v1481 = vpop.f32.mrf.mxu0
    %v1482 = vadd.f32 %v1357, %v1481
    %1483 = vmatmul.f32.gmra.mxu0 %v267
    %v1484 = vpop.f32.mrf.mxu0
    %v1485 = vadd.f32 %v1360, %v1484
    %1486 = vmatmul.f32.gmra.mxu0 %v268
    %v1487 = vpop.f32.mrf.mxu0
    %v1488 = vadd.f32 %v1363, %v1487
    %1489 = vmatmul.f32.gmra.mxu0 %v269
    %v1490 = vpop.f32.mrf.mxu0
    %v1491 = vadd.f32 %v1366, %v1490
    %1492 = vmatmul.f32.gmra.mxu0 %v270
    %v1493 = vpop.f32.mrf.mxu0
    %v1494 = vadd.f32 %v1369, %v1493
    %1495 = vmatmul.f32.gmra.mxu0 %v271
    %v1496 = vpop.f32.mrf.mxu0
    %v1497 = vadd.f32 %v1372, %v1496
    %1498 = vmatmul.f32.gmra.mxu0 %v272
    %v1499 = vpop.f32.mrf.mxu0
    %v1500 = vadd.f32 %v1375, %v1499
    %1501 = vmatmul.f32.gmra.mxu0 %v273
    %v1502 = vpop.f32.mrf.mxu0
    %v1503 = vadd.f32 %v1378, %v1502
    %1504 = vmatmul.f32.gmra.mxu0 %v274
    %v1505 = vpop.f32.mrf.mxu0
    %v1506 = vadd.f32 %v1381, %v1505
    %1507 = vmatmul.f32.gmra.mxu0 %v275
    %v1508 = vpop.f32.mrf.mxu0
    %v1509 = vadd.f32 %v1384, %v1508
    %1510 = vmatmul.f32.gmra.mxu0 %v276
    %v1511 = vpop.f32.mrf.mxu0
    %v1512 = vadd.f32 %v1387, %v1511
    %1513 = vmatmul.f32.gmra.mxu0 %v277
    %v1514 = vpop.f32.mrf.mxu0
    %v1515 = vadd.f32 %v1390, %v1514
    %1516 = vmatmul.f32.gmra.mxu0 %v278
    %v1517 = vpop.f32.mrf.mxu0
    %v1518 = vadd.f32 %v1393, %v1517
    %1519 = vmatmul.f32.gmra.mxu0 %v279
    %v1520 = vpop.f32.mrf.mxu0
    %v1521 = vadd.f32 %v1396, %v1520
    %1522 = vmatmul.f32.gmra.mxu0 %v280
    %v1523 = vpop.f32.mrf.mxu0
    %v1524 = vadd.f32 %v1399, %v1523
    %1525 = vmatmul.f32.gmra.mxu0 %v281
    %v1526 = vpop.f32.mrf.mxu0
    %v1527 = vadd.f32 %v1402, %v1526
    %1528 = vmatmul.f32.gmra.mxu0 %v282
    %v1529 = vpop.f32.mrf.mxu0
    %v1530 = vadd.f32 %v1405, %v1529
    %1531 = vmatmul.f32.gmra.mxu0 %v283
    %v1532 = vpop.f32.mrf.mxu0
    %v1533 = vadd.f32 %v1408, %v1532
    %1534 = vmatmul.f32.gmra.mxu0 %v284
    %v1535 = vpop.f32.mrf.mxu0
    %v1536 = vadd.f32 %v1411, %v1535
    %1537 = vmatmul.f32.gmra.mxu0 %v285
    %v1538 = vpop.f32.mrf.mxu0
    %v1539 = vadd.f32 %v1414, %v1538
    %1540 = vmatmul.f32.gmra.mxu0 %v286
    %v1541 = vpop.f32.mrf.mxu0
    %v1542 = vadd.f32 %v1417, %v1541
    %1543 = vmatmul.f32.gmra.mxu0 %v287
    %v1544 = vpop.f32.mrf.mxu0
    %v1545 = vadd.f32 %v1420, %v1544
    %1546 = vmatmul.f32.gmra.mxu0 %v288
    %v1547 = vpop.f32.mrf.mxu0
    %v1548 = vadd.f32 %v1423, %v1547
    %1549 = vmatmul.f32.gmra.mxu0 %v289
    %v1550 = vpop.f32.mrf.mxu0
    %v1551 = vadd.f32 %v1426, %v1550
    %1552 = vmatmul.f32.gmra.mxu0 %v290
    %v1553 = vpop.f32.mrf.mxu0
    %v1554 = vadd.f32 %v1429, %v1553
    %1555 = vmatmul.f32.gmra.mxu0 %v291
    %v1556 = vpop.f32.mrf.mxu0
    %v1557 = vadd.f32 %v1432, %v1556
    %1558 = vmatmul.f32.gmra.mxu0 %v292
    %v1559 = vpop.f32.mrf.mxu0
    %v1560 = vadd.f32 %v1435, %v1559
    %1561 = vdwg.mxu0
    %v1562 = vlaneseq
    %v1563 = vshrl.u32 %v1562, 7
    %v1564 = vadd.s32 %v1563, 8
    %v1565 = vadd.s32 %v1563, 16
    %v1566 = vadd.s32 %v1563, 24
    %v1567 = vadd.s32 %v1563, 32
    %v1568 = vadd.s32 %v1563, 40
    %v1569 = vadd.s32 %v1563, 48
    %v1570 = vadd.s32 %v1563, 56
    %v1571 = vlaneseq
    %v1572 = vand.u32 %v1571, 127
    %v1573 = vadd.s32 %v1572, 128
    %v1574 = vadd.s32 %v1572, 256
    %v1575 = vshra.s32 %v1563, 3
    %v1576 = vshra.s32 %v1564, 3
    %v1577 = vshra.s32 %v1565, 3
    %v1578 = vshra.s32 %v1566, 3
    %v1579 = vshra.s32 %v1567, 3
    %v1580 = vshra.s32 %v1568, 3
    %v1581 = vshra.s32 %v1569, 3
    %v1582 = vshra.s32 %v1570, 3
    %v1583 = vand.u32 %v1563, 7
    %v1584 = vand.u32 %v1564, 7
    %v1585 = vand.u32 %v1565, 7
    %v1586 = vand.u32 %v1566, 7
    %v1587 = vand.u32 %v1567, 7
    %v1588 = vand.u32 %v1568, 7
    %v1589 = vand.u32 %v1569, 7
    %v1590 = vand.u32 %v1570, 7
    %v1591 = vmul.u32 %v1575, 2
    %v1592 = vmul.u32 %v1576, 2
    %v1593 = vmul.u32 %v1577, 2
    %v1594 = vmul.u32 %v1578, 2
    %v1595 = vmul.u32 %v1579, 2
    %v1596 = vmul.u32 %v1580, 2
    %v1597 = vmul.u32 %v1581, 2
    %v1598 = vmul.u32 %v1582, 2
    %v1599 = vmul.u32 %v1591, 18
    %v1600 = vmul.u32 %v1592, 18
    %v1601 = vmul.u32 %v1593, 18
    %v1602 = vmul.u32 %v1594, 18
    %v1603 = vmul.u32 %v1595, 18
    %v1604 = vmul.u32 %v1596, 18
    %v1605 = vmul.u32 %v1597, 18
    %v1606 = vmul.u32 %v1598, 18
    %v1607 = vmul.u32 %v1583, 2
    %v1608 = vmul.u32 %v1584, 2
    %v1609 = vmul.u32 %v1585, 2
    %v1610 = vmul.u32 %v1586, 2
    %v1611 = vmul.u32 %v1587, 2
    %v1612 = vmul.u32 %v1588, 2
    %v1613 = vmul.u32 %v1589, 2
    %v1614 = vmul.u32 %v1590, 2
    %v1615 = vadd.s32 %v1599, %v1607
    %v1616 = vadd.s32 %v1600, %v1608
    %v1617 = vadd.s32 %v1601, %v1609
    %v1618 = vadd.s32 %v1602, %v1610
    %v1619 = vadd.s32 %v1603, %v1611
    %v1620 = vadd.s32 %v1604, %v1612
    %v1621 = vadd.s32 %v1605, %v1613
    %v1622 = vadd.s32 %v1606, %v1614
    %vm1623 = vcmp.eq.s32.totalorder %v1572, %v1615
    %vm1624 = vcmp.eq.s32.totalorder %v1573, %v1615
    %vm1625 = vcmp.eq.s32.totalorder %v1574, %v1615
    %vm1626 = vcmp.eq.s32.totalorder %v1572, %v1616
    %vm1627 = vcmp.eq.s32.totalorder %v1573, %v1616
    %vm1628 = vcmp.eq.s32.totalorder %v1574, %v1616
    %vm1629 = vcmp.eq.s32.totalorder %v1572, %v1617
    %vm1630 = vcmp.eq.s32.totalorder %v1573, %v1617
    %vm1631 = vcmp.eq.s32.totalorder %v1574, %v1617
    %vm1632 = vcmp.eq.s32.totalorder %v1572, %v1618
    %vm1633 = vcmp.eq.s32.totalorder %v1573, %v1618
    %vm1634 = vcmp.eq.s32.totalorder %v1574, %v1618
    %vm1635 = vcmp.eq.s32.totalorder %v1572, %v1619
    %vm1636 = vcmp.eq.s32.totalorder %v1573, %v1619
    %vm1637 = vcmp.eq.s32.totalorder %v1574, %v1619
    %vm1638 = vcmp.eq.s32.totalorder %v1572, %v1620
    %vm1639 = vcmp.eq.s32.totalorder %v1573, %v1620
    %vm1640 = vcmp.eq.s32.totalorder %v1574, %v1620
    %vm1641 = vcmp.eq.s32.totalorder %v1572, %v1621
    %vm1642 = vcmp.eq.s32.totalorder %v1573, %v1621
    %vm1643 = vcmp.eq.s32.totalorder %v1574, %v1621
    %vm1644 = vcmp.eq.s32.totalorder %v1572, %v1622
    %vm1645 = vcmp.eq.s32.totalorder %v1573, %v1622
    %vm1646 = vcmp.eq.s32.totalorder %v1574, %v1622
    %v1647 = vsel %vm1623, 1.0, 0.0
    %v1648 = vsel %vm1624, 1.0, 0.0
    %v1649 = vsel %vm1625, 1.0, 0.0
    %v1650 = vsel %vm1626, 1.0, 0.0
    %v1651 = vsel %vm1627, 1.0, 0.0
    %v1652 = vsel %vm1628, 1.0, 0.0
    %v1653 = vsel %vm1629, 1.0, 0.0
    %v1654 = vsel %vm1630, 1.0, 0.0
    %v1655 = vsel %vm1631, 1.0, 0.0
    %v1656 = vsel %vm1632, 1.0, 0.0
    %v1657 = vsel %vm1633, 1.0, 0.0
    %v1658 = vsel %vm1634, 1.0, 0.0
    %v1659 = vsel %vm1635, 1.0, 0.0
    %v1660 = vsel %vm1636, 1.0, 0.0
    %v1661 = vsel %vm1637, 1.0, 0.0
    %v1662 = vsel %vm1638, 1.0, 0.0
    %v1663 = vsel %vm1639, 1.0, 0.0
    %v1664 = vsel %vm1640, 1.0, 0.0
    %v1665 = vsel %vm1641, 1.0, 0.0
    %v1666 = vsel %vm1642, 1.0, 0.0
    %v1667 = vsel %vm1643, 1.0, 0.0
    %v1668 = vsel %vm1644, 1.0, 0.0
    %v1669 = vsel %vm1645, 1.0, 0.0
    %v1670 = vsel %vm1646, 1.0, 0.0
    %vm1671 = vcmask 244736
    %v1673 = vsel %vm1671, %v1649, 0
    %v1676 = vsel %vm1671, %v1652, 0
    %v1679 = vsel %vm1671, %v1655, 0
    %v1682 = vsel %vm1671, %v1658, 0
    %v1685 = vsel %vm1671, %v1661, 0
    %v1688 = vsel %vm1671, %v1664, 0
    %v1691 = vsel %vm1671, %v1667, 0
    %v1694 = vsel %vm1671, %v1670, 0
    %vm1696 = vcmask 1045504
    %v1698 = vsel %vm1696, %v1560, 0
    %1700 = vmatpush.msra.mxu0 %v1500
    %1701 = vmatpush.msra.mxu0 %v1497
    %1702 = vmatpush.msra.mxu0 %v1494
    %1703 = vmatpush.msra.mxu0 %v1491
    %1704 = vmatpush.msra.mxu0 %v1488
    %1705 = vmatpush.msra.mxu0 %v1485
    %1706 = vmatpush.msra.mxu0 %v1482
    %1707 = vmatpush.msra.mxu0 %v1479
    %1708 = vmatpush.msra.mxu0 %v1476
    %1709 = vmatpush.msra.mxu0 %v1473
    %1710 = vmatpush.msra.mxu0 %v1470
    %1711 = vmatpush.msra.mxu0 %v1467
    %1712 = vmatpush.msra.mxu0 %v1464
    %1713 = vmatpush.msra.mxu0 %v1461
    %1714 = vmatpush.msra.mxu0 %v1458
    %1715 = vmatpush.msra.mxu0 %v1455
    %1716 = vmatmul.f32.gmra.mxu0 %v1647
    %v1717 = vpop.f32.mrf.mxu0
    %v1718 = vadd.f32 0.0, %v1717
    %1719 = vmatmul.f32.gmra.mxu0 %v1650
    %v1720 = vpop.f32.mrf.mxu0
    %v1721 = vadd.f32 0.0, %v1720
    %1722 = vmatmul.f32.gmra.mxu0 %v1653
    %v1723 = vpop.f32.mrf.mxu0
    %v1724 = vadd.f32 0.0, %v1723
    %1725 = vmatmul.f32.gmra.mxu0 %v1656
    %v1726 = vpop.f32.mrf.mxu0
    %v1727 = vadd.f32 0.0, %v1726
    %1728 = vmatmul.f32.gmra.mxu0 %v1659
    %v1729 = vpop.f32.mrf.mxu0
    %v1730 = vadd.f32 0.0, %v1729
    %1731 = vmatmul.f32.gmra.mxu0 %v1662
    %v1732 = vpop.f32.mrf.mxu0
    %v1733 = vadd.f32 0.0, %v1732
    %1734 = vmatmul.f32.gmra.mxu0 %v1665
    %v1735 = vpop.f32.mrf.mxu0
    %v1736 = vadd.f32 0.0, %v1735
    %1737 = vmatmul.f32.gmra.mxu0 %v1668
    %v1738 = vpop.f32.mrf.mxu0
    %v1739 = vadd.f32 0.0, %v1738
    %1740 = vdwg.mxu0
    %1741 = vmatpush.msra.mxu0 %v1548
    %1742 = vmatpush.msra.mxu0 %v1545
    %1743 = vmatpush.msra.mxu0 %v1542
    %1744 = vmatpush.msra.mxu0 %v1539
    %1745 = vmatpush.msra.mxu0 %v1536
    %1746 = vmatpush.msra.mxu0 %v1533
    %1747 = vmatpush.msra.mxu0 %v1530
    %1748 = vmatpush.msra.mxu0 %v1527
    %1749 = vmatpush.msra.mxu0 %v1524
    %1750 = vmatpush.msra.mxu0 %v1521
    %1751 = vmatpush.msra.mxu0 %v1518
    %1752 = vmatpush.msra.mxu0 %v1515
    %1753 = vmatpush.msra.mxu0 %v1512
    %1754 = vmatpush.msra.mxu0 %v1509
    %1755 = vmatpush.msra.mxu0 %v1506
    %1756 = vmatpush.msra.mxu0 %v1503
    %1757 = vmatmul.f32.gmra.mxu0 %v1648
    %v1758 = vpop.f32.mrf.mxu0
    %v1759 = vadd.f32 %v1718, %v1758
    %1760 = vmatmul.f32.gmra.mxu0 %v1651
    %v1761 = vpop.f32.mrf.mxu0
    %v1762 = vadd.f32 %v1721, %v1761
    %1763 = vmatmul.f32.gmra.mxu0 %v1654
    %v1764 = vpop.f32.mrf.mxu0
    %v1765 = vadd.f32 %v1724, %v1764
    %1766 = vmatmul.f32.gmra.mxu0 %v1657
    %v1767 = vpop.f32.mrf.mxu0
    %v1768 = vadd.f32 %v1727, %v1767
    %1769 = vmatmul.f32.gmra.mxu0 %v1660
    %v1770 = vpop.f32.mrf.mxu0
    %v1771 = vadd.f32 %v1730, %v1770
    %1772 = vmatmul.f32.gmra.mxu0 %v1663
    %v1773 = vpop.f32.mrf.mxu0
    %v1774 = vadd.f32 %v1733, %v1773
    %1775 = vmatmul.f32.gmra.mxu0 %v1666
    %v1776 = vpop.f32.mrf.mxu0
    %v1777 = vadd.f32 %v1736, %v1776
    %1778 = vmatmul.f32.gmra.mxu0 %v1669
    %v1779 = vpop.f32.mrf.mxu0
    %v1780 = vadd.f32 %v1739, %v1779
    %1781 = vdwg.mxu0
    %1782 = vmatpush.msra.mxu0 0.0
    %1783 = vmatpush.msra.mxu0 0.0
    %1784 = vmatpush.msra.mxu0 0.0
    %1785 = vmatpush.msra.mxu0 0.0
    %1786 = vmatpush.msra.mxu0 0.0
    %1787 = vmatpush.msra.mxu0 0.0
    %1788 = vmatpush.msra.mxu0 0.0
    %1789 = vmatpush.msra.mxu0 0.0
    %1790 = vmatpush.msra.mxu0 0.0
    %1791 = vmatpush.msra.mxu0 0.0
    %1792 = vmatpush.msra.mxu0 0.0
    %1793 = vmatpush.msra.mxu0 0.0
    %1794 = vmatpush.msra.mxu0 %v1698
    %1795 = vmatpush.msra.mxu0 %v1557
    %1796 = vmatpush.msra.mxu0 %v1554
    %1797 = vmatpush.msra.mxu0 %v1551
    %1798 = vmatmul.f32.gmra.mxu0 %v1673
    %v1799 = vpop.f32.mrf.mxu0
    %v1800 = vadd.f32 %v1759, %v1799
    %1801 = vmatmul.f32.gmra.mxu0 %v1676
    %v1802 = vpop.f32.mrf.mxu0
    %v1803 = vadd.f32 %v1762, %v1802
    %1804 = vmatmul.f32.gmra.mxu0 %v1679
    %v1805 = vpop.f32.mrf.mxu0
    %v1806 = vadd.f32 %v1765, %v1805
    %1807 = vmatmul.f32.gmra.mxu0 %v1682
    %v1808 = vpop.f32.mrf.mxu0
    %v1809 = vadd.f32 %v1768, %v1808
    %1810 = vmatmul.f32.gmra.mxu0 %v1685
    %v1811 = vpop.f32.mrf.mxu0
    %v1812 = vadd.f32 %v1771, %v1811
    %1813 = vmatmul.f32.gmra.mxu0 %v1688
    %v1814 = vpop.f32.mrf.mxu0
    %v1815 = vadd.f32 %v1774, %v1814
    %1816 = vmatmul.f32.gmra.mxu0 %v1691
    %v1817 = vpop.f32.mrf.mxu0
    %v1818 = vadd.f32 %v1777, %v1817
    %1819 = vmatmul.f32.gmra.mxu0 %v1694
    %v1820 = vpop.f32.mrf.mxu0
    %v1821 = vadd.f32 %v1780, %v1820
    %1822 = vdwg.mxu0
    %v1823 = vadd.s32 %v1607, 1
    %v1824 = vadd.s32 %v1608, 1
    %v1825 = vadd.s32 %v1609, 1
    %v1826 = vadd.s32 %v1610, 1
    %v1827 = vadd.s32 %v1611, 1
    %v1828 = vadd.s32 %v1612, 1
    %v1829 = vadd.s32 %v1613, 1
    %v1830 = vadd.s32 %v1614, 1
    %v1831 = vadd.s32 %v1599, %v1823
    %v1832 = vadd.s32 %v1600, %v1824
    %v1833 = vadd.s32 %v1601, %v1825
    %v1834 = vadd.s32 %v1602, %v1826
    %v1835 = vadd.s32 %v1603, %v1827
    %v1836 = vadd.s32 %v1604, %v1828
    %v1837 = vadd.s32 %v1605, %v1829
    %v1838 = vadd.s32 %v1606, %v1830
    %vm1839 = vcmp.eq.s32.totalorder %v1572, %v1831
    %vm1840 = vcmp.eq.s32.totalorder %v1573, %v1831
    %vm1841 = vcmp.eq.s32.totalorder %v1574, %v1831
    %vm1842 = vcmp.eq.s32.totalorder %v1572, %v1832
    %vm1843 = vcmp.eq.s32.totalorder %v1573, %v1832
    %vm1844 = vcmp.eq.s32.totalorder %v1574, %v1832
    %vm1845 = vcmp.eq.s32.totalorder %v1572, %v1833
    %vm1846 = vcmp.eq.s32.totalorder %v1573, %v1833
    %vm1847 = vcmp.eq.s32.totalorder %v1574, %v1833
    %vm1848 = vcmp.eq.s32.totalorder %v1572, %v1834
    %vm1849 = vcmp.eq.s32.totalorder %v1573, %v1834
    %vm1850 = vcmp.eq.s32.totalorder %v1574, %v1834
    %vm1851 = vcmp.eq.s32.totalorder %v1572, %v1835
    %vm1852 = vcmp.eq.s32.totalorder %v1573, %v1835
    %vm1853 = vcmp.eq.s32.totalorder %v1574, %v1835
    %vm1854 = vcmp.eq.s32.totalorder %v1572, %v1836
    %vm1855 = vcmp.eq.s32.totalorder %v1573, %v1836
    %vm1856 = vcmp.eq.s32.totalorder %v1574, %v1836
    %vm1857 = vcmp.eq.s32.totalorder %v1572, %v1837
    %vm1858 = vcmp.eq.s32.totalorder %v1573, %v1837
    %vm1859 = vcmp.eq.s32.totalorder %v1574, %v1837
    %vm1860 = vcmp.eq.s32.totalorder %v1572, %v1838
    %vm1861 = vcmp.eq.s32.totalorder %v1573, %v1838
    %vm1862 = vcmp.eq.s32.totalorder %v1574, %v1838
    %v1863 = vsel %vm1839, 1.0, 0.0
    %v1864 = vsel %vm1840, 1.0, 0.0
    %v1865 = vsel %vm1841, 1.0, 0.0
    %v1866 = vsel %vm1842, 1.0, 0.0
    %v1867 = vsel %vm1843, 1.0, 0.0
    %v1868 = vsel %vm1844, 1.0, 0.0
    %v1869 = vsel %vm1845, 1.0, 0.0
    %v1870 = vsel %vm1846, 1.0, 0.0
    %v1871 = vsel %vm1847, 1.0, 0.0
    %v1872 = vsel %vm1848, 1.0, 0.0
    %v1873 = vsel %vm1849, 1.0, 0.0
    %v1874 = vsel %vm1850, 1.0, 0.0
    %v1875 = vsel %vm1851, 1.0, 0.0
    %v1876 = vsel %vm1852, 1.0, 0.0
    %v1877 = vsel %vm1853, 1.0, 0.0
    %v1878 = vsel %vm1854, 1.0, 0.0
    %v1879 = vsel %vm1855, 1.0, 0.0
    %v1880 = vsel %vm1856, 1.0, 0.0
    %v1881 = vsel %vm1857, 1.0, 0.0
    %v1882 = vsel %vm1858, 1.0, 0.0
    %v1883 = vsel %vm1859, 1.0, 0.0
    %v1884 = vsel %vm1860, 1.0, 0.0
    %v1885 = vsel %vm1861, 1.0, 0.0
    %v1886 = vsel %vm1862, 1.0, 0.0
    %v1888 = vsel %vm1671, %v1865, 0
    %v1891 = vsel %vm1671, %v1868, 0
    %v1894 = vsel %vm1671, %v1871, 0
    %v1897 = vsel %vm1671, %v1874, 0
    %v1900 = vsel %vm1671, %v1877, 0
    %v1903 = vsel %vm1671, %v1880, 0
    %v1906 = vsel %vm1671, %v1883, 0
    %v1909 = vsel %vm1671, %v1886, 0
    %1911 = vmatpush.msra.mxu0 %v1500
    %1912 = vmatpush.msra.mxu0 %v1497
    %1913 = vmatpush.msra.mxu0 %v1494
    %1914 = vmatpush.msra.mxu0 %v1491
    %1915 = vmatpush.msra.mxu0 %v1488
    %1916 = vmatpush.msra.mxu0 %v1485
    %1917 = vmatpush.msra.mxu0 %v1482
    %1918 = vmatpush.msra.mxu0 %v1479
    %1919 = vmatpush.msra.mxu0 %v1476
    %1920 = vmatpush.msra.mxu0 %v1473
    %1921 = vmatpush.msra.mxu0 %v1470
    %1922 = vmatpush.msra.mxu0 %v1467
    %1923 = vmatpush.msra.mxu0 %v1464
    %1924 = vmatpush.msra.mxu0 %v1461
    %1925 = vmatpush.msra.mxu0 %v1458
    %1926 = vmatpush.msra.mxu0 %v1455
    %1927 = vmatmul.f32.gmra.mxu0 %v1863
    %v1928 = vpop.f32.mrf.mxu0
    %v1929 = vadd.f32 0.0, %v1928
    %1930 = vmatmul.f32.gmra.mxu0 %v1866
    %v1931 = vpop.f32.mrf.mxu0
    %v1932 = vadd.f32 0.0, %v1931
    %1933 = vmatmul.f32.gmra.mxu0 %v1869
    %v1934 = vpop.f32.mrf.mxu0
    %v1935 = vadd.f32 0.0, %v1934
    %1936 = vmatmul.f32.gmra.mxu0 %v1872
    %v1937 = vpop.f32.mrf.mxu0
    %v1938 = vadd.f32 0.0, %v1937
    %1939 = vmatmul.f32.gmra.mxu0 %v1875
    %v1940 = vpop.f32.mrf.mxu0
    %v1941 = vadd.f32 0.0, %v1940
    %1942 = vmatmul.f32.gmra.mxu0 %v1878
    %v1943 = vpop.f32.mrf.mxu0
    %v1944 = vadd.f32 0.0, %v1943
    %1945 = vmatmul.f32.gmra.mxu0 %v1881
    %v1946 = vpop.f32.mrf.mxu0
    %v1947 = vadd.f32 0.0, %v1946
    %1948 = vmatmul.f32.gmra.mxu0 %v1884
    %v1949 = vpop.f32.mrf.mxu0
    %v1950 = vadd.f32 0.0, %v1949
    %1951 = vdwg.mxu0
    %1952 = vmatpush.msra.mxu0 %v1548
    %1953 = vmatpush.msra.mxu0 %v1545
    %1954 = vmatpush.msra.mxu0 %v1542
    %1955 = vmatpush.msra.mxu0 %v1539
    %1956 = vmatpush.msra.mxu0 %v1536
    %1957 = vmatpush.msra.mxu0 %v1533
    %1958 = vmatpush.msra.mxu0 %v1530
    %1959 = vmatpush.msra.mxu0 %v1527
    %1960 = vmatpush.msra.mxu0 %v1524
    %1961 = vmatpush.msra.mxu0 %v1521
    %1962 = vmatpush.msra.mxu0 %v1518
    %1963 = vmatpush.msra.mxu0 %v1515
    %1964 = vmatpush.msra.mxu0 %v1512
    %1965 = vmatpush.msra.mxu0 %v1509
    %1966 = vmatpush.msra.mxu0 %v1506
    %1967 = vmatpush.msra.mxu0 %v1503
    %1968 = vmatmul.f32.gmra.mxu0 %v1864
    %v1969 = vpop.f32.mrf.mxu0
    %v1970 = vadd.f32 %v1929, %v1969
    %1971 = vmatmul.f32.gmra.mxu0 %v1867
    %v1972 = vpop.f32.mrf.mxu0
    %v1973 = vadd.f32 %v1932, %v1972
    %1974 = vmatmul.f32.gmra.mxu0 %v1870
    %v1975 = vpop.f32.mrf.mxu0
    %v1976 = vadd.f32 %v1935, %v1975
    %1977 = vmatmul.f32.gmra.mxu0 %v1873
    %v1978 = vpop.f32.mrf.mxu0
    %v1979 = vadd.f32 %v1938, %v1978
    %1980 = vmatmul.f32.gmra.mxu0 %v1876
    %v1981 = vpop.f32.mrf.mxu0
    %v1982 = vadd.f32 %v1941, %v1981
    %1983 = vmatmul.f32.gmra.mxu0 %v1879
    %v1984 = vpop.f32.mrf.mxu0
    %v1985 = vadd.f32 %v1944, %v1984
    %1986 = vmatmul.f32.gmra.mxu0 %v1882
    %v1987 = vpop.f32.mrf.mxu0
    %v1988 = vadd.f32 %v1947, %v1987
    %1989 = vmatmul.f32.gmra.mxu0 %v1885
    %v1990 = vpop.f32.mrf.mxu0
    %v1991 = vadd.f32 %v1950, %v1990
    %1992 = vdwg.mxu0
    %1993 = vmatpush.msra.mxu0 0.0
    %1994 = vmatpush.msra.mxu0 0.0
    %1995 = vmatpush.msra.mxu0 0.0
    %1996 = vmatpush.msra.mxu0 0.0
    %1997 = vmatpush.msra.mxu0 0.0
    %1998 = vmatpush.msra.mxu0 0.0
    %1999 = vmatpush.msra.mxu0 0.0
    %2000 = vmatpush.msra.mxu0 0.0
    %2001 = vmatpush.msra.mxu0 0.0
    %2002 = vmatpush.msra.mxu0 0.0
    %2003 = vmatpush.msra.mxu0 0.0
    %2004 = vmatpush.msra.mxu0 0.0
    %2005 = vmatpush.msra.mxu0 %v1698
    %2006 = vmatpush.msra.mxu0 %v1557
    %2007 = vmatpush.msra.mxu0 %v1554
    %2008 = vmatpush.msra.mxu0 %v1551
    %2009 = vmatmul.f32.gmra.mxu0 %v1888
    %v2010 = vpop.f32.mrf.mxu0
    %v2011 = vadd.f32 %v1970, %v2010
    %2012 = vmatmul.f32.gmra.mxu0 %v1891
    %v2013 = vpop.f32.mrf.mxu0
    %v2014 = vadd.f32 %v1973, %v2013
    %2015 = vmatmul.f32.gmra.mxu0 %v1894
    %v2016 = vpop.f32.mrf.mxu0
    %v2017 = vadd.f32 %v1976, %v2016
    %2018 = vmatmul.f32.gmra.mxu0 %v1897
    %v2019 = vpop.f32.mrf.mxu0
    %v2020 = vadd.f32 %v1979, %v2019
    %2021 = vmatmul.f32.gmra.mxu0 %v1900
    %v2022 = vpop.f32.mrf.mxu0
    %v2023 = vadd.f32 %v1982, %v2022
    %2024 = vmatmul.f32.gmra.mxu0 %v1903
    %v2025 = vpop.f32.mrf.mxu0
    %v2026 = vadd.f32 %v1985, %v2025
    %2027 = vmatmul.f32.gmra.mxu0 %v1906
    %v2028 = vpop.f32.mrf.mxu0
    %v2029 = vadd.f32 %v1988, %v2028
    %2030 = vmatmul.f32.gmra.mxu0 %v1909
    %v2031 = vpop.f32.mrf.mxu0
    %v2032 = vadd.f32 %v1991, %v2031
    %2033 = vdwg.mxu0
    %v2034 = vmax.f32 %v1800, %v2011
    %v2035 = vmax.f32 %v1803, %v2014
    %v2036 = vmax.f32 %v1806, %v2017
    %v2037 = vmax.f32 %v1809, %v2020
    %v2038 = vmax.f32 %v1812, %v2023
    %v2039 = vmax.f32 %v1815, %v2026
    %v2040 = vmax.f32 %v1818, %v2029
    %v2041 = vmax.f32 %v1821, %v2032
    %v2042 = vadd.s32 %v1591, 1
    %v2043 = vadd.s32 %v1592, 1
    %v2044 = vadd.s32 %v1593, 1
    %v2045 = vadd.s32 %v1594, 1
    %v2046 = vadd.s32 %v1595, 1
    %v2047 = vadd.s32 %v1596, 1
    %v2048 = vadd.s32 %v1597, 1
    %v2049 = vadd.s32 %v1598, 1
    %v2050 = vmul.u32 %v2042, 18
    %v2051 = vmul.u32 %v2043, 18
    %v2052 = vmul.u32 %v2044, 18
    %v2053 = vmul.u32 %v2045, 18
    %v2054 = vmul.u32 %v2046, 18
    %v2055 = vmul.u32 %v2047, 18
    %v2056 = vmul.u32 %v2048, 18
    %v2057 = vmul.u32 %v2049, 18
    %v2058 = vadd.s32 %v2050, %v1607
    %v2059 = vadd.s32 %v2051, %v1608
    %v2060 = vadd.s32 %v2052, %v1609
    %v2061 = vadd.s32 %v2053, %v1610
    %v2062 = vadd.s32 %v2054, %v1611
    %v2063 = vadd.s32 %v2055, %v1612
    %v2064 = vadd.s32 %v2056, %v1613
    %v2065 = vadd.s32 %v2057, %v1614
    %vm2066 = vcmp.eq.s32.totalorder %v1572, %v2058
    %vm2067 = vcmp.eq.s32.totalorder %v1573, %v2058
    %vm2068 = vcmp.eq.s32.totalorder %v1574, %v2058
    %vm2069 = vcmp.eq.s32.totalorder %v1572, %v2059
    %vm2070 = vcmp.eq.s32.totalorder %v1573, %v2059
    %vm2071 = vcmp.eq.s32.totalorder %v1574, %v2059
    %vm2072 = vcmp.eq.s32.totalorder %v1572, %v2060
    %vm2073 = vcmp.eq.s32.totalorder %v1573, %v2060
    %vm2074 = vcmp.eq.s32.totalorder %v1574, %v2060
    %vm2075 = vcmp.eq.s32.totalorder %v1572, %v2061
    %vm2076 = vcmp.eq.s32.totalorder %v1573, %v2061
    %vm2077 = vcmp.eq.s32.totalorder %v1574, %v2061
    %vm2078 = vcmp.eq.s32.totalorder %v1572, %v2062
    %vm2079 = vcmp.eq.s32.totalorder %v1573, %v2062
    %vm2080 = vcmp.eq.s32.totalorder %v1574, %v2062
    %vm2081 = vcmp.eq.s32.totalorder %v1572, %v2063
    %vm2082 = vcmp.eq.s32.totalorder %v1573, %v2063
    %vm2083 = vcmp.eq.s32.totalorder %v1574, %v2063
    %vm2084 = vcmp.eq.s32.totalorder %v1572, %v2064
    %vm2085 = vcmp.eq.s32.totalorder %v1573, %v2064
    %vm2086 = vcmp.eq.s32.totalorder %v1574, %v2064
    %vm2087 = vcmp.eq.s32.totalorder %v1572, %v2065
    %vm2088 = vcmp.eq.s32.totalorder %v1573, %v2065
    %vm2089 = vcmp.eq.s32.totalorder %v1574, %v2065
    %v2090 = vsel %vm2066, 1.0, 0.0
    %v2091 = vsel %vm2067, 1.0, 0.0
    %v2092 = vsel %vm2068, 1.0, 0.0
    %v2093 = vsel %vm2069, 1.0, 0.0
    %v2094 = vsel %vm2070, 1.0, 0.0
    %v2095 = vsel %vm2071, 1.0, 0.0
    %v2096 = vsel %vm2072, 1.0, 0.0
    %v2097 = vsel %vm2073, 1.0, 0.0
    %v2098 = vsel %vm2074, 1.0, 0.0
    %v2099 = vsel %vm2075, 1.0, 0.0
    %v2100 = vsel %vm2076, 1.0, 0.0
    %v2101 = vsel %vm2077, 1.0, 0.0
    %v2102 = vsel %vm2078, 1.0, 0.0
    %v2103 = vsel %vm2079, 1.0, 0.0
    %v2104 = vsel %vm2080, 1.0, 0.0
    %v2105 = vsel %vm2081, 1.0, 0.0
    %v2106 = vsel %vm2082, 1.0, 0.0
    %v2107 = vsel %vm2083, 1.0, 0.0
    %v2108 = vsel %vm2084, 1.0, 0.0
    %v2109 = vsel %vm2085, 1.0, 0.0
    %v2110 = vsel %vm2086, 1.0, 0.0
    %v2111 = vsel %vm2087, 1.0, 0.0
    %v2112 = vsel %vm2088, 1.0, 0.0
    %v2113 = vsel %vm2089, 1.0, 0.0
    %v2115 = vsel %vm1671, %v2092, 0
    %v2118 = vsel %vm1671, %v2095, 0
    %v2121 = vsel %vm1671, %v2098, 0
    %v2124 = vsel %vm1671, %v2101, 0
    %v2127 = vsel %vm1671, %v2104, 0
    %v2130 = vsel %vm1671, %v2107, 0
    %v2133 = vsel %vm1671, %v2110, 0
    %v2136 = vsel %vm1671, %v2113, 0
    %2138 = vmatpush.msra.mxu0 %v1500
    %2139 = vmatpush.msra.mxu0 %v1497
    %2140 = vmatpush.msra.mxu0 %v1494
    %2141 = vmatpush.msra.mxu0 %v1491
    %2142 = vmatpush.msra.mxu0 %v1488
    %2143 = vmatpush.msra.mxu0 %v1485
    %2144 = vmatpush.msra.mxu0 %v1482
    %2145 = vmatpush.msra.mxu0 %v1479
    %2146 = vmatpush.msra.mxu0 %v1476
    %2147 = vmatpush.msra.mxu0 %v1473
    %2148 = vmatpush.msra.mxu0 %v1470
    %2149 = vmatpush.msra.mxu0 %v1467
    %2150 = vmatpush.msra.mxu0 %v1464
    %2151 = vmatpush.msra.mxu0 %v1461
    %2152 = vmatpush.msra.mxu0 %v1458
    %2153 = vmatpush.msra.mxu0 %v1455
    %2154 = vmatmul.f32.gmra.mxu0 %v2090
    %v2155 = vpop.f32.mrf.mxu0
    %v2156 = vadd.f32 0.0, %v2155
    %2157 = vmatmul.f32.gmra.mxu0 %v2093
    %v2158 = vpop.f32.mrf.mxu0
    %v2159 = vadd.f32 0.0, %v2158
    %2160 = vmatmul.f32.gmra.mxu0 %v2096
    %v2161 = vpop.f32.mrf.mxu0
    %v2162 = vadd.f32 0.0, %v2161
    %2163 = vmatmul.f32.gmra.mxu0 %v2099
    %v2164 = vpop.f32.mrf.mxu0
    %v2165 = vadd.f32 0.0, %v2164
    %2166 = vmatmul.f32.gmra.mxu0 %v2102
    %v2167 = vpop.f32.mrf.mxu0
    %v2168 = vadd.f32 0.0, %v2167
    %2169 = vmatmul.f32.gmra.mxu0 %v2105
    %v2170 = vpop.f32.mrf.mxu0
    %v2171 = vadd.f32 0.0, %v2170
    %2172 = vmatmul.f32.gmra.mxu0 %v2108
    %v2173 = vpop.f32.mrf.mxu0
    %v2174 = vadd.f32 0.0, %v2173
    %2175 = vmatmul.f32.gmra.mxu0 %v2111
    %v2176 = vpop.f32.mrf.mxu0
    %v2177 = vadd.f32 0.0, %v2176
    %2178 = vdwg.mxu0
    %2179 = vmatpush.msra.mxu0 %v1548
    %2180 = vmatpush.msra.mxu0 %v1545
    %2181 = vmatpush.msra.mxu0 %v1542
    %2182 = vmatpush.msra.mxu0 %v1539
    %2183 = vmatpush.msra.mxu0 %v1536
    %2184 = vmatpush.msra.mxu0 %v1533
    %2185 = vmatpush.msra.mxu0 %v1530
    %2186 = vmatpush.msra.mxu0 %v1527
    %2187 = vmatpush.msra.mxu0 %v1524
    %2188 = vmatpush.msra.mxu0 %v1521
    %2189 = vmatpush.msra.mxu0 %v1518
    %2190 = vmatpush.msra.mxu0 %v1515
    %2191 = vmatpush.msra.mxu0 %v1512
    %2192 = vmatpush.msra.mxu0 %v1509
    %2193 = vmatpush.msra.mxu0 %v1506
    %2194 = vmatpush.msra.mxu0 %v1503
    %2195 = vmatmul.f32.gmra.mxu0 %v2091
    %v2196 = vpop.f32.mrf.mxu0
    %v2197 = vadd.f32 %v2156, %v2196
    %2198 = vmatmul.f32.gmra.mxu0 %v2094
    %v2199 = vpop.f32.mrf.mxu0
    %v2200 = vadd.f32 %v2159, %v2199
    %2201 = vmatmul.f32.gmra.mxu0 %v2097
    %v2202 = vpop.f32.mrf.mxu0
    %v2203 = vadd.f32 %v2162, %v2202
    %2204 = vmatmul.f32.gmra.mxu0 %v2100
    %v2205 = vpop.f32.mrf.mxu0
    %v2206 = vadd.f32 %v2165, %v2205
    %2207 = vmatmul.f32.gmra.mxu0 %v2103
    %v2208 = vpop.f32.mrf.mxu0
    %v2209 = vadd.f32 %v2168, %v2208
    %2210 = vmatmul.f32.gmra.mxu0 %v2106
    %v2211 = vpop.f32.mrf.mxu0
    %v2212 = vadd.f32 %v2171, %v2211
    %2213 = vmatmul.f32.gmra.mxu0 %v2109
    %v2214 = vpop.f32.mrf.mxu0
    %v2215 = vadd.f32 %v2174, %v2214
    %2216 = vmatmul.f32.gmra.mxu0 %v2112
    %v2217 = vpop.f32.mrf.mxu0
    %v2218 = vadd.f32 %v2177, %v2217
    %2219 = vdwg.mxu0
    %2220 = vmatpush.msra.mxu0 0.0
    %2221 = vmatpush.msra.mxu0 0.0
    %2222 = vmatpush.msra.mxu0 0.0
    %2223 = vmatpush.msra.mxu0 0.0
    %2224 = vmatpush.msra.mxu0 0.0
    %2225 = vmatpush.msra.mxu0 0.0
    %2226 = vmatpush.msra.mxu0 0.0
    %2227 = vmatpush.msra.mxu0 0.0
    %2228 = vmatpush.msra.mxu0 0.0
    %2229 = vmatpush.msra.mxu0 0.0
    %2230 = vmatpush.msra.mxu0 0.0
    %2231 = vmatpush.msra.mxu0 0.0
    %2232 = vmatpush.msra.mxu0 %v1698
    %2233 = vmatpush.msra.mxu0 %v1557
    %2234 = vmatpush.msra.mxu0 %v1554
    %2235 = vmatpush.msra.mxu0 %v1551
    %2236 = vmatmul.f32.gmra.mxu0 %v2115
    %v2237 = vpop.f32.mrf.mxu0
    %v2238 = vadd.f32 %v2197, %v2237
    %2239 = vmatmul.f32.gmra.mxu0 %v2118
    %v2240 = vpop.f32.mrf.mxu0
    %v2241 = vadd.f32 %v2200, %v2240
    %2242 = vmatmul.f32.gmra.mxu0 %v2121
    %v2243 = vpop.f32.mrf.mxu0
    %v2244 = vadd.f32 %v2203, %v2243
    %2245 = vmatmul.f32.gmra.mxu0 %v2124
    %v2246 = vpop.f32.mrf.mxu0
    %v2247 = vadd.f32 %v2206, %v2246
    %2248 = vmatmul.f32.gmra.mxu0 %v2127
    %v2249 = vpop.f32.mrf.mxu0
    %v2250 = vadd.f32 %v2209, %v2249
    %2251 = vmatmul.f32.gmra.mxu0 %v2130
    %v2252 = vpop.f32.mrf.mxu0
    %v2253 = vadd.f32 %v2212, %v2252
    %2254 = vmatmul.f32.gmra.mxu0 %v2133
    %v2255 = vpop.f32.mrf.mxu0
    %v2256 = vadd.f32 %v2215, %v2255
    %2257 = vmatmul.f32.gmra.mxu0 %v2136
    %v2258 = vpop.f32.mrf.mxu0
    %v2259 = vadd.f32 %v2218, %v2258
    %2260 = vdwg.mxu0
    %v2261 = vmax.f32 %v2034, %v2238
    %v2262 = vmax.f32 %v2035, %v2241
    %v2263 = vmax.f32 %v2036, %v2244
    %v2264 = vmax.f32 %v2037, %v2247
    %v2265 = vmax.f32 %v2038, %v2250
    %v2266 = vmax.f32 %v2039, %v2253
    %v2267 = vmax.f32 %v2040, %v2256
    %v2268 = vmax.f32 %v2041, %v2259
    %v2269 = vadd.s32 %v2050, %v1823
    %v2270 = vadd.s32 %v2051, %v1824
    %v2271 = vadd.s32 %v2052, %v1825
    %v2272 = vadd.s32 %v2053, %v1826
    %v2273 = vadd.s32 %v2054, %v1827
    %v2274 = vadd.s32 %v2055, %v1828
    %v2275 = vadd.s32 %v2056, %v1829
    %v2276 = vadd.s32 %v2057, %v1830
    %vm2277 = vcmp.eq.s32.totalorder %v1572, %v2269
    %vm2278 = vcmp.eq.s32.totalorder %v1573, %v2269
    %vm2279 = vcmp.eq.s32.totalorder %v1574, %v2269
    %vm2280 = vcmp.eq.s32.totalorder %v1572, %v2270
    %vm2281 = vcmp.eq.s32.totalorder %v1573, %v2270
    %vm2282 = vcmp.eq.s32.totalorder %v1574, %v2270
    %vm2283 = vcmp.eq.s32.totalorder %v1572, %v2271
    %vm2284 = vcmp.eq.s32.totalorder %v1573, %v2271
    %vm2285 = vcmp.eq.s32.totalorder %v1574, %v2271
    %vm2286 = vcmp.eq.s32.totalorder %v1572, %v2272
    %vm2287 = vcmp.eq.s32.totalorder %v1573, %v2272
    %vm2288 = vcmp.eq.s32.totalorder %v1574, %v2272
    %vm2289 = vcmp.eq.s32.totalorder %v1572, %v2273
    %vm2290 = vcmp.eq.s32.totalorder %v1573, %v2273
    %vm2291 = vcmp.eq.s32.totalorder %v1574, %v2273
    %vm2292 = vcmp.eq.s32.totalorder %v1572, %v2274
    %vm2293 = vcmp.eq.s32.totalorder %v1573, %v2274
    %vm2294 = vcmp.eq.s32.totalorder %v1574, %v2274
    %vm2295 = vcmp.eq.s32.totalorder %v1572, %v2275
    %vm2296 = vcmp.eq.s32.totalorder %v1573, %v2275
    %vm2297 = vcmp.eq.s32.totalorder %v1574, %v2275
    %vm2298 = vcmp.eq.s32.totalorder %v1572, %v2276
    %vm2299 = vcmp.eq.s32.totalorder %v1573, %v2276
    %vm2300 = vcmp.eq.s32.totalorder %v1574, %v2276
    %v2301 = vsel %vm2277, 1.0, 0.0
    %v2302 = vsel %vm2278, 1.0, 0.0
    %v2303 = vsel %vm2279, 1.0, 0.0
    %v2304 = vsel %vm2280, 1.0, 0.0
    %v2305 = vsel %vm2281, 1.0, 0.0
    %v2306 = vsel %vm2282, 1.0, 0.0
    %v2307 = vsel %vm2283, 1.0, 0.0
    %v2308 = vsel %vm2284, 1.0, 0.0
    %v2309 = vsel %vm2285, 1.0, 0.0
    %v2310 = vsel %vm2286, 1.0, 0.0
    %v2311 = vsel %vm2287, 1.0, 0.0
    %v2312 = vsel %vm2288, 1.0, 0.0
    %v2313 = vsel %vm2289, 1.0, 0.0
    %v2314 = vsel %vm2290, 1.0, 0.0
    %v2315 = vsel %vm2291, 1.0, 0.0
    %v2316 = vsel %vm2292, 1.0, 0.0
    %v2317 = vsel %vm2293, 1.0, 0.0
    %v2318 = vsel %vm2294, 1.0, 0.0
    %v2319 = vsel %vm2295, 1.0, 0.0
    %v2320 = vsel %vm2296, 1.0, 0.0
    %v2321 = vsel %vm2297, 1.0, 0.0
    %v2322 = vsel %vm2298, 1.0, 0.0
    %v2323 = vsel %vm2299, 1.0, 0.0
    %v2324 = vsel %vm2300, 1.0, 0.0
    %v2326 = vsel %vm1671, %v2303, 0
    %v2329 = vsel %vm1671, %v2306, 0
    %v2332 = vsel %vm1671, %v2309, 0
    %v2335 = vsel %vm1671, %v2312, 0
    %v2338 = vsel %vm1671, %v2315, 0
    %v2341 = vsel %vm1671, %v2318, 0
    %v2344 = vsel %vm1671, %v2321, 0
    %v2347 = vsel %vm1671, %v2324, 0
    %2349 = vmatpush.msra.mxu0 %v1500
    %2350 = vmatpush.msra.mxu0 %v1497
    %2351 = vmatpush.msra.mxu0 %v1494
    %2352 = vmatpush.msra.mxu0 %v1491
    %2353 = vmatpush.msra.mxu0 %v1488
    %2354 = vmatpush.msra.mxu0 %v1485
    %2355 = vmatpush.msra.mxu0 %v1482
    %2356 = vmatpush.msra.mxu0 %v1479
    %2357 = vmatpush.msra.mxu0 %v1476
    %2358 = vmatpush.msra.mxu0 %v1473
    %2359 = vmatpush.msra.mxu0 %v1470
    %2360 = vmatpush.msra.mxu0 %v1467
    %2361 = vmatpush.msra.mxu0 %v1464
    %2362 = vmatpush.msra.mxu0 %v1461
    %2363 = vmatpush.msra.mxu0 %v1458
    %2364 = vmatpush.msra.mxu0 %v1455
    %2365 = vmatmul.f32.gmra.mxu0 %v2301
    %v2366 = vpop.f32.mrf.mxu0
    %v2367 = vadd.f32 0.0, %v2366
    %2368 = vmatmul.f32.gmra.mxu0 %v2304
    %v2369 = vpop.f32.mrf.mxu0
    %v2370 = vadd.f32 0.0, %v2369
    %2371 = vmatmul.f32.gmra.mxu0 %v2307
    %v2372 = vpop.f32.mrf.mxu0
    %v2373 = vadd.f32 0.0, %v2372
    %2374 = vmatmul.f32.gmra.mxu0 %v2310
    %v2375 = vpop.f32.mrf.mxu0
    %v2376 = vadd.f32 0.0, %v2375
    %2377 = vmatmul.f32.gmra.mxu0 %v2313
    %v2378 = vpop.f32.mrf.mxu0
    %v2379 = vadd.f32 0.0, %v2378
    %2380 = vmatmul.f32.gmra.mxu0 %v2316
    %v2381 = vpop.f32.mrf.mxu0
    %v2382 = vadd.f32 0.0, %v2381
    %2383 = vmatmul.f32.gmra.mxu0 %v2319
    %v2384 = vpop.f32.mrf.mxu0
    %v2385 = vadd.f32 0.0, %v2384
    %2386 = vmatmul.f32.gmra.mxu0 %v2322
    %v2387 = vpop.f32.mrf.mxu0
    %v2388 = vadd.f32 0.0, %v2387
    %2389 = vdwg.mxu0
    %2390 = vmatpush.msra.mxu0 %v1548
    %2391 = vmatpush.msra.mxu0 %v1545
    %2392 = vmatpush.msra.mxu0 %v1542
    %2393 = vmatpush.msra.mxu0 %v1539
    %2394 = vmatpush.msra.mxu0 %v1536
    %2395 = vmatpush.msra.mxu0 %v1533
    %2396 = vmatpush.msra.mxu0 %v1530
    %2397 = vmatpush.msra.mxu0 %v1527
    %2398 = vmatpush.msra.mxu0 %v1524
    %2399 = vmatpush.msra.mxu0 %v1521
    %2400 = vmatpush.msra.mxu0 %v1518
    %2401 = vmatpush.msra.mxu0 %v1515
    %2402 = vmatpush.msra.mxu0 %v1512
    %2403 = vmatpush.msra.mxu0 %v1509
    %2404 = vmatpush.msra.mxu0 %v1506
    %2405 = vmatpush.msra.mxu0 %v1503
    %2406 = vmatmul.f32.gmra.mxu0 %v2302
    %v2407 = vpop.f32.mrf.mxu0
    %v2408 = vadd.f32 %v2367, %v2407
    %2409 = vmatmul.f32.gmra.mxu0 %v2305
    %v2410 = vpop.f32.mrf.mxu0
    %v2411 = vadd.f32 %v2370, %v2410
    %2412 = vmatmul.f32.gmra.mxu0 %v2308
    %v2413 = vpop.f32.mrf.mxu0
    %v2414 = vadd.f32 %v2373, %v2413
    %2415 = vmatmul.f32.gmra.mxu0 %v2311
    %v2416 = vpop.f32.mrf.mxu0
    %v2417 = vadd.f32 %v2376, %v2416
    %2418 = vmatmul.f32.gmra.mxu0 %v2314
    %v2419 = vpop.f32.mrf.mxu0
    %v2420 = vadd.f32 %v2379, %v2419
    %2421 = vmatmul.f32.gmra.mxu0 %v2317
    %v2422 = vpop.f32.mrf.mxu0
    %v2423 = vadd.f32 %v2382, %v2422
    %2424 = vmatmul.f32.gmra.mxu0 %v2320
    %v2425 = vpop.f32.mrf.mxu0
    %v2426 = vadd.f32 %v2385, %v2425
    %2427 = vmatmul.f32.gmra.mxu0 %v2323
    %v2428 = vpop.f32.mrf.mxu0
    %v2429 = vadd.f32 %v2388, %v2428
    %2430 = vdwg.mxu0
    %2431 = vmatpush.msra.mxu0 0.0
    %2432 = vmatpush.msra.mxu0 0.0
    %2433 = vmatpush.msra.mxu0 0.0
    %2434 = vmatpush.msra.mxu0 0.0
    %2435 = vmatpush.msra.mxu0 0.0
    %2436 = vmatpush.msra.mxu0 0.0
    %2437 = vmatpush.msra.mxu0 0.0
    %2438 = vmatpush.msra.mxu0 0.0
    %2439 = vmatpush.msra.mxu0 0.0
    %2440 = vmatpush.msra.mxu0 0.0
    %2441 = vmatpush.msra.mxu0 0.0
    %2442 = vmatpush.msra.mxu0 0.0
    %2443 = vmatpush.msra.mxu0 %v1698
    %2444 = vmatpush.msra.mxu0 %v1557
    %2445 = vmatpush.msra.mxu0 %v1554
    %2446 = vmatpush.msra.mxu0 %v1551
    %2447 = vmatmul.f32.gmra.mxu0 %v2326
    %v2448 = vpop.f32.mrf.mxu0
    %v2449 = vadd.f32 %v2408, %v2448
    %2450 = vmatmul.f32.gmra.mxu0 %v2329
    %v2451 = vpop.f32.mrf.mxu0
    %v2452 = vadd.f32 %v2411, %v2451
    %2453 = vmatmul.f32.gmra.mxu0 %v2332
    %v2454 = vpop.f32.mrf.mxu0
    %v2455 = vadd.f32 %v2414, %v2454
    %2456 = vmatmul.f32.gmra.mxu0 %v2335
    %v2457 = vpop.f32.mrf.mxu0
    %v2458 = vadd.f32 %v2417, %v2457
    %2459 = vmatmul.f32.gmra.mxu0 %v2338
    %v2460 = vpop.f32.mrf.mxu0
    %v2461 = vadd.f32 %v2420, %v2460
    %2462 = vmatmul.f32.gmra.mxu0 %v2341
    %v2463 = vpop.f32.mrf.mxu0
    %v2464 = vadd.f32 %v2423, %v2463
    %2465 = vmatmul.f32.gmra.mxu0 %v2344
    %v2466 = vpop.f32.mrf.mxu0
    %v2467 = vadd.f32 %v2426, %v2466
    %2468 = vmatmul.f32.gmra.mxu0 %v2347
    %v2469 = vpop.f32.mrf.mxu0
    %v2470 = vadd.f32 %v2429, %v2469
    %2471 = vdwg.mxu0
    %v2472 = vmax.f32 %v2261, %v2449
    %v2473 = vmax.f32 %v2262, %v2452
    %v2474 = vmax.f32 %v2263, %v2455
    %v2475 = vmax.f32 %v2264, %v2458
    %v2476 = vmax.f32 %v2265, %v2461
    %v2477 = vmax.f32 %v2266, %v2464
    %v2478 = vmax.f32 %v2267, %v2467
    %v2479 = vmax.f32 %v2268, %v2470
    %v2480 = vld [vmem:[%s2] sm:$0x1]
    %v2482 = vperm.slane %v2480, 0
    %v2484 = vadd.f32 %v2472, %v2482
    %v2485 = vadd.f32 %v2473, %v2482
    %v2486 = vadd.f32 %v2474, %v2482
    %v2487 = vadd.f32 %v2475, %v2482
    %v2488 = vadd.f32 %v2476, %v2482
    %v2489 = vadd.f32 %v2477, %v2482
    %v2490 = vadd.f32 %v2478, %v2482
    %v2491 = vadd.f32 %v2479, %v2482
    %v2492 = vmax.f32 %v2484, 0.0
    %v2493 = vmax.f32 %v2485, 0.0
    %v2494 = vmax.f32 %v2486, 0.0
    %v2495 = vmax.f32 %v2487, 0.0
    %v2496 = vmax.f32 %v2488, 0.0
    %v2497 = vmax.f32 %v2489, 0.0
    %v2498 = vmax.f32 %v2490, 0.0
    %v2499 = vmax.f32 %v2491, 0.0
    %v2500 = vadd.s32 %v1563, 64
    %v2501 = vadd.s32 %v1563, 72
    %v2502 = vadd.s32 %v1563, 80
    %v2503 = vadd.s32 %v1563, 88
    %v2504 = vadd.s32 %v1563, 96
    %v2505 = vshra.s32 %v1572, 3
    %v2506 = vand.u32 %v1572, 7
    %v2507 = vadd.s32 %v2505, 1
    %v2508 = vmul.u32 %v2507, 10
    %v2509 = vadd.s32 %v2506, 1
    %v2510 = vadd.s32 %v2508, %v2509
    %vm2511 = vcmp.eq.s32.totalorder %v1563, %v2510
    %vm2512 = vcmp.eq.s32.totalorder %v1564, %v2510
    %vm2513 = vcmp.eq.s32.totalorder %v1565, %v2510
    %vm2514 = vcmp.eq.s32.totalorder %v1566, %v2510
    %vm2515 = vcmp.eq.s32.totalorder %v1567, %v2510
    %vm2516 = vcmp.eq.s32.totalorder %v1568, %v2510
    %vm2517 = vcmp.eq.s32.totalorder %v1569, %v2510
    %vm2518 = vcmp.eq.s32.totalorder %v1570, %v2510
    %vm2519 = vcmp.eq.s32.totalorder %v2500, %v2510
    %vm2520 = vcmp.eq.s32.totalorder %v2501, %v2510
    %vm2521 = vcmp.eq.s32.totalorder %v2502, %v2510
    %vm2522 = vcmp.eq.s32.totalorder %v2503, %v2510
    %vm2523 = vcmp.eq.s32.totalorder %v2504, %v2510
    %v2524 = vsel %vm2511, 1.0, 0.0
    %v2525 = vsel %vm2512, 1.0, 0.0
    %v2526 = vsel %vm2513, 1.0, 0.0
    %v2527 = vsel %vm2514, 1.0, 0.0
    %v2528 = vsel %vm2515, 1.0, 0.0
    %v2529 = vsel %vm2516, 1.0, 0.0
    %v2530 = vsel %vm2517, 1.0, 0.0
    %v2531 = vsel %vm2518, 1.0, 0.0
    %v2532 = vsel %vm2519, 1.0, 0.0
    %v2533 = vsel %vm2520, 1.0, 0.0
    %v2534 = vsel %vm2521, 1.0, 0.0
    %v2535 = vsel %vm2522, 1.0, 0.0
    %v2536 = vsel %vm2523, 1.0, 0.0
    %vm2537 = vcmask 523264
    %v2539 = vsel %vm2537, %v2524, 0
    %v2542 = vsel %vm2537, %v2525, 0
    %v2545 = vsel %vm2537, %v2526, 0
    %v2548 = vsel %vm2537, %v2527, 0
    %v2551 = vsel %vm2537, %v2528, 0
    %v2554 = vsel %vm2537, %v2529, 0
    %v2557 = vsel %vm2537, %v2530, 0
    %v2560 = vsel %vm2537, %v2531, 0
    %v2563 = vsel %vm2537, %v2532, 0
    %v2566 = vsel %vm2537, %v2533, 0
    %v2569 = vsel %vm2537, %v2534, 0
    %v2572 = vsel %vm2537, %v2535, 0
    %v2575 = vsel %vm2537, %v2536, 0
    %2577 = vmatpush.msra.mxu0 0.0
    %2578 = vmatpush.msra.mxu0 0.0
    %2579 = vmatpush.msra.mxu0 0.0
    %2580 = vmatpush.msra.mxu0 0.0
    %2581 = vmatpush.msra.mxu0 0.0
    %2582 = vmatpush.msra.mxu0 0.0
    %2583 = vmatpush.msra.mxu0 0.0
    %2584 = vmatpush.msra.mxu0 0.0
    %2585 = vmatpush.msra.mxu0 %v2499
    %2586 = vmatpush.msra.mxu0 %v2498
    %2587 = vmatpush.msra.mxu0 %v2497
    %2588 = vmatpush.msra.mxu0 %v2496
    %2589 = vmatpush.msra.mxu0 %v2495
    %2590 = vmatpush.msra.mxu0 %v2494
    %2591 = vmatpush.msra.mxu0 %v2493
    %2592 = vmatpush.msra.mxu0 %v2492
    %2593 = vmatmul.f32.gmra.mxu0 %v2539
    %v2594 = vpop.f32.mrf.mxu0
    %v2595 = vadd.f32 0.0, %v2594
    %2596 = vmatmul.f32.gmra.mxu0 %v2542
    %v2597 = vpop.f32.mrf.mxu0
    %v2598 = vadd.f32 0.0, %v2597
    %2599 = vmatmul.f32.gmra.mxu0 %v2545
    %v2600 = vpop.f32.mrf.mxu0
    %v2601 = vadd.f32 0.0, %v2600
    %2602 = vmatmul.f32.gmra.mxu0 %v2548
    %v2603 = vpop.f32.mrf.mxu0
    %v2604 = vadd.f32 0.0, %v2603
    %2605 = vmatmul.f32.gmra.mxu0 %v2551
    %v2606 = vpop.f32.mrf.mxu0
    %v2607 = vadd.f32 0.0, %v2606
    %2608 = vmatmul.f32.gmra.mxu0 %v2554
    %v2609 = vpop.f32.mrf.mxu0
    %v2610 = vadd.f32 0.0, %v2609
    %2611 = vmatmul.f32.gmra.mxu0 %v2557
    %v2612 = vpop.f32.mrf.mxu0
    %v2613 = vadd.f32 0.0, %v2612
    %2614 = vmatmul.f32.gmra.mxu0 %v2560
    %v2615 = vpop.f32.mrf.mxu0
    %v2616 = vadd.f32 0.0, %v2615
    %2617 = vmatmul.f32.gmra.mxu0 %v2563
    %v2618 = vpop.f32.mrf.mxu0
    %v2619 = vadd.f32 0.0, %v2618
    %2620 = vmatmul.f32.gmra.mxu0 %v2566
    %v2621 = vpop.f32.mrf.mxu0
    %v2622 = vadd.f32 0.0, %v2621
    %2623 = vmatmul.f32.gmra.mxu0 %v2569
    %v2624 = vpop.f32.mrf.mxu0
    %v2625 = vadd.f32 0.0, %v2624
    %2626 = vmatmul.f32.gmra.mxu0 %v2572
    %v2627 = vpop.f32.mrf.mxu0
    %v2628 = vadd.f32 0.0, %v2627
    %2629 = vmatmul.f32.gmra.mxu0 %v2575
    %v2630 = vpop.f32.mrf.mxu0
    %v2631 = vadd.f32 0.0, %v2630
    %2632 = vdwg.mxu0
    %2633 = vst [vmem:[#allocation2] sm:$0xff] %v2595
    %2634 = vst [vmem:[#allocation2 + $0x8] sm:$0xff] %v2598
    %2635 = vst [vmem:[#allocation2 + $0x10] sm:$0xff] %v2601
    %2636 = vst [vmem:[#allocation2 + $0x18] sm:$0xff] %v2604
    %2637 = vst [vmem:[#allocation2 + $0x20] sm:$0xff] %v2607
    %2638 = vst [vmem:[#allocation2 + $0x28] sm:$0xff] %v2610
    %2639 = vst [vmem:[#allocation2 + $0x30] sm:$0xff] %v2613
    %2640 = vst [vmem:[#allocation2 + $0x38] sm:$0xff] %v2616
    %2641 = vst [vmem:[#allocation2 + $0x40] sm:$0xff] %v2619
    %2642 = vst [vmem:[#allocation2 + $0x48] sm:$0xff] %v2622
    %2643 = vst [vmem:[#allocation2 + $0x50] sm:$0xff] %v2625
    %2644 = vst [vmem:[#allocation2 + $0x58] sm:$0xff] %v2628
    %2645 = vst [vmem:[#allocation2 + $0x60] sm:$0xf] %v2631
    %v2646 = vld [vmem:[#allocation2] sm:$0xff]
    %v2647 = vld [vmem:[#allocation2 + $0x8] sm:$0xff]
    %v2648 = vld [vmem:[#allocation2 + $0x10] sm:$0xff]
    %v2649 = vld [vmem:[#allocation2 + $0x18] sm:$0xff]
    %v2650 = vld [vmem:[#allocation2 + $0x20] sm:$0xff]
    %v2651 = vld [vmem:[#allocation2 + $0x28] sm:$0xff]
    %v2652 = vld [vmem:[#allocation2 + $0x30] sm:$0xff]
    %v2653 = vld [vmem:[#allocation2 + $0x38] sm:$0xff]
    %v2654 = vld [vmem:[#allocation2 + $0x40] sm:$0xff]
    %v2655 = vld [vmem:[#allocation2 + $0x48] sm:$0x3f]
    %v2656 = vld [vmem:[#allocation2 + $0x1] sm:$0xff]
    %v2657 = vld [vmem:[#allocation2 + $0x9] sm:$0xff]
    %v2658 = vld [vmem:[#allocation2 + $0x11] sm:$0xff]
    %v2659 = vld [vmem:[#allocation2 + $0x19] sm:$0xff]
    %v2660 = vld [vmem:[#allocation2 + $0x21] sm:$0xff]
    %v2661 = vld [vmem:[#allocation2 + $0x29] sm:$0xff]
    %v2662 = vld [vmem:[#allocation2 + $0x31] sm:$0xff]
    %v2663 = vld [vmem:[#allocation2 + $0x39] sm:$0xff]
    %v2664 = vld [vmem:[#allocation2 + $0x41] sm:$0xff]
    %v2665 = vld [vmem:[#allocation2 + $0x49] sm:$0x3f]
    %v2666 = vld [vmem:[#allocation2 + $0x2] sm:$0xff]
    %v2667 = vld [vmem:[#allocation2 + $0xa] sm:$0xff]
    %v2668 = vld [vmem:[#allocation2 + $0x12] sm:$0xff]
    %v2669 = vld [vmem:[#allocation2 + $0x1a] sm:$0xff]
    %v2670 = vld [vmem:[#allocation2 + $0x22] sm:$0xff]
    %v2671 = vld [vmem:[#allocation2 + $0x2a] sm:$0xff]
    %v2672 = vld [vmem:[#allocation2 + $0x32] sm:$0xff]
    %v2673 = vld [vmem:[#allocation2 + $0x3a] sm:$0xff]
    %v2674 = vld [vmem:[#allocation2 + $0x42] sm:$0xff]
    %v2675 = vld [vmem:[#allocation2 + $0x4a] sm:$0x3f]
    %v2676 = vld [vmem:[#allocation2 + $0x4a] sm:$0xff]
    %v2677 = vld [vmem:[#allocation2 + $0x52] sm:$0x3f]
    %v2678 = vld [vmem:[#allocation2 + $0xb] sm:$0xff]
    %v2679 = vld [vmem:[#allocation2 + $0x13] sm:$0xff]
    %v2680 = vld [vmem:[#allocation2 + $0x1b] sm:$0xff]
    %v2681 = vld [vmem:[#allocation2 + $0x23] sm:$0xff]
    %v2682 = vld [vmem:[#allocation2 + $0x2b] sm:$0xff]
    %v2683 = vld [vmem:[#allocation2 + $0x33] sm:$0xff]
    %v2684 = vld [vmem:[#allocation2 + $0x3b] sm:$0xff]
    %v2685 = vld [vmem:[#allocation2 + $0x43] sm:$0xff]
    %v2686 = vld [vmem:[#allocation2 + $0x4b] sm:$0xff]
    %v2687 = vld [vmem:[#allocation2 + $0x53] sm:$0x3f]
    %v2688 = vld [vmem:[#allocation2 + $0xc] sm:$0xff]
    %v2689 = vld [vmem:[#allocation2 + $0x14] sm:$0xff]
    %v2690 = vld [vmem:[#allocation2 + $0x1c] sm:$0xff]
    %v2691 = vld [vmem:[#allocation2 + $0x24] sm:$0xff]
    %v2692 = vld [vmem:[#allocation2 + $0x2c] sm:$0xff]
    %v2693 = vld [vmem:[#allocation2 + $0x34] sm:$0xff]
    %v2694 = vld [vmem:[#allocation2 + $0x3c] sm:$0xff]
    %v2695 = vld [vmem:[#allocation2 + $0x44] sm:$0xff]
    %v2696 = vld [vmem:[#allocation2 + $0x4c] sm:$0xff]
    %v2697 = vld [vmem:[#allocation2 + $0x54] sm:$0x3f]
    %v2698 = vld [vmem:[#allocation2 + $0x54] sm:$0xff]
    %v2699 = vld [vmem:[#allocation2 + $0x5c] sm:$0x3f]
    %v2700 = vld [vmem:[#allocation2 + $0x15] sm:$0xff]
    %v2701 = vld [vmem:[#allocation2 + $0x1d] sm:$0xff]
    %v2702 = vld [vmem:[#allocation2 + $0x25] sm:$0xff]
    %v2703 = vld [vmem:[#allocation2 + $0x2d] sm:$0xff]
    %v2704 = vld [vmem:[#allocation2 + $0x35] sm:$0xff]
    %v2705 = vld [vmem:[#allocation2 + $0x3d] sm:$0xff]
    %v2706 = vld [vmem:[#allocation2 + $0x45] sm:$0xff]
    %v2707 = vld [vmem:[#allocation2 + $0x4d] sm:$0xff]
    %v2708 = vld [vmem:[#allocation2 + $0x55] sm:$0xff]
    %v2709 = vld [vmem:[#allocation2 + $0x5d] sm:$0x3f]
    %v2710 = vld [vmem:[#allocation2 + $0x16] sm:$0xff]
    %v2711 = vld [vmem:[#allocation2 + $0x1e] sm:$0xff]
    %v2712 = vld [vmem:[#allocation2 + $0x26] sm:$0xff]
    %v2713 = vld [vmem:[#allocation2 + $0x2e] sm:$0xff]
    %v2714 = vld [vmem:[#allocation2 + $0x36] sm:$0xff]
    %v2715 = vld [vmem:[#allocation2 + $0x3e] sm:$0xff]
    %v2716 = vld [vmem:[#allocation2 + $0x46] sm:$0xff]
    %v2717 = vld [vmem:[#allocation2 + $0x4e] sm:$0xff]
    %v2718 = vld [vmem:[#allocation2 + $0x56] sm:$0xff]
    %v2719 = vld [vmem:[#allocation2 + $0x5e] sm:$0x3f]
    %v2720 = vld [vmem:[%s3] sm:$0xff]
    %v2721 = vld [vmem:[%s3 + $0x8] sm:$0xff]
    %v2722 = vld [vmem:[%s3 + $0x10] sm:$0xff]
    %v2723 = vld [vmem:[%s3 + $0x18] sm:$0xff]
    %v2724 = vld [vmem:[%s3 + $0x20] sm:$0xff]
    %v2725 = vld [vmem:[%s3 + $0x28] sm:$0xff]
    %v2726 = vld [vmem:[%s3 + $0x30] sm:$0xff]
    %v2727 = vld [vmem:[%s3 + $0x38] sm:$0xff]
    %v2728 = vld [vmem:[%s3 + $0x40] sm:$0xff]
    %v2729 = vld [vmem:[%s3 + $0x48] sm:$0xff]
    %v2730 = vld [vmem:[%s3 + $0x50] sm:$0xff]
    %v2731 = vld [vmem:[%s3 + $0x58] sm:$0xff]
    %v2732 = vld [vmem:[%s3 + $0x60] sm:$0xff]
    %v2733 = vld [vmem:[%s3 + $0x68] sm:$0xff]
    %v2734 = vld [vmem:[%s3 + $0x70] sm:$0xff]
    %v2735 = vld [vmem:[%s3 + $0x78] sm:$0xff]
    %v2736 = vld [vmem:[%s3 + $0x80] sm:$0xff]
    %v2737 = vld [vmem:[%s3 + $0x88] sm:$0xff]
    %v2738 = vld [vmem:[%s3 + $0x90] sm:$0xff]
    %v2739 = vld [vmem:[%s3 + $0x98] sm:$0xff]
    %v2740 = vld [vmem:[%s3 + $0xa0] sm:$0xff]
    %v2741 = vld [vmem:[%s3 + $0xa8] sm:$0xff]
    %v2742 = vld [vmem:[%s3 + $0xb0] sm:$0xff]
    %v2743 = vld [vmem:[%s3 + $0xb8] sm:$0xff]
    %v2744 = vld [vmem:[%s3 + $0xc0] sm:$0xff]
    %v2745 = vld [vmem:[%s3 + $0xc8] sm:$0xff]
    %v2746 = vld [vmem:[%s3 + $0xd0] sm:$0xff]
    %v2747 = vld [vmem:[%s3 + $0xd8] sm:$0xff]
    %v2748 = vld [vmem:[%s3 + $0xe0] sm:$0xff]
    %v2749 = vld [vmem:[%s3 + $0xe8] sm:$0xff]
    %v2750 = vld [vmem:[%s3 + $0xf0] sm:$0xff]
    %v2751 = vld [vmem:[%s3 + $0xf8] sm:$0xff]
    %v2752 = vld [vmem:[%s3 + $0x100] sm:$0xff]
    %v2753 = vld [vmem:[%s3 + $0x108] sm:$0xff]
    %v2754 = vld [vmem:[%s3 + $0x110] sm:$0xff]
    %v2755 = vld [vmem:[%s3 + $0x118] sm:$0xff]
    %v2756 = vld [vmem:[%s3 + $0x120] sm:$0xff]
    %v2757 = vld [vmem:[%s3 + $0x128] sm:$0xff]
    %v2758 = vld [vmem:[%s3 + $0x130] sm:$0xff]
    %v2759 = vld [vmem:[%s3 + $0x138] sm:$0xff]
    %v2760 = vld [vmem:[%s3 + $0x140] sm:$0xff]
    %v2761 = vld [vmem:[%s3 + $0x148] sm:$0xff]
    %v2762 = vld [vmem:[%s3 + $0x150] sm:$0xff]
    %v2763 = vld [vmem:[%s3 + $0x158] sm:$0xff]
    %v2764 = vld [vmem:[%s3 + $0x160] sm:$0xff]
    %v2765 = vld [vmem:[%s3 + $0x168] sm:$0xff]
    %v2766 = vld [vmem:[%s3 + $0x170] sm:$0xff]
    %v2767 = vld [vmem:[%s3 + $0x178] sm:$0xff]
    %v2768 = vld [vmem:[%s3 + $0x180] sm:$0xff]
    %v2769 = vld [vmem:[%s3 + $0x188] sm:$0xff]
    %v2770 = vld [vmem:[%s3 + $0x190] sm:$0xff]
    %v2771 = vld [vmem:[%s3 + $0x198] sm:$0xff]
    %v2772 = vld [vmem:[%s3 + $0x1a0] sm:$0xff]
    %v2773 = vld [vmem:[%s3 + $0x1a8] sm:$0xff]
    %v2774 = vld [vmem:[%s3 + $0x1b0] sm:$0xff]
    %v2775 = vld [vmem:[%s3 + $0x1b8] sm:$0xff]
    %v2776 = vld [vmem:[%s3 + $0x1c0] sm:$0xff]
    %v2777 = vld [vmem:[%s3 + $0x1c8] sm:$0xff]
    %v2778 = vld [vmem:[%s3 + $0x1d0] sm:$0xff]
    %v2779 = vld [vmem:[%s3 + $0x1d8] sm:$0xff]
    %v2780 = vld [vmem:[%s3 + $0x1e0] sm:$0xff]
    %v2781 = vld [vmem:[%s3 + $0x1e8] sm:$0xff]
    %v2782 = vld [vmem:[%s3 + $0x1f0] sm:$0xff]
    %v2783 = vld [vmem:[%s3 + $0x1f8] sm:$0xff]
    %v2784 = vld [vmem:[%s3 + $0x200] sm:$0xff]
    %v2785 = vld [vmem:[%s3 + $0x208] sm:$0xff]
    %v2786 = vld [vmem:[%s3 + $0x210] sm:$0xff]
    %v2787 = vld [vmem:[%s3 + $0x218] sm:$0xff]
    %v2788 = vld [vmem:[%s3 + $0x220] sm:$0xff]
    %v2789 = vld [vmem:[%s3 + $0x228] sm:$0xff]
    %v2790 = vld [vmem:[%s3 + $0x230] sm:$0xff]
    %v2791 = vld [vmem:[%s3 + $0x238] sm:$0xff]
    %v2792 = vld [vmem:[%s3 + $0x240] sm:$0xff]
    %v2793 = vld [vmem:[%s3 + $0x248] sm:$0xff]
    %v2794 = vld [vmem:[%s3 + $0x250] sm:$0xff]
    %v2795 = vld [vmem:[%s3 + $0x258] sm:$0xff]
    %v2796 = vld [vmem:[%s3 + $0x260] sm:$0xff]
    %v2797 = vld [vmem:[%s3 + $0x268] sm:$0xff]
    %v2798 = vld [vmem:[%s3 + $0x270] sm:$0xff]
    %v2799 = vld [vmem:[%s3 + $0x278] sm:$0xff]
    %v2800 = vld [vmem:[%s3 + $0x280] sm:$0xff]
    %v2801 = vld [vmem:[%s3 + $0x288] sm:$0xff]
    %v2802 = vld [vmem:[%s3 + $0x290] sm:$0xff]
    %v2803 = vld [vmem:[%s3 + $0x298] sm:$0xff]
    %v2804 = vld [vmem:[%s3 + $0x2a0] sm:$0xff]
    %v2805 = vld [vmem:[%s3 + $0x2a8] sm:$0xff]
    %v2806 = vld [vmem:[%s3 + $0x2b0] sm:$0xff]
    %v2807 = vld [vmem:[%s3 + $0x2b8] sm:$0xff]
    %v2808 = vld [vmem:[%s3 + $0x2c0] sm:$0xff]
    %v2809 = vld [vmem:[%s3 + $0x2c8] sm:$0xff]
    %v2810 = vld [vmem:[%s3 + $0x2d0] sm:$0xff]
    %v2811 = vld [vmem:[%s3 + $0x2d8] sm:$0xff]
    %v2812 = vld [vmem:[%s3 + $0x2e0] sm:$0xff]
    %v2813 = vld [vmem:[%s3 + $0x2e8] sm:$0xff]
    %v2814 = vld [vmem:[%s3 + $0x2f0] sm:$0xff]
    %v2815 = vld [vmem:[%s3 + $0x2f8] sm:$0xff]
    %v2816 = vld [vmem:[%s3 + $0x300] sm:$0xff]
    %v2817 = vld [vmem:[%s3 + $0x308] sm:$0xff]
    %v2818 = vld [vmem:[%s3 + $0x310] sm:$0xff]
    %v2819 = vld [vmem:[%s3 + $0x318] sm:$0xff]
    %v2820 = vld [vmem:[%s3 + $0x320] sm:$0xff]
    %v2821 = vld [vmem:[%s3 + $0x328] sm:$0xff]
    %v2822 = vld [vmem:[%s3 + $0x330] sm:$0xff]
    %v2823 = vld [vmem:[%s3 + $0x338] sm:$0xff]
    %v2824 = vld [vmem:[%s3 + $0x340] sm:$0xff]
    %v2825 = vld [vmem:[%s3 + $0x348] sm:$0xff]
    %v2826 = vld [vmem:[%s3 + $0x350] sm:$0xff]
    %v2827 = vld [vmem:[%s3 + $0x358] sm:$0xff]
    %v2828 = vld [vmem:[%s3 + $0x360] sm:$0xff]
    %v2829 = vld [vmem:[%s3 + $0x368] sm:$0xff]
    %v2830 = vld [vmem:[%s3 + $0x370] sm:$0xff]
    %v2831 = vld [vmem:[%s3 + $0x378] sm:$0xff]
    %v2832 = vld [vmem:[%s3 + $0x380] sm:$0xff]
    %v2833 = vld [vmem:[%s3 + $0x388] sm:$0xff]
    %v2834 = vld [vmem:[%s3 + $0x390] sm:$0xff]
    %v2835 = vld [vmem:[%s3 + $0x398] sm:$0xff]
    %v2836 = vld [vmem:[%s3 + $0x3a0] sm:$0xff]
    %v2837 = vld [vmem:[%s3 + $0x3a8] sm:$0xff]
    %v2838 = vld [vmem:[%s3 + $0x3b0] sm:$0xff]
    %v2839 = vld [vmem:[%s3 + $0x3b8] sm:$0xff]
    %v2840 = vld [vmem:[%s3 + $0x3c0] sm:$0xff]
    %v2841 = vld [vmem:[%s3 + $0x3c8] sm:$0xff]
    %v2842 = vld [vmem:[%s3 + $0x3d0] sm:$0xff]
    %v2843 = vld [vmem:[%s3 + $0x3d8] sm:$0xff]
    %v2844 = vld [vmem:[%s3 + $0x3e0] sm:$0xff]
    %v2845 = vld [vmem:[%s3 + $0x3e8] sm:$0xff]
    %v2846 = vld [vmem:[%s3 + $0x3f0] sm:$0xff]
    %v2847 = vld [vmem:[%s3 + $0x3f8] sm:$0xff]
    %v2848 = vld [vmem:[%s3 + $0x400] sm:$0xff]
    %v2849 = vld [vmem:[%s3 + $0x408] sm:$0xff]
    %v2850 = vld [vmem:[%s3 + $0x410] sm:$0xff]
    %v2851 = vld [vmem:[%s3 + $0x418] sm:$0xff]
    %v2852 = vld [vmem:[%s3 + $0x420] sm:$0xff]
    %v2853 = vld [vmem:[%s3 + $0x428] sm:$0xff]
    %v2854 = vld [vmem:[%s3 + $0x430] sm:$0xff]
    %v2855 = vld [vmem:[%s3 + $0x438] sm:$0xff]
    %v2856 = vld [vmem:[%s3 + $0x440] sm:$0xff]
    %v2857 = vld [vmem:[%s3 + $0x448] sm:$0xff]
    %v2858 = vld [vmem:[%s3 + $0x450] sm:$0xff]
    %v2859 = vld [vmem:[%s3 + $0x458] sm:$0xff]
    %v2860 = vld [vmem:[%s3 + $0x460] sm:$0xff]
    %v2861 = vld [vmem:[%s3 + $0x468] sm:$0xff]
    %v2862 = vld [vmem:[%s3 + $0x470] sm:$0xff]
    %v2863 = vld [vmem:[%s3 + $0x478] sm:$0xff]
    %2864 = vmatpush.msra.mxu0 %v2735
    %2865 = vmatpush.msra.mxu0 %v2734
    %2866 = vmatpush.msra.mxu0 %v2733
    %2867 = vmatpush.msra.mxu0 %v2732
    %2868 = vmatpush.msra.mxu0 %v2731
    %2869 = vmatpush.msra.mxu0 %v2730
    %2870 = vmatpush.msra.mxu0 %v2729
    %2871 = vmatpush.msra.mxu0 %v2728
    %2872 = vmatpush.msra.mxu0 %v2727
    %2873 = vmatpush.msra.mxu0 %v2726
    %2874 = vmatpush.msra.mxu0 %v2725
    %2875 = vmatpush.msra.mxu0 %v2724
    %2876 = vmatpush.msra.mxu0 %v2723
    %2877 = vmatpush.msra.mxu0 %v2722
    %2878 = vmatpush.msra.mxu0 %v2721
    %2879 = vmatpush.msra.mxu0 %v2720
    %2880 = vmatmul.f32.gmra.mxu0 %v2646
    %v2881 = vpop.f32.mrf.mxu0
    %v2882 = vadd.f32 0.0, %v2881
    %2883 = vmatmul.f32.gmra.mxu0 %v2647
    %v2884 = vpop.f32.mrf.mxu0
    %v2885 = vadd.f32 0.0, %v2884
    %2886 = vmatmul.f32.gmra.mxu0 %v2648
    %v2887 = vpop.f32.mrf.mxu0
    %v2888 = vadd.f32 0.0, %v2887
    %2889 = vmatmul.f32.gmra.mxu0 %v2649
    %v2890 = vpop.f32.mrf.mxu0
    %v2891 = vadd.f32 0.0, %v2890
    %2892 = vmatmul.f32.gmra.mxu0 %v2650
    %v2893 = vpop.f32.mrf.mxu0
    %v2894 = vadd.f32 0.0, %v2893
    %2895 = vmatmul.f32.gmra.mxu0 %v2651
    %v2896 = vpop.f32.mrf.mxu0
    %v2897 = vadd.f32 0.0, %v2896
    %2898 = vmatmul.f32.gmra.mxu0 %v2652
    %v2899 = vpop.f32.mrf.mxu0
    %v2900 = vadd.f32 0.0, %v2899
    %2901 = vmatmul.f32.gmra.mxu0 %v2653
    %v2902 = vpop.f32.mrf.mxu0
    %v2903 = vadd.f32 0.0, %v2902
    %2904 = vmatmul.f32.gmra.mxu0 %v2654
    %v2905 = vpop.f32.mrf.mxu0
    %v2906 = vadd.f32 0.0, %v2905
    %2907 = vmatmul.f32.gmra.mxu0 %v2655
    %v2908 = vpop.f32.mrf.mxu0
    %v2909 = vadd.f32 0.0, %v2908
    %2910 = vdwg.mxu0
    %2911 = vmatpush.msra.mxu0 %v2751
    %2912 = vmatpush.msra.mxu0 %v2750
    %2913 = vmatpush.msra.mxu0 %v2749
    %2914 = vmatpush.msra.mxu0 %v2748
    %2915 = vmatpush.msra.mxu0 %v2747
    %2916 = vmatpush.msra.mxu0 %v2746
    %2917 = vmatpush.msra.mxu0 %v2745
    %2918 = vmatpush.msra.mxu0 %v2744
    %2919 = vmatpush.msra.mxu0 %v2743
    %2920 = vmatpush.msra.mxu0 %v2742
    %2921 = vmatpush.msra.mxu0 %v2741
    %2922 = vmatpush.msra.mxu0 %v2740
    %2923 = vmatpush.msra.mxu0 %v2739
    %2924 = vmatpush.msra.mxu0 %v2738
    %2925 = vmatpush.msra.mxu0 %v2737
    %2926 = vmatpush.msra.mxu0 %v2736
    %2927 = vmatmul.f32.gmra.mxu0 %v2656
    %v2928 = vpop.f32.mrf.mxu0
    %v2929 = vadd.f32 %v2882, %v2928
    %2930 = vmatmul.f32.gmra.mxu0 %v2657
    %v2931 = vpop.f32.mrf.mxu0
    %v2932 = vadd.f32 %v2885, %v2931
    %2933 = vmatmul.f32.gmra.mxu0 %v2658
    %v2934 = vpop.f32.mrf.mxu0
    %v2935 = vadd.f32 %v2888, %v2934
    %2936 = vmatmul.f32.gmra.mxu0 %v2659
    %v2937 = vpop.f32.mrf.mxu0
    %v2938 = vadd.f32 %v2891, %v2937
    %2939 = vmatmul.f32.gmra.mxu0 %v2660
    %v2940 = vpop.f32.mrf.mxu0
    %v2941 = vadd.f32 %v2894, %v2940
    %2942 = vmatmul.f32.gmra.mxu0 %v2661
    %v2943 = vpop.f32.mrf.mxu0
    %v2944 = vadd.f32 %v2897, %v2943
    %2945 = vmatmul.f32.gmra.mxu0 %v2662
    %v2946 = vpop.f32.mrf.mxu0
    %v2947 = vadd.f32 %v2900, %v2946
    %2948 = vmatmul.f32.gmra.mxu0 %v2663
    %v2949 = vpop.f32.mrf.mxu0
    %v2950 = vadd.f32 %v2903, %v2949
    %2951 = vmatmul.f32.gmra.mxu0 %v2664
    %v2952 = vpop.f32.mrf.mxu0
    %v2953 = vadd.f32 %v2906, %v2952
    %2954 = vmatmul.f32.gmra.mxu0 %v2665
    %v2955 = vpop.f32.mrf.mxu0
    %v2956 = vadd.f32 %v2909, %v2955
    %2957 = vdwg.mxu0
    %2958 = vmatpush.msra.mxu0 %v2767
    %2959 = vmatpush.msra.mxu0 %v2766
    %2960 = vmatpush.msra.mxu0 %v2765
    %2961 = vmatpush.msra.mxu0 %v2764
    %2962 = vmatpush.msra.mxu0 %v2763
    %2963 = vmatpush.msra.mxu0 %v2762
    %2964 = vmatpush.msra.mxu0 %v2761
    %2965 = vmatpush.msra.mxu0 %v2760
    %2966 = vmatpush.msra.mxu0 %v2759
    %2967 = vmatpush.msra.mxu0 %v2758
    %2968 = vmatpush.msra.mxu0 %v2757
    %2969 = vmatpush.msra.mxu0 %v2756
    %2970 = vmatpush.msra.mxu0 %v2755
    %2971 = vmatpush.msra.mxu0 %v2754
    %2972 = vmatpush.msra.mxu0 %v2753
    %2973 = vmatpush.msra.mxu0 %v2752
    %2974 = vmatmul.f32.gmra.mxu0 %v2666
    %v2975 = vpop.f32.mrf.mxu0
    %v2976 = vadd.f32 %v2929, %v2975
    %2977 = vmatmul.f32.gmra.mxu0 %v2667
    %v2978 = vpop.f32.mrf.mxu0
    %v2979 = vadd.f32 %v2932, %v2978
    %2980 = vmatmul.f32.gmra.mxu0 %v2668
    %v2981 = vpop.f32.mrf.mxu0
    %v2982 = vadd.f32 %v2935, %v2981
    %2983 = vmatmul.f32.gmra.mxu0 %v2669
    %v2984 = vpop.f32.mrf.mxu0
    %v2985 = vadd.f32 %v2938, %v2984
    %2986 = vmatmul.f32.gmra.mxu0 %v2670
    %v2987 = vpop.f32.mrf.mxu0
    %v2988 = vadd.f32 %v2941, %v2987
    %2989 = vmatmul.f32.gmra.mxu0 %v2671
    %v2990 = vpop.f32.mrf.mxu0
    %v2991 = vadd.f32 %v2944, %v2990
    %2992 = vmatmul.f32.gmra.mxu0 %v2672
    %v2993 = vpop.f32.mrf.mxu0
    %v2994 = vadd.f32 %v2947, %v2993
    %2995 = vmatmul.f32.gmra.mxu0 %v2673
    %v2996 = vpop.f32.mrf.mxu0
    %v2997 = vadd.f32 %v2950, %v2996
    %2998 = vmatmul.f32.gmra.mxu0 %v2674
    %v2999 = vpop.f32.mrf.mxu0
    %v3000 = vadd.f32 %v2953, %v2999
    %3001 = vmatmul.f32.gmra.mxu0 %v2675
    %v3002 = vpop.f32.mrf.mxu0
    %v3003 = vadd.f32 %v2956, %v3002
    %3004 = vdwg.mxu0
    %3005 = vmatpush.msra.mxu0 %v2783
    %3006 = vmatpush.msra.mxu0 %v2782
    %3007 = vmatpush.msra.mxu0 %v2781
    %3008 = vmatpush.msra.mxu0 %v2780
    %3009 = vmatpush.msra.mxu0 %v2779
    %3010 = vmatpush.msra.mxu0 %v2778
    %3011 = vmatpush.msra.mxu0 %v2777
    %3012 = vmatpush.msra.mxu0 %v2776
    %3013 = vmatpush.msra.mxu0 %v2775
    %3014 = vmatpush.msra.mxu0 %v2774
    %3015 = vmatpush.msra.mxu0 %v2773
    %3016 = vmatpush.msra.mxu0 %v2772
    %3017 = vmatpush.msra.mxu0 %v2771
    %3018 = vmatpush.msra.mxu0 %v2770
    %3019 = vmatpush.msra.mxu0 %v2769
    %3020 = vmatpush.msra.mxu0 %v2768
    %3021 = vmatmul.f32.gmra.mxu0 %v2667
    %v3022 = vpop.f32.mrf.mxu0
    %v3023 = vadd.f32 %v2976, %v3022
    %3024 = vmatmul.f32.gmra.mxu0 %v2668
    %v3025 = vpop.f32.mrf.mxu0
    %v3026 = vadd.f32 %v2979, %v3025
    %3027 = vmatmul.f32.gmra.mxu0 %v2669
    %v3028 = vpop.f32.mrf.mxu0
    %v3029 = vadd.f32 %v2982, %v3028
    %3030 = vmatmul.f32.gmra.mxu0 %v2670
    %v3031 = vpop.f32.mrf.mxu0
    %v3032 = vadd.f32 %v2985, %v3031
    %3033 = vmatmul.f32.gmra.mxu0 %v2671
    %v3034 = vpop.f32.mrf.mxu0
    %v3035 = vadd.f32 %v2988, %v3034
    %3036 = vmatmul.f32.gmra.mxu0 %v2672
    %v3037 = vpop.f32.mrf.mxu0
    %v3038 = vadd.f32 %v2991, %v3037
    %3039 = vmatmul.f32.gmra.mxu0 %v2673
    %v3040 = vpop.f32.mrf.mxu0
    %v3041 = vadd.f32 %v2994, %v3040
    %3042 = vmatmul.f32.gmra.mxu0 %v2674
    %v3043 = vpop.f32.mrf.mxu0
    %v3044 = vadd.f32 %v2997, %v3043
    %3045 = vmatmul.f32.gmra.mxu0 %v2676
    %v3046 = vpop.f32.mrf.mxu0
    %v3047 = vadd.f32 %v3000, %v3046
    %3048 = vmatmul.f32.gmra.mxu0 %v2677
    %v3049 = vpop.f32.mrf.mxu0
    %v3050 = vadd.f32 %v3003, %v3049
    %3051 = vdwg.mxu0
    %3052 = vmatpush.msra.mxu0 %v2799
    %3053 = vmatpush.msra.mxu0 %v2798
    %3054 = vmatpush.msra.mxu0 %v2797
    %3055 = vmatpush.msra.mxu0 %v2796
    %3056 = vmatpush.msra.mxu0 %v2795
    %3057 = vmatpush.msra.mxu0 %v2794
    %3058 = vmatpush.msra.mxu0 %v2793
    %3059 = vmatpush.msra.mxu0 %v2792
    %3060 = vmatpush.msra.mxu0 %v2791
    %3061 = vmatpush.msra.mxu0 %v2790
    %3062 = vmatpush.msra.mxu0 %v2789
    %3063 = vmatpush.msra.mxu0 %v2788
    %3064 = vmatpush.msra.mxu0 %v2787
    %3065 = vmatpush.msra.mxu0 %v2786
    %3066 = vmatpush.msra.mxu0 %v2785
    %3067 = vmatpush.msra.mxu0 %v2784
    %3068 = vmatmul.f32.gmra.mxu0 %v2678
    %v3069 = vpop.f32.mrf.mxu0
    %v3070 = vadd.f32 %v3023, %v3069
    %3071 = vmatmul.f32.gmra.mxu0 %v2679
    %v3072 = vpop.f32.mrf.mxu0
    %v3073 = vadd.f32 %v3026, %v3072
    %3074 = vmatmul.f32.gmra.mxu0 %v2680
    %v3075 = vpop.f32.mrf.mxu0
    %v3076 = vadd.f32 %v3029, %v3075
    %3077 = vmatmul.f32.gmra.mxu0 %v2681
    %v3078 = vpop.f32.mrf.mxu0
    %v3079 = vadd.f32 %v3032, %v3078
    %3080 = vmatmul.f32.gmra.mxu0 %v2682
    %v3081 = vpop.f32.mrf.mxu0
    %v3082 = vadd.f32 %v3035, %v3081
    %3083 = vmatmul.f32.gmra.mxu0 %v2683
    %v3084 = vpop.f32.mrf.mxu0
    %v3085 = vadd.f32 %v3038, %v3084
    %3086 = vmatmul.f32.gmra.mxu0 %v2684
    %v3087 = vpop.f32.mrf.mxu0
    %v3088 = vadd.f32 %v3041, %v3087
    %3089 = vmatmul.f32.gmra.mxu0 %v2685
    %v3090 = vpop.f32.mrf.mxu0
    %v3091 = vadd.f32 %v3044, %v3090
    %3092 = vmatmul.f32.gmra.mxu0 %v2686
    %v3093 = vpop.f32.mrf.mxu0
    %v3094 = vadd.f32 %v3047, %v3093
    %3095 = vmatmul.f32.gmra.mxu0 %v2687
    %v3096 = vpop.f32.mrf.mxu0
    %v3097 = vadd.f32 %v3050, %v3096
    %3098 = vdwg.mxu0
    %3099 = vmatpush.msra.mxu0 %v2815
    %3100 = vmatpush.msra.mxu0 %v2814
    %3101 = vmatpush.msra.mxu0 %v2813
    %3102 = vmatpush.msra.mxu0 %v2812
    %3103 = vmatpush.msra.mxu0 %v2811
    %3104 = vmatpush.msra.mxu0 %v2810
    %3105 = vmatpush.msra.mxu0 %v2809
    %3106 = vmatpush.msra.mxu0 %v2808
    %3107 = vmatpush.msra.mxu0 %v2807
    %3108 = vmatpush.msra.mxu0 %v2806
    %3109 = vmatpush.msra.mxu0 %v2805
    %3110 = vmatpush.msra.mxu0 %v2804
    %3111 = vmatpush.msra.mxu0 %v2803
    %3112 = vmatpush.msra.mxu0 %v2802
    %3113 = vmatpush.msra.mxu0 %v2801
    %3114 = vmatpush.msra.mxu0 %v2800
    %3115 = vmatmul.f32.gmra.mxu0 %v2688
    %v3116 = vpop.f32.mrf.mxu0
    %v3117 = vadd.f32 %v3070, %v3116
    %3118 = vmatmul.f32.gmra.mxu0 %v2689
    %v3119 = vpop.f32.mrf.mxu0
    %v3120 = vadd.f32 %v3073, %v3119
    %3121 = vmatmul.f32.gmra.mxu0 %v2690
    %v3122 = vpop.f32.mrf.mxu0
    %v3123 = vadd.f32 %v3076, %v3122
    %3124 = vmatmul.f32.gmra.mxu0 %v2691
    %v3125 = vpop.f32.mrf.mxu0
    %v3126 = vadd.f32 %v3079, %v3125
    %3127 = vmatmul.f32.gmra.mxu0 %v2692
    %v3128 = vpop.f32.mrf.mxu0
    %v3129 = vadd.f32 %v3082, %v3128
    %3130 = vmatmul.f32.gmra.mxu0 %v2693
    %v3131 = vpop.f32.mrf.mxu0
    %v3132 = vadd.f32 %v3085, %v3131
    %3133 = vmatmul.f32.gmra.mxu0 %v2694
    %v3134 = vpop.f32.mrf.mxu0
    %v3135 = vadd.f32 %v3088, %v3134
    %3136 = vmatmul.f32.gmra.mxu0 %v2695
    %v3137 = vpop.f32.mrf.mxu0
    %v3138 = vadd.f32 %v3091, %v3137
    %3139 = vmatmul.f32.gmra.mxu0 %v2696
    %v3140 = vpop.f32.mrf.mxu0
    %v3141 = vadd.f32 %v3094, %v3140
    %3142 = vmatmul.f32.gmra.mxu0 %v2697
    %v3143 = vpop.f32.mrf.mxu0
    %v3144 = vadd.f32 %v3097, %v3143
    %3145 = vdwg.mxu0
    %3146 = vmatpush.msra.mxu0 %v2831
    %3147 = vmatpush.msra.mxu0 %v2830
    %3148 = vmatpush.msra.mxu0 %v2829
    %3149 = vmatpush.msra.mxu0 %v2828
    %3150 = vmatpush.msra.mxu0 %v2827
    %3151 = vmatpush.msra.mxu0 %v2826
    %3152 = vmatpush.msra.mxu0 %v2825
    %3153 = vmatpush.msra.mxu0 %v2824
    %3154 = vmatpush.msra.mxu0 %v2823
    %3155 = vmatpush.msra.mxu0 %v2822
    %3156 = vmatpush.msra.mxu0 %v2821
    %3157 = vmatpush.msra.mxu0 %v2820
    %3158 = vmatpush.msra.mxu0 %v2819
    %3159 = vmatpush.msra.mxu0 %v2818
    %3160 = vmatpush.msra.mxu0 %v2817
    %3161 = vmatpush.msra.mxu0 %v2816
    %3162 = vmatmul.f32.gmra.mxu0 %v2689
    %v3163 = vpop.f32.mrf.mxu0
    %v3164 = vadd.f32 %v3117, %v3163
    %3165 = vmatmul.f32.gmra.mxu0 %v2690
    %v3166 = vpop.f32.mrf.mxu0
    %v3167 = vadd.f32 %v3120, %v3166
    %3168 = vmatmul.f32.gmra.mxu0 %v2691
    %v3169 = vpop.f32.mrf.mxu0
    %v3170 = vadd.f32 %v3123, %v3169
    %3171 = vmatmul.f32.gmra.mxu0 %v2692
    %v3172 = vpop.f32.mrf.mxu0
    %v3173 = vadd.f32 %v3126, %v3172
    %3174 = vmatmul.f32.gmra.mxu0 %v2693
    %v3175 = vpop.f32.mrf.mxu0
    %v3176 = vadd.f32 %v3129, %v3175
    %3177 = vmatmul.f32.gmra.mxu0 %v2694
    %v3178 = vpop.f32.mrf.mxu0
    %v3179 = vadd.f32 %v3132, %v3178
    %3180 = vmatmul.f32.gmra.mxu0 %v2695
    %v3181 = vpop.f32.mrf.mxu0
    %v3182 = vadd.f32 %v3135, %v3181
    %3183 = vmatmul.f32.gmra.mxu0 %v2696
    %v3184 = vpop.f32.mrf.mxu0
    %v3185 = vadd.f32 %v3138, %v3184
    %3186 = vmatmul.f32.gmra.mxu0 %v2698
    %v3187 = vpop.f32.mrf.mxu0
    %v3188 = vadd.f32 %v3141, %v3187
    %3189 = vmatmul.f32.gmra.mxu0 %v2699
    %v3190 = vpop.f32.mrf.mxu0
    %v3191 = vadd.f32 %v3144, %v3190
    %3192 = vdwg.mxu0
    %3193 = vmatpush.msra.mxu0 %v2847
    %3194 = vmatpush.msra.mxu0 %v2846
    %3195 = vmatpush.msra.mxu0 %v2845
    %3196 = vmatpush.msra.mxu0 %v2844
    %3197 = vmatpush.msra.mxu0 %v2843
    %3198 = vmatpush.msra.mxu0 %v2842
    %3199 = vmatpush.msra.mxu0 %v2841
    %3200 = vmatpush.msra.mxu0 %v2840
    %3201 = vmatpush.msra.mxu0 %v2839
    %3202 = vmatpush.msra.mxu0 %v2838
    %3203 = vmatpush.msra.mxu0 %v2837
    %3204 = vmatpush.msra.mxu0 %v2836
    %3205 = vmatpush.msra.mxu0 %v2835
    %3206 = vmatpush.msra.mxu0 %v2834
    %3207 = vmatpush.msra.mxu0 %v2833
    %3208 = vmatpush.msra.mxu0 %v2832
    %3209 = vmatmul.f32.gmra.mxu0 %v2700
    %v3210 = vpop.f32.mrf.mxu0
    %v3211 = vadd.f32 %v3164, %v3210
    %3212 = vmatmul.f32.gmra.mxu0 %v2701
    %v3213 = vpop.f32.mrf.mxu0
    %v3214 = vadd.f32 %v3167, %v3213
    %3215 = vmatmul.f32.gmra.mxu0 %v2702
    %v3216 = vpop.f32.mrf.mxu0
    %v3217 = vadd.f32 %v3170, %v3216
    %3218 = vmatmul.f32.gmra.mxu0 %v2703
    %v3219 = vpop.f32.mrf.mxu0
    %v3220 = vadd.f32 %v3173, %v3219
    %3221 = vmatmul.f32.gmra.mxu0 %v2704
    %v3222 = vpop.f32.mrf.mxu0
    %v3223 = vadd.f32 %v3176, %v3222
    %3224 = vmatmul.f32.gmra.mxu0 %v2705
    %v3225 = vpop.f32.mrf.mxu0
    %v3226 = vadd.f32 %v3179, %v3225
    %3227 = vmatmul.f32.gmra.mxu0 %v2706
    %v3228 = vpop.f32.mrf.mxu0
    %v3229 = vadd.f32 %v3182, %v3228
    %3230 = vmatmul.f32.gmra.mxu0 %v2707
    %v3231 = vpop.f32.mrf.mxu0
    %v3232 = vadd.f32 %v3185, %v3231
    %3233 = vmatmul.f32.gmra.mxu0 %v2708
    %v3234 = vpop.f32.mrf.mxu0
    %v3235 = vadd.f32 %v3188, %v3234
    %3236 = vmatmul.f32.gmra.mxu0 %v2709
    %v3237 = vpop.f32.mrf.mxu0
    %v3238 = vadd.f32 %v3191, %v3237
    %3239 = vdwg.mxu0
    %3240 = vmatpush.msra.mxu0 %v2863
    %3241 = vmatpush.msra.mxu0 %v2862
    %3242 = vmatpush.msra.mxu0 %v2861
    %3243 = vmatpush.msra.mxu0 %v2860
    %3244 = vmatpush.msra.mxu0 %v2859
    %3245 = vmatpush.msra.mxu0 %v2858
    %3246 = vmatpush.msra.mxu0 %v2857
    %3247 = vmatpush.msra.mxu0 %v2856
    %3248 = vmatpush.msra.mxu0 %v2855
    %3249 = vmatpush.msra.mxu0 %v2854
    %3250 = vmatpush.msra.mxu0 %v2853
    %3251 = vmatpush.msra.mxu0 %v2852
    %3252 = vmatpush.msra.mxu0 %v2851
    %3253 = vmatpush.msra.mxu0 %v2850
    %3254 = vmatpush.msra.mxu0 %v2849
    %3255 = vmatpush.msra.mxu0 %v2848
    %3256 = vmatmul.f32.gmra.mxu0 %v2710
    %v3257 = vpop.f32.mrf.mxu0
    %v3258 = vadd.f32 %v3211, %v3257
    %3259 = vmatmul.f32.gmra.mxu0 %v2711
    %v3260 = vpop.f32.mrf.mxu0
    %v3261 = vadd.f32 %v3214, %v3260
    %3262 = vmatmul.f32.gmra.mxu0 %v2712
    %v3263 = vpop.f32.mrf.mxu0
    %v3264 = vadd.f32 %v3217, %v3263
    %3265 = vmatmul.f32.gmra.mxu0 %v2713
    %v3266 = vpop.f32.mrf.mxu0
    %v3267 = vadd.f32 %v3220, %v3266
    %3268 = vmatmul.f32.gmra.mxu0 %v2714
    %v3269 = vpop.f32.mrf.mxu0
    %v3270 = vadd.f32 %v3223, %v3269
    %3271 = vmatmul.f32.gmra.mxu0 %v2715
    %v3272 = vpop.f32.mrf.mxu0
    %v3273 = vadd.f32 %v3226, %v3272
    %3274 = vmatmul.f32.gmra.mxu0 %v2716
    %v3275 = vpop.f32.mrf.mxu0
    %v3276 = vadd.f32 %v3229, %v3275
    %3277 = vmatmul.f32.gmra.mxu0 %v2717
    %v3278 = vpop.f32.mrf.mxu0
    %v3279 = vadd.f32 %v3232, %v3278
    %3280 = vmatmul.f32.gmra.mxu0 %v2718
    %v3281 = vpop.f32.mrf.mxu0
    %v3282 = vadd.f32 %v3235, %v3281
    %3283 = vmatmul.f32.gmra.mxu0 %v2719
    %v3284 = vpop.f32.mrf.mxu0
    %v3285 = vadd.f32 %v3238, %v3284
    %3286 = vdwg.mxu0
    %v3287 = vshra.s32 %v1563, 2
    %v3288 = vshra.s32 %v1564, 2
    %v3289 = vand.u32 %v1563, 3
    %v3290 = vand.u32 %v1564, 3
    %v3291 = vmul.u32 %v3287, 2
    %v3292 = vmul.u32 %v3288, 2
    %v3293 = vmul.u32 %v3291, 10
    %v3294 = vmul.u32 %v3292, 10
    %v3295 = vmul.u32 %v3289, 2
    %v3296 = vmul.u32 %v3290, 2
    %v3297 = vadd.s32 %v3293, %v3295
    %v3298 = vadd.s32 %v3294, %v3296
    %vm3299 = vcmp.eq.s32.totalorder %v1572, %v3297
    %vm3300 = vcmp.eq.s32.totalorder %v1572, %v3298
    %v3301 = vsel %vm3299, 1.0, 0.0
    %v3302 = vsel %vm3300, 1.0, 0.0
    %vm3303 = vcmask 637952
    %v3305 = vsel %vm3303, %v3301, 0
    %v3308 = vsel %vm3303, %v3302, 0
    %v3311 = vsel %vm1696, %v3285, 0
    %3313 = vmatpush.msra.mxu0 0.0
    %3314 = vmatpush.msra.mxu0 0.0
    %3315 = vmatpush.msra.mxu0 0.0
    %3316 = vmatpush.msra.mxu0 0.0
    %3317 = vmatpush.msra.mxu0 0.0
    %3318 = vmatpush.msra.mxu0 0.0
    %3319 = vmatpush.msra.mxu0 %v3311
    %3320 = vmatpush.msra.mxu0 %v3282
    %3321 = vmatpush.msra.mxu0 %v3279
    %3322 = vmatpush.msra.mxu0 %v3276
    %3323 = vmatpush.msra.mxu0 %v3273
    %3324 = vmatpush.msra.mxu0 %v3270
    %3325 = vmatpush.msra.mxu0 %v3267
    %3326 = vmatpush.msra.mxu0 %v3264
    %3327 = vmatpush.msra.mxu0 %v3261
    %3328 = vmatpush.msra.mxu0 %v3258
    %3329 = vmatmul.f32.gmra.mxu0 %v3305
    %v3330 = vpop.f32.mrf.mxu0
    %v3331 = vadd.f32 0.0, %v3330
    %3332 = vmatmul.f32.gmra.mxu0 %v3308
    %v3333 = vpop.f32.mrf.mxu0
    %v3334 = vadd.f32 0.0, %v3333
    %3335 = vdwg.mxu0
    %v3336 = vadd.s32 %v3295, 1
    %v3337 = vadd.s32 %v3296, 1
    %v3338 = vadd.s32 %v3293, %v3336
    %v3339 = vadd.s32 %v3294, %v3337
    %vm3340 = vcmp.eq.s32.totalorder %v1572, %v3338
    %vm3341 = vcmp.eq.s32.totalorder %v1572, %v3339
    %v3342 = vsel %vm3340, 1.0, 0.0
    %v3343 = vsel %vm3341, 1.0, 0.0
    %v3345 = vsel %vm3303, %v3342, 0
    %v3348 = vsel %vm3303, %v3343, 0
    %3350 = vmatpush.msra.mxu0 0.0
    %3351 = vmatpush.msra.mxu0 0.0
    %3352 = vmatpush.msra.mxu0 0.0
    %3353 = vmatpush.msra.mxu0 0.0
    %3354 = vmatpush.msra.mxu0 0.0
    %3355 = vmatpush.msra.mxu0 0.0
    %3356 = vmatpush.msra.mxu0 %v3311
    %3357 = vmatpush.msra.mxu0 %v3282
    %3358 = vmatpush.msra.mxu0 %v3279
    %3359 = vmatpush.msra.mxu0 %v3276
    %3360 = vmatpush.msra.mxu0 %v3273
    %3361 = vmatpush.msra.mxu0 %v3270
    %3362 = vmatpush.msra.mxu0 %v3267
    %3363 = vmatpush.msra.mxu0 %v3264
    %3364 = vmatpush.msra.mxu0 %v3261
    %3365 = vmatpush.msra.mxu0 %v3258
    %3366 = vmatmul.f32.gmra.mxu0 %v3345
    %v3367 = vpop.f32.mrf.mxu0
    %v3368 = vadd.f32 0.0, %v3367
    %3369 = vmatmul.f32.gmra.mxu0 %v3348
    %v3370 = vpop.f32.mrf.mxu0
    %v3371 = vadd.f32 0.0, %v3370
    %3372 = vdwg.mxu0
    %v3373 = vmax.f32 %v3331, %v3368
    %v3374 = vmax.f32 %v3334, %v3371
    %v3375 = vadd.s32 %v3291, 1
    %v3376 = vadd.s32 %v3292, 1
    %v3377 = vmul.u32 %v3375, 10
    %v3378 = vmul.u32 %v3376, 10
    %v3379 = vadd.s32 %v3377, %v3295
    %v3380 = vadd.s32 %v3378, %v3296
    %vm3381 = vcmp.eq.s32.totalorder %v1572, %v3379
    %vm3382 = vcmp.eq.s32.totalorder %v1572, %v3380
    %v3383 = vsel %vm3381, 1.0, 0.0
    %v3384 = vsel %vm3382, 1.0, 0.0
    %v3386 = vsel %vm3303, %v3383, 0
    %v3389 = vsel %vm3303, %v3384, 0
    %3391 = vmatpush.msra.mxu0 0.0
    %3392 = vmatpush.msra.mxu0 0.0
    %3393 = vmatpush.msra.mxu0 0.0
    %3394 = vmatpush.msra.mxu0 0.0
    %3395 = vmatpush.msra.mxu0 0.0
    %3396 = vmatpush.msra.mxu0 0.0
    %3397 = vmatpush.msra.mxu0 %v3311
    %3398 = vmatpush.msra.mxu0 %v3282
    %3399 = vmatpush.msra.mxu0 %v3279
    %3400 = vmatpush.msra.mxu0 %v3276
    %3401 = vmatpush.msra.mxu0 %v3273
    %3402 = vmatpush.msra.mxu0 %v3270
    %3403 = vmatpush.msra.mxu0 %v3267
    %3404 = vmatpush.msra.mxu0 %v3264
    %3405 = vmatpush.msra.mxu0 %v3261
    %3406 = vmatpush.msra.mxu0 %v3258
    %3407 = vmatmul.f32.gmra.mxu0 %v3386
    %v3408 = vpop.f32.mrf.mxu0
    %v3409 = vadd.f32 0.0, %v3408
    %3410 = vmatmul.f32.gmra.mxu0 %v3389
    %v3411 = vpop.f32.mrf.mxu0
    %v3412 = vadd.f32 0.0, %v3411
    %3413 = vdwg.mxu0
    %v3414 = vmax.f32 %v3373, %v3409
    %v3415 = vmax.f32 %v3374, %v3412
    %v3416 = vadd.s32 %v3377, %v3336
    %v3417 = vadd.s32 %v3378, %v3337
    %vm3418 = vcmp.eq.s32.totalorder %v1572, %v3416
    %vm3419 = vcmp.eq.s32.totalorder %v1572, %v3417
    %v3420 = vsel %vm3418, 1.0, 0.0
    %v3421 = vsel %vm3419, 1.0, 0.0
    %v3423 = vsel %vm3303, %v3420, 0
    %v3426 = vsel %vm3303, %v3421, 0
    %3428 = vmatpush.msra.mxu0 0.0
    %3429 = vmatpush.msra.mxu0 0.0
    %3430 = vmatpush.msra.mxu0 0.0
    %3431 = vmatpush.msra.mxu0 0.0
    %3432 = vmatpush.msra.mxu0 0.0
    %3433 = vmatpush.msra.mxu0 0.0
    %3434 = vmatpush.msra.mxu0 %v3311
    %3435 = vmatpush.msra.mxu0 %v3282
    %3436 = vmatpush.msra.mxu0 %v3279
    %3437 = vmatpush.msra.mxu0 %v3276
    %3438 = vmatpush.msra.mxu0 %v3273
    %3439 = vmatpush.msra.mxu0 %v3270
    %3440 = vmatpush.msra.mxu0 %v3267
    %3441 = vmatpush.msra.mxu0 %v3264
    %3442 = vmatpush.msra.mxu0 %v3261
    %3443 = vmatpush.msra.mxu0 %v3258
    %3444 = vmatmul.f32.gmra.mxu0 %v3423
    %v3445 = vpop.f32.mrf.mxu0
    %v3446 = vadd.f32 0.0, %v3445
    %3447 = vmatmul.f32.gmra.mxu0 %v3426
    %v3448 = vpop.f32.mrf.mxu0
    %v3449 = vadd.f32 0.0, %v3448
    %3450 = vdwg.mxu0
    %v3451 = vmax.f32 %v3414, %v3446
    %v3452 = vmax.f32 %v3415, %v3449
    %v3453 = vld [vmem:[%s4] sm:$0x1]
    %v3455 = vperm.slane %v3453, 0
    %v3457 = vadd.f32 %v3451, %v3455
    %v3458 = vadd.f32 %v3452, %v3455
    %v3459 = vmax.f32 %v3457, 0.0
    %v3460 = vmax.f32 %v3458, 0.0
    %v3461 = vshra.s32 %v1572, 2
    %v3462 = vand.u32 %v1572, 3
    %v3463 = vadd.s32 %v3461, 1
    %v3464 = vmul.u32 %v3463, 6
    %v3465 = vadd.s32 %v3462, 1
    %v3466 = vadd.s32 %v3464, %v3465
    %vm3467 = vcmp.eq.s32.totalorder %v1563, %v3466
    %vm3468 = vcmp.eq.s32.totalorder %v1564, %v3466
    %vm3469 = vcmp.eq.s32.totalorder %v1565, %v3466
    %vm3470 = vcmp.eq.s32.totalorder %v1566, %v3466
    %vm3471 = vcmp.eq.s32.totalorder %v1567, %v3466
    %v3472 = vsel %vm3467, 1.0, 0.0
    %v3473 = vsel %vm3468, 1.0, 0.0
    %v3474 = vsel %vm3469, 1.0, 0.0
    %v3475 = vsel %vm3470, 1.0, 0.0
    %v3476 = vsel %vm3471, 1.0, 0.0
    %vm3477 = vcmask 130048
    %v3479 = vsel %vm3477, %v3472, 0
    %v3482 = vsel %vm3477, %v3473, 0
    %v3485 = vsel %vm3477, %v3474, 0
    %v3488 = vsel %vm3477, %v3475, 0
    %v3491 = vsel %vm3477, %v3476, 0
    %3493 = vmatpush.msra.mxu0 0.0
    %3494 = vmatpush.msra.mxu0 0.0
    %3495 = vmatpush.msra.mxu0 0.0
    %3496 = vmatpush.msra.mxu0 0.0
    %3497 = vmatpush.msra.mxu0 0.0
    %3498 = vmatpush.msra.mxu0 0.0
    %3499 = vmatpush.msra.mxu0 0.0
    %3500 = vmatpush.msra.mxu0 0.0
    %3501 = vmatpush.msra.mxu0 0.0
    %3502 = vmatpush.msra.mxu0 0.0
    %3503 = vmatpush.msra.mxu0 0.0
    %3504 = vmatpush.msra.mxu0 0.0
    %3505 = vmatpush.msra.mxu0 0.0
    %3506 = vmatpush.msra.mxu0 0.0
    %3507 = vmatpush.msra.mxu0 %v3460
    %3508 = vmatpush.msra.mxu0 %v3459
    %3509 = vmatmul.f32.gmra.mxu0 %v3479
    %v3510 = vpop.f32.mrf.mxu0
    %v3511 = vadd.f32 0.0, %v3510
    %3512 = vmatmul.f32.gmra.mxu0 %v3482
    %v3513 = vpop.f32.mrf.mxu0
    %v3514 = vadd.f32 0.0, %v3513
    %3515 = vmatmul.f32.gmra.mxu0 %v3485
    %v3516 = vpop.f32.mrf.mxu0
    %v3517 = vadd.f32 0.0, %v3516
    %3518 = vmatmul.f32.gmra.mxu0 %v3488
    %v3519 = vpop.f32.mrf.mxu0
    %v3520 = vadd.f32 0.0, %v3519
    %3521 = vmatmul.f32.gmra.mxu0 %v3491
    %v3522 = vpop.f32.mrf.mxu0
    %v3523 = vadd.f32 0.0, %v3522
    %3524 = vdwg.mxu0
    %3525 = vst [vmem:[#allocation3] sm:$0xff] %v3511
    %3526 = vst [vmem:[#allocation3 + $0x8] sm:$0xff] %v3514
    %3527 = vst [vmem:[#allocation3 + $0x10] sm:$0xff] %v3517
    %3528 = vst [vmem:[#allocation3 + $0x18] sm:$0xff] %v3520
    %3529 = vst [vmem:[#allocation3 + $0x20] sm:$0xf] %v3523
    %v3530 = vld [vmem:[#allocation3] sm:$0xff]
    %v3531 = vld [vmem:[#allocation3 + $0x8] sm:$0xff]
    %v3532 = vld [vmem:[#allocation3 + $0x10] sm:$0x3f]
    %v3533 = vld [vmem:[#allocation3 + $0x1] sm:$0xff]
    %v3534 = vld [vmem:[#allocation3 + $0x9] sm:$0xff]
    %v3535 = vld [vmem:[#allocation3 + $0x11] sm:$0x3f]
    %v3536 = vld [vmem:[#allocation3 + $0x2] sm:$0xff]
    %v3537 = vld [vmem:[#allocation3 + $0xa] sm:$0xff]
    %v3538 = vld [vmem:[#allocation3 + $0x12] sm:$0x3f]
    %v3539 = vld [vmem:[#allocation3 + $0x6] sm:$0xff]
    %v3540 = vld [vmem:[#allocation3 + $0xe] sm:$0xff]
    %v3541 = vld [vmem:[#allocation3 + $0x16] sm:$0x3f]
    %v3542 = vld [vmem:[#allocation3 + $0x7] sm:$0xff]
    %v3543 = vld [vmem:[#allocation3 + $0xf] sm:$0xff]
    %v3544 = vld [vmem:[#allocation3 + $0x17] sm:$0x3f]
    %v3545 = vld [vmem:[#allocation3 + $0x10] sm:$0xff]
    %v3546 = vld [vmem:[#allocation3 + $0x18] sm:$0x3f]
    %v3547 = vld [vmem:[#allocation3 + $0xc] sm:$0xff]
    %v3548 = vld [vmem:[#allocation3 + $0x14] sm:$0xff]
    %v3549 = vld [vmem:[#allocation3 + $0x1c] sm:$0x3f]
    %v3550 = vld [vmem:[#allocation3 + $0xd] sm:$0xff]
    %v3551 = vld [vmem:[#allocation3 + $0x15] sm:$0xff]
    %v3552 = vld [vmem:[#allocation3 + $0x1d] sm:$0x3f]
    %v3553 = vld [vmem:[#allocation3 + $0xe] sm:$0xff]
    %v3554 = vld [vmem:[#allocation3 + $0x16] sm:$0xff]
    %v3555 = vld [vmem:[#allocation3 + $0x1e] sm:$0x3f]
    %v3556 = vld [vmem:[%s5] sm:$0xff]
    %v3557 = vld [vmem:[%s5 + $0x8] sm:$0xff]
    %v3558 = vld [vmem:[%s5 + $0x10] sm:$0xff]
    %v3559 = vld [vmem:[%s5 + $0x18] sm:$0xff]
    %v3560 = vld [vmem:[%s5 + $0x20] sm:$0xff]
    %v3561 = vld [vmem:[%s5 + $0x28] sm:$0xff]
    %v3562 = vld [vmem:[%s5 + $0x30] sm:$0xff]
    %v3563 = vld [vmem:[%s5 + $0x38] sm:$0xff]
    %v3564 = vld [vmem:[%s5 + $0x40] sm:$0xff]
    %v3565 = vld [vmem:[%s5 + $0x48] sm:$0xff]
    %v3566 = vld [vmem:[%s5 + $0x50] sm:$0xff]
    %v3567 = vld [vmem:[%s5 + $0x58] sm:$0xff]
    %v3568 = vld [vmem:[%s5 + $0x60] sm:$0xff]
    %v3569 = vld [vmem:[%s5 + $0x68] sm:$0xff]
    %v3570 = vld [vmem:[%s5 + $0x70] sm:$0xff]
    %v3571 = vld [vmem:[%s5 + $0x78] sm:$0xff]
    %v3572 = vld [vmem:[%s5 + $0x80] sm:$0xff]
    %v3573 = vld [vmem:[%s5 + $0x88] sm:$0xff]
    %v3574 = vld [vmem:[%s5 + $0x90] sm:$0xff]
    %v3575 = vld [vmem:[%s5 + $0x98] sm:$0xff]
    %v3576 = vld [vmem:[%s5 + $0xa0] sm:$0xff]
    %v3577 = vld [vmem:[%s5 + $0xa8] sm:$0xff]
    %v3578 = vld [vmem:[%s5 + $0xb0] sm:$0xff]
    %v3579 = vld [vmem:[%s5 + $0xb8] sm:$0xff]
    %v3580 = vld [vmem:[%s5 + $0xc0] sm:$0xff]
    %v3581 = vld [vmem:[%s5 + $0xc8] sm:$0xff]
    %v3582 = vld [vmem:[%s5 + $0xd0] sm:$0xff]
    %v3583 = vld [vmem:[%s5 + $0xd8] sm:$0xff]
    %v3584 = vld [vmem:[%s5 + $0xe0] sm:$0xff]
    %v3585 = vld [vmem:[%s5 + $0xe8] sm:$0xff]
    %v3586 = vld [vmem:[%s5 + $0xf0] sm:$0xff]
    %v3587 = vld [vmem:[%s5 + $0xf8] sm:$0xff]
    %v3588 = vld [vmem:[%s5 + $0x100] sm:$0xff]
    %v3589 = vld [vmem:[%s5 + $0x108] sm:$0xff]
    %v3590 = vld [vmem:[%s5 + $0x110] sm:$0xff]
    %v3591 = vld [vmem:[%s5 + $0x118] sm:$0xff]
    %v3592 = vld [vmem:[%s5 + $0x120] sm:$0xff]
    %v3593 = vld [vmem:[%s5 + $0x128] sm:$0xff]
    %v3594 = vld [vmem:[%s5 + $0x130] sm:$0xff]
    %v3595 = vld [vmem:[%s5 + $0x138] sm:$0xff]
    %v3596 = vld [vmem:[%s5 + $0x140] sm:$0xff]
    %v3597 = vld [vmem:[%s5 + $0x148] sm:$0xff]
    %v3598 = vld [vmem:[%s5 + $0x150] sm:$0xff]
    %v3599 = vld [vmem:[%s5 + $0x158] sm:$0xff]
    %v3600 = vld [vmem:[%s5 + $0x160] sm:$0xff]
    %v3601 = vld [vmem:[%s5 + $0x168] sm:$0xff]
    %v3602 = vld [vmem:[%s5 + $0x170] sm:$0xff]
    %v3603 = vld [vmem:[%s5 + $0x178] sm:$0xff]
    %v3604 = vld [vmem:[%s5 + $0x180] sm:$0xff]
    %v3605 = vld [vmem:[%s5 + $0x188] sm:$0xff]
    %v3606 = vld [vmem:[%s5 + $0x190] sm:$0xff]
    %v3607 = vld [vmem:[%s5 + $0x198] sm:$0xff]
    %v3608 = vld [vmem:[%s5 + $0x1a0] sm:$0xff]
    %v3609 = vld [vmem:[%s5 + $0x1a8] sm:$0xff]
    %v3610 = vld [vmem:[%s5 + $0x1b0] sm:$0xff]
    %v3611 = vld [vmem:[%s5 + $0x1b8] sm:$0xff]
    %v3612 = vld [vmem:[%s5 + $0x1c0] sm:$0xff]
    %v3613 = vld [vmem:[%s5 + $0x1c8] sm:$0xff]
    %v3614 = vld [vmem:[%s5 + $0x1d0] sm:$0xff]
    %v3615 = vld [vmem:[%s5 + $0x1d8] sm:$0xff]
    %v3616 = vld [vmem:[%s5 + $0x1e0] sm:$0xff]
    %v3617 = vld [vmem:[%s5 + $0x1e8] sm:$0xff]
    %v3618 = vld [vmem:[%s5 + $0x1f0] sm:$0xff]
    %v3619 = vld [vmem:[%s5 + $0x1f8] sm:$0xff]
    %v3620 = vld [vmem:[%s5 + $0x200] sm:$0xff]
    %v3621 = vld [vmem:[%s5 + $0x208] sm:$0xff]
    %v3622 = vld [vmem:[%s5 + $0x210] sm:$0xff]
    %v3623 = vld [vmem:[%s5 + $0x218] sm:$0xff]
    %v3624 = vld [vmem:[%s5 + $0x220] sm:$0xff]
    %v3625 = vld [vmem:[%s5 + $0x228] sm:$0xff]
    %v3626 = vld [vmem:[%s5 + $0x230] sm:$0xff]
    %v3627 = vld [vmem:[%s5 + $0x238] sm:$0xff]
    %v3628 = vld [vmem:[%s5 + $0x240] sm:$0xff]
    %v3629 = vld [vmem:[%s5 + $0x248] sm:$0xff]
    %v3630 = vld [vmem:[%s5 + $0x250] sm:$0xff]
    %v3631 = vld [vmem:[%s5 + $0x258] sm:$0xff]
    %v3632 = vld [vmem:[%s5 + $0x260] sm:$0xff]
    %v3633 = vld [vmem:[%s5 + $0x268] sm:$0xff]
    %v3634 = vld [vmem:[%s5 + $0x270] sm:$0xff]
    %v3635 = vld [vmem:[%s5 + $0x278] sm:$0xff]
    %v3636 = vld [vmem:[%s5 + $0x280] sm:$0xff]
    %v3637 = vld [vmem:[%s5 + $0x288] sm:$0xff]
    %v3638 = vld [vmem:[%s5 + $0x290] sm:$0xff]
    %v3639 = vld [vmem:[%s5 + $0x298] sm:$0xff]
    %v3640 = vld [vmem:[%s5 + $0x2a0] sm:$0xff]
    %v3641 = vld [vmem:[%s5 + $0x2a8] sm:$0xff]
    %v3642 = vld [vmem:[%s5 + $0x2b0] sm:$0xff]
    %v3643 = vld [vmem:[%s5 + $0x2b8] sm:$0xff]
    %v3644 = vld [vmem:[%s5 + $0x2c0] sm:$0xff]
    %v3645 = vld [vmem:[%s5 + $0x2c8] sm:$0xff]
    %v3646 = vld [vmem:[%s5 + $0x2d0] sm:$0xff]
    %v3647 = vld [vmem:[%s5 + $0x2d8] sm:$0xff]
    %v3648 = vld [vmem:[%s5 + $0x2e0] sm:$0xff]
    %v3649 = vld [vmem:[%s5 + $0x2e8] sm:$0xff]
    %v3650 = vld [vmem:[%s5 + $0x2f0] sm:$0xff]
    %v3651 = vld [vmem:[%s5 + $0x2f8] sm:$0xff]
    %v3652 = vld [vmem:[%s5 + $0x300] sm:$0xff]
    %v3653 = vld [vmem:[%s5 + $0x308] sm:$0xff]
    %v3654 = vld [vmem:[%s5 + $0x310] sm:$0xff]
    %v3655 = vld [vmem:[%s5 + $0x318] sm:$0xff]
    %v3656 = vld [vmem:[%s5 + $0x320] sm:$0xff]
    %v3657 = vld [vmem:[%s5 + $0x328] sm:$0xff]
    %v3658 = vld [vmem:[%s5 + $0x330] sm:$0xff]
    %v3659 = vld [vmem:[%s5 + $0x338] sm:$0xff]
    %v3660 = vld [vmem:[%s5 + $0x340] sm:$0xff]
    %v3661 = vld [vmem:[%s5 + $0x348] sm:$0xff]
    %v3662 = vld [vmem:[%s5 + $0x350] sm:$0xff]
    %v3663 = vld [vmem:[%s5 + $0x358] sm:$0xff]
    %v3664 = vld [vmem:[%s5 + $0x360] sm:$0xff]
    %v3665 = vld [vmem:[%s5 + $0x368] sm:$0xff]
    %v3666 = vld [vmem:[%s5 + $0x370] sm:$0xff]
    %v3667 = vld [vmem:[%s5 + $0x378] sm:$0xff]
    %v3668 = vld [vmem:[%s5 + $0x380] sm:$0xff]
    %v3669 = vld [vmem:[%s5 + $0x388] sm:$0xff]
    %v3670 = vld [vmem:[%s5 + $0x390] sm:$0xff]
    %v3671 = vld [vmem:[%s5 + $0x398] sm:$0xff]
    %v3672 = vld [vmem:[%s5 + $0x3a0] sm:$0xff]
    %v3673 = vld [vmem:[%s5 + $0x3a8] sm:$0xff]
    %v3674 = vld [vmem:[%s5 + $0x3b0] sm:$0xff]
    %v3675 = vld [vmem:[%s5 + $0x3b8] sm:$0xff]
    %v3676 = vld [vmem:[%s5 + $0x3c0] sm:$0xff]
    %v3677 = vld [vmem:[%s5 + $0x3c8] sm:$0xff]
    %v3678 = vld [vmem:[%s5 + $0x3d0] sm:$0xff]
    %v3679 = vld [vmem:[%s5 + $0x3d8] sm:$0xff]
    %v3680 = vld [vmem:[%s5 + $0x3e0] sm:$0xff]
    %v3681 = vld [vmem:[%s5 + $0x3e8] sm:$0xff]
    %v3682 = vld [vmem:[%s5 + $0x3f0] sm:$0xff]
    %v3683 = vld [vmem:[%s5 + $0x3f8] sm:$0xff]
    %v3684 = vld [vmem:[%s5 + $0x400] sm:$0xff]
    %v3685 = vld [vmem:[%s5 + $0x408] sm:$0xff]
    %v3686 = vld [vmem:[%s5 + $0x410] sm:$0xff]
    %v3687 = vld [vmem:[%s5 + $0x418] sm:$0xff]
    %v3688 = vld [vmem:[%s5 + $0x420] sm:$0xff]
    %v3689 = vld [vmem:[%s5 + $0x428] sm:$0xff]
    %v3690 = vld [vmem:[%s5 + $0x430] sm:$0xff]
    %v3691 = vld [vmem:[%s5 + $0x438] sm:$0xff]
    %v3692 = vld [vmem:[%s5 + $0x440] sm:$0xff]
    %v3693 = vld [vmem:[%s5 + $0x448] sm:$0xff]
    %v3694 = vld [vmem:[%s5 + $0x450] sm:$0xff]
    %v3695 = vld [vmem:[%s5 + $0x458] sm:$0xff]
    %v3696 = vld [vmem:[%s5 + $0x460] sm:$0xff]
    %v3697 = vld [vmem:[%s5 + $0x468] sm:$0xff]
    %v3698 = vld [vmem:[%s5 + $0x470] sm:$0xff]
    %v3699 = vld [vmem:[%s5 + $0x478] sm:$0xff]
    %3700 = vmatpush.msra.mxu0 %v3571
    %3701 = vmatpush.msra.mxu0 %v3570
    %3702 = vmatpush.msra.mxu0 %v3569
    %3703 = vmatpush.msra.mxu0 %v3568
    %3704 = vmatpush.msra.mxu0 %v3567
    %3705 = vmatpush.msra.mxu0 %v3566
    %3706 = vmatpush.msra.mxu0 %v3565
    %3707 = vmatpush.msra.mxu0 %v3564
    %3708 = vmatpush.msra.mxu0 %v3563
    %3709 = vmatpush.msra.mxu0 %v3562
    %3710 = vmatpush.msra.mxu0 %v3561
    %3711 = vmatpush.msra.mxu0 %v3560
    %3712 = vmatpush.msra.mxu0 %v3559
    %3713 = vmatpush.msra.mxu0 %v3558
    %3714 = vmatpush.msra.mxu0 %v3557
    %3715 = vmatpush.msra.mxu0 %v3556
    %3716 = vmatmul.f32.gmra.mxu0 %v3530
    %v3717 = vpop.f32.mrf.mxu0
    %v3718 = vadd.f32 0.0, %v3717
    %3719 = vmatmul.f32.gmra.mxu0 %v3531
    %v3720 = vpop.f32.mrf.mxu0
    %v3721 = vadd.f32 0.0, %v3720
    %3722 = vmatmul.f32.gmra.mxu0 %v3532
    %v3723 = vpop.f32.mrf.mxu0
    %v3724 = vadd.f32 0.0, %v3723
    %3725 = vdwg.mxu0
    %3726 = vmatpush.msra.mxu0 %v3587
    %3727 = vmatpush.msra.mxu0 %v3586
    %3728 = vmatpush.msra.mxu0 %v3585
    %3729 = vmatpush.msra.mxu0 %v3584
    %3730 = vmatpush.msra.mxu0 %v3583
    %3731 = vmatpush.msra.mxu0 %v3582
    %3732 = vmatpush.msra.mxu0 %v3581
    %3733 = vmatpush.msra.mxu0 %v3580
    %3734 = vmatpush.msra.mxu0 %v3579
    %3735 = vmatpush.msra.mxu0 %v3578
    %3736 = vmatpush.msra.mxu0 %v3577
    %3737 = vmatpush.msra.mxu0 %v3576
    %3738 = vmatpush.msra.mxu0 %v3575
    %3739 = vmatpush.msra.mxu0 %v3574
    %3740 = vmatpush.msra.mxu0 %v3573
    %3741 = vmatpush.msra.mxu0 %v3572
    %3742 = vmatmul.f32.gmra.mxu0 %v3533
    %v3743 = vpop.f32.mrf.mxu0
    %v3744 = vadd.f32 %v3718, %v3743
    %3745 = vmatmul.f32.gmra.mxu0 %v3534
    %v3746 = vpop.f32.mrf.mxu0
    %v3747 = vadd.f32 %v3721, %v3746
    %3748 = vmatmul.f32.gmra.mxu0 %v3535
    %v3749 = vpop.f32.mrf.mxu0
    %v3750 = vadd.f32 %v3724, %v3749
    %3751 = vdwg.mxu0
    %3752 = vmatpush.msra.mxu0 %v3603
    %3753 = vmatpush.msra.mxu0 %v3602
    %3754 = vmatpush.msra.mxu0 %v3601
    %3755 = vmatpush.msra.mxu0 %v3600
    %3756 = vmatpush.msra.mxu0 %v3599
    %3757 = vmatpush.msra.mxu0 %v3598
    %3758 = vmatpush.msra.mxu0 %v3597
    %3759 = vmatpush.msra.mxu0 %v3596
    %3760 = vmatpush.msra.mxu0 %v3595
    %3761 = vmatpush.msra.mxu0 %v3594
    %3762 = vmatpush.msra.mxu0 %v3593
    %3763 = vmatpush.msra.mxu0 %v3592
    %3764 = vmatpush.msra.mxu0 %v3591
    %3765 = vmatpush.msra.mxu0 %v3590
    %3766 = vmatpush.msra.mxu0 %v3589
    %3767 = vmatpush.msra.mxu0 %v3588
    %3768 = vmatmul.f32.gmra.mxu0 %v3536
    %v3769 = vpop.f32.mrf.mxu0
    %v3770 = vadd.f32 %v3744, %v3769
    %3771 = vmatmul.f32.gmra.mxu0 %v3537
    %v3772 = vpop.f32.mrf.mxu0
    %v3773 = vadd.f32 %v3747, %v3772
    %3774 = vmatmul.f32.gmra.mxu0 %v3538
    %v3775 = vpop.f32.mrf.mxu0
    %v3776 = vadd.f32 %v3750, %v3775
    %3777 = vdwg.mxu0
    %3778 = vmatpush.msra.mxu0 %v3619
    %3779 = vmatpush.msra.mxu0 %v3618
    %3780 = vmatpush.msra.mxu0 %v3617
    %3781 = vmatpush.msra.mxu0 %v3616
    %3782 = vmatpush.msra.mxu0 %v3615
    %3783 = vmatpush.msra.mxu0 %v3614
    %3784 = vmatpush.msra.mxu0 %v3613
    %3785 = vmatpush.msra.mxu0 %v3612
    %3786 = vmatpush.msra.mxu0 %v3611
    %3787 = vmatpush.msra.mxu0 %v3610
    %3788 = vmatpush.msra.mxu0 %v3609
    %3789 = vmatpush.msra.mxu0 %v3608
    %3790 = vmatpush.msra.mxu0 %v3607
    %3791 = vmatpush.msra.mxu0 %v3606
    %3792 = vmatpush.msra.mxu0 %v3605
    %3793 = vmatpush.msra.mxu0 %v3604
    %3794 = vmatmul.f32.gmra.mxu0 %v3539
    %v3795 = vpop.f32.mrf.mxu0
    %v3796 = vadd.f32 %v3770, %v3795
    %3797 = vmatmul.f32.gmra.mxu0 %v3540
    %v3798 = vpop.f32.mrf.mxu0
    %v3799 = vadd.f32 %v3773, %v3798
    %3800 = vmatmul.f32.gmra.mxu0 %v3541
    %v3801 = vpop.f32.mrf.mxu0
    %v3802 = vadd.f32 %v3776, %v3801
    %3803 = vdwg.mxu0
    %3804 = vmatpush.msra.mxu0 %v3635
    %3805 = vmatpush.msra.mxu0 %v3634
    %3806 = vmatpush.msra.mxu0 %v3633
    %3807 = vmatpush.msra.mxu0 %v3632
    %3808 = vmatpush.msra.mxu0 %v3631
    %3809 = vmatpush.msra.mxu0 %v3630
    %3810 = vmatpush.msra.mxu0 %v3629
    %3811 = vmatpush.msra.mxu0 %v3628
    %3812 = vmatpush.msra.mxu0 %v3627
    %3813 = vmatpush.msra.mxu0 %v3626
    %3814 = vmatpush.msra.mxu0 %v3625
    %3815 = vmatpush.msra.mxu0 %v3624
    %3816 = vmatpush.msra.mxu0 %v3623
    %3817 = vmatpush.msra.mxu0 %v3622
    %3818 = vmatpush.msra.mxu0 %v3621
    %3819 = vmatpush.msra.mxu0 %v3620
    %3820 = vmatmul.f32.gmra.mxu0 %v3542
    %v3821 = vpop.f32.mrf.mxu0
    %v3822 = vadd.f32 %v3796, %v3821
    %3823 = vmatmul.f32.gmra.mxu0 %v3543
    %v3824 = vpop.f32.mrf.mxu0
    %v3825 = vadd.f32 %v3799, %v3824
    %3826 = vmatmul.f32.gmra.mxu0 %v3544
    %v3827 = vpop.f32.mrf.mxu0
    %v3828 = vadd.f32 %v3802, %v3827
    %3829 = vdwg.mxu0
    %3830 = vmatpush.msra.mxu0 %v3651
    %3831 = vmatpush.msra.mxu0 %v3650
    %3832 = vmatpush.msra.mxu0 %v3649
    %3833 = vmatpush.msra.mxu0 %v3648
    %3834 = vmatpush.msra.mxu0 %v3647
    %3835 = vmatpush.msra.mxu0 %v3646
    %3836 = vmatpush.msra.mxu0 %v3645
    %3837 = vmatpush.msra.mxu0 %v3644
    %3838 = vmatpush.msra.mxu0 %v3643
    %3839 = vmatpush.msra.mxu0 %v3642
    %3840 = vmatpush.msra.mxu0 %v3641
    %3841 = vmatpush.msra.mxu0 %v3640
    %3842 = vmatpush.msra.mxu0 %v3639
    %3843 = vmatpush.msra.mxu0 %v3638
    %3844 = vmatpush.msra.mxu0 %v3637
    %3845 = vmatpush.msra.mxu0 %v3636
    %3846 = vmatmul.f32.gmra.mxu0 %v3531
    %v3847 = vpop.f32.mrf.mxu0
    %v3848 = vadd.f32 %v3822, %v3847
    %3849 = vmatmul.f32.gmra.mxu0 %v3545
    %v3850 = vpop.f32.mrf.mxu0
    %v3851 = vadd.f32 %v3825, %v3850
    %3852 = vmatmul.f32.gmra.mxu0 %v3546
    %v3853 = vpop.f32.mrf.mxu0
    %v3854 = vadd.f32 %v3828, %v3853
    %3855 = vdwg.mxu0
    %3856 = vmatpush.msra.mxu0 %v3667
    %3857 = vmatpush.msra.mxu0 %v3666
    %3858 = vmatpush.msra.mxu0 %v3665
    %3859 = vmatpush.msra.mxu0 %v3664
    %3860 = vmatpush.msra.mxu0 %v3663
    %3861 = vmatpush.msra.mxu0 %v3662
    %3862 = vmatpush.msra.mxu0 %v3661
    %3863 = vmatpush.msra.mxu0 %v3660
    %3864 = vmatpush.msra.mxu0 %v3659
    %3865 = vmatpush.msra.mxu0 %v3658
    %3866 = vmatpush.msra.mxu0 %v3657
    %3867 = vmatpush.msra.mxu0 %v3656
    %3868 = vmatpush.msra.mxu0 %v3655
    %3869 = vmatpush.msra.mxu0 %v3654
    %3870 = vmatpush.msra.mxu0 %v3653
    %3871 = vmatpush.msra.mxu0 %v3652
    %3872 = vmatmul.f32.gmra.mxu0 %v3547
    %v3873 = vpop.f32.mrf.mxu0
    %v3874 = vadd.f32 %v3848, %v3873
    %3875 = vmatmul.f32.gmra.mxu0 %v3548
    %v3876 = vpop.f32.mrf.mxu0
    %v3877 = vadd.f32 %v3851, %v3876
    %3878 = vmatmul.f32.gmra.mxu0 %v3549
    %v3879 = vpop.f32.mrf.mxu0
    %v3880 = vadd.f32 %v3854, %v3879
    %3881 = vdwg.mxu0
    %3882 = vmatpush.msra.mxu0 %v3683
    %3883 = vmatpush.msra.mxu0 %v3682
    %3884 = vmatpush.msra.mxu0 %v3681
    %3885 = vmatpush.msra.mxu0 %v3680
    %3886 = vmatpush.msra.mxu0 %v3679
    %3887 = vmatpush.msra.mxu0 %v3678
    %3888 = vmatpush.msra.mxu0 %v3677
    %3889 = vmatpush.msra.mxu0 %v3676
    %3890 = vmatpush.msra.mxu0 %v3675
    %3891 = vmatpush.msra.mxu0 %v3674
    %3892 = vmatpush.msra.mxu0 %v3673
    %3893 = vmatpush.msra.mxu0 %v3672
    %3894 = vmatpush.msra.mxu0 %v3671
    %3895 = vmatpush.msra.mxu0 %v3670
    %3896 = vmatpush.msra.mxu0 %v3669
    %3897 = vmatpush.msra.mxu0 %v3668
    %3898 = vmatmul.f32.gmra.mxu0 %v3550
    %v3899 = vpop.f32.mrf.mxu0
    %v3900 = vadd.f32 %v3874, %v3899
    %3901 = vmatmul.f32.gmra.mxu0 %v3551
    %v3902 = vpop.f32.mrf.mxu0
    %v3903 = vadd.f32 %v3877, %v3902
    %3904 = vmatmul.f32.gmra.mxu0 %v3552
    %v3905 = vpop.f32.mrf.mxu0
    %v3906 = vadd.f32 %v3880, %v3905
    %3907 = vdwg.mxu0
    %3908 = vmatpush.msra.mxu0 %v3699
    %3909 = vmatpush.msra.mxu0 %v3698
    %3910 = vmatpush.msra.mxu0 %v3697
    %3911 = vmatpush.msra.mxu0 %v3696
    %3912 = vmatpush.msra.mxu0 %v3695
    %3913 = vmatpush.msra.mxu0 %v3694
    %3914 = vmatpush.msra.mxu0 %v3693
    %3915 = vmatpush.msra.mxu0 %v3692
    %3916 = vmatpush.msra.mxu0 %v3691
    %3917 = vmatpush.msra.mxu0 %v3690
    %3918 = vmatpush.msra.mxu0 %v3689
    %3919 = vmatpush.msra.mxu0 %v3688
    %3920 = vmatpush.msra.mxu0 %v3687
    %3921 = vmatpush.msra.mxu0 %v3686
    %3922 = vmatpush.msra.mxu0 %v3685
    %3923 = vmatpush.msra.mxu0 %v3684
    %3924 = vmatmul.f32.gmra.mxu0 %v3553
    %v3925 = vpop.f32.mrf.mxu0
    %v3926 = vadd.f32 %v3900, %v3925
    %3927 = vmatmul.f32.gmra.mxu0 %v3554
    %v3928 = vpop.f32.mrf.mxu0
    %v3929 = vadd.f32 %v3903, %v3928
    %3930 = vmatmul.f32.gmra.mxu0 %v3555
    %v3931 = vpop.f32.mrf.mxu0
    %v3932 = vadd.f32 %v3906, %v3931
    %3933 = vdwg.mxu0
    %v3934 = vshra.s32 %v1563, 1
    %v3935 = vand.u32 %v1563, 1
    %v3936 = vmul.u32 %v3934, 2
    %v3937 = vmul.u32 %v3936, 6
    %v3938 = vmul.u32 %v3935, 2
    %v3939 = vadd.s32 %v3937, %v3938
    %vm3940 = vcmp.eq.s32.totalorder %v1572, %v3939
    %v3941 = vsel %vm3940, 1.0, 0.0
    %vm3942 = vcmask 179200
    %v3944 = vsel %vm3942, %v3941, 0
    %v3947 = vsel %vm1696, %v3932, 0
    %3949 = vmatpush.msra.mxu0 0.0
    %3950 = vmatpush.msra.mxu0 0.0
    %3951 = vmatpush.msra.mxu0 0.0
    %3952 = vmatpush.msra.mxu0 0.0
    %3953 = vmatpush.msra.mxu0 0.0
    %3954 = vmatpush.msra.mxu0 0.0
    %3955 = vmatpush.msra.mxu0 0.0
    %3956 = vmatpush.msra.mxu0 0.0
    %3957 = vmatpush.msra.mxu0 0.0
    %3958 = vmatpush.msra.mxu0 0.0
    %3959 = vmatpush.msra.mxu0 0.0
    %3960 = vmatpush.msra.mxu0 0.0
    %3961 = vmatpush.msra.mxu0 0.0
    %3962 = vmatpush.msra.mxu0 %v3947
    %3963 = vmatpush.msra.mxu0 %v3929
    %3964 = vmatpush.msra.mxu0 %v3926
    %3965 = vmatmul.f32.gmra.mxu0 %v3944
    %v3966 = vpop.f32.mrf.mxu0
    %v3967 = vadd.f32 0.0, %v3966
    %3968 = vdwg.mxu0
    %v3969 = vadd.s32 %v3938, 1
    %v3970 = vadd.s32 %v3937, %v3969
    %vm3971 = vcmp.eq.s32.totalorder %v1572, %v3970
    %v3972 = vsel %vm3971, 1.0, 0.0
    %v3974 = vsel %vm3942, %v3972, 0
    %3976 = vmatpush.msra.mxu0 0.0
    %3977 = vmatpush.msra.mxu0 0.0
    %3978 = vmatpush.msra.mxu0 0.0
    %3979 = vmatpush.msra.mxu0 0.0
    %3980 = vmatpush.msra.mxu0 0.0
    %3981 = vmatpush.msra.mxu0 0.0
    %3982 = vmatpush.msra.mxu0 0.0
    %3983 = vmatpush.msra.mxu0 0.0
    %3984 = vmatpush.msra.mxu0 0.0
    %3985 = vmatpush.msra.mxu0 0.0
    %3986 = vmatpush.msra.mxu0 0.0
    %3987 = vmatpush.msra.mxu0 0.0
    %3988 = vmatpush.msra.mxu0 0.0
    %3989 = vmatpush.msra.mxu0 %v3947
    %3990 = vmatpush.msra.mxu0 %v3929
    %3991 = vmatpush.msra.mxu0 %v3926
    %3992 = vmatmul.f32.gmra.mxu0 %v3974
    %v3993 = vpop.f32.mrf.mxu0
    %v3994 = vadd.f32 0.0, %v3993
    %3995 = vdwg.mxu0
    %v3996 = vmax.f32 %v3967, %v3994
    %v3997 = vadd.s32 %v3936, 1
    %v3998 = vmul.u32 %v3997, 6
    %v3999 = vadd.s32 %v3998, %v3938
    %vm4000 = vcmp.eq.s32.totalorder %v1572, %v3999
    %v4001 = vsel %vm4000, 1.0, 0.0
    %v4003 = vsel %vm3942, %v4001, 0
    %4005 = vmatpush.msra.mxu0 0.0
    %4006 = vmatpush.msra.mxu0 0.0
    %4007 = vmatpush.msra.mxu0 0.0
    %4008 = vmatpush.msra.mxu0 0.0
    %4009 = vmatpush.msra.mxu0 0.0
    %4010 = vmatpush.msra.mxu0 0.0
    %4011 = vmatpush.msra.mxu0 0.0
    %4012 = vmatpush.msra.mxu0 0.0
    %4013 = vmatpush.msra.mxu0 0.0
    %4014 = vmatpush.msra.mxu0 0.0
    %4015 = vmatpush.msra.mxu0 0.0
    %4016 = vmatpush.msra.mxu0 0.0
    %4017 = vmatpush.msra.mxu0 0.0
    %4018 = vmatpush.msra.mxu0 %v3947
    %4019 = vmatpush.msra.mxu0 %v3929
    %4020 = vmatpush.msra.mxu0 %v3926
    %4021 = vmatmul.f32.gmra.mxu0 %v4003
    %v4022 = vpop.f32.mrf.mxu0
    %v4023 = vadd.f32 0.0, %v4022
    %4024 = vdwg.mxu0
    %v4025 = vmax.f32 %v3996, %v4023
    %v4026 = vadd.s32 %v3998, %v3969
    %vm4027 = vcmp.eq.s32.totalorder %v1572, %v4026
    %v4028 = vsel %vm4027, 1.0, 0.0
    %v4030 = vsel %vm3942, %v4028, 0
    %4032 = vmatpush.msra.mxu0 0.0
    %4033 = vmatpush.msra.mxu0 0.0
    %4034 = vmatpush.msra.mxu0 0.0
    %4035 = vmatpush.msra.mxu0 0.0
    %4036 = vmatpush.msra.mxu0 0.0
    %4037 = vmatpush.msra.mxu0 0.0
    %4038 = vmatpush.msra.mxu0 0.0
    %4039 = vmatpush.msra.mxu0 0.0
    %4040 = vmatpush.msra.mxu0 0.0
    %4041 = vmatpush.msra.mxu0 0.0
    %4042 = vmatpush.msra.mxu0 0.0
    %4043 = vmatpush.msra.mxu0 0.0
    %4044 = vmatpush.msra.mxu0 0.0
    %4045 = vmatpush.msra.mxu0 %v3947
    %4046 = vmatpush.msra.mxu0 %v3929
    %4047 = vmatpush.msra.mxu0 %v3926
    %4048 = vmatmul.f32.gmra.mxu0 %v4030
    %v4049 = vpop.f32.mrf.mxu0
    %v4050 = vadd.f32 0.0, %v4049
    %4051 = vdwg.mxu0
    %v4052 = vmax.f32 %v4025, %v4050
    %v4053 = vld [vmem:[%s6] sm:$0x1]
    %v4055 = vperm.slane %v4053, 0
    %v4057 = vadd.f32 %v4052, %v4055
    %v4058 = vmax.f32 %v4057, 0.0
    %v4059 = vld [vmem:[%s7] sm:$0xf]
    %v4060 = vmul.f32 %v4058, %v4059
    %vm4061 = vcmask 1043456
    %v4062 = vsel %vm4061, %v4060, 0.0
    %v4063 = vrot.slane %v4062, 4
    %v4064 = vadd.f32 %v4062, %v4063
    %v4065 = vrot.slane %v4064, 2
    %v4066 = vadd.f32 %v4064, %v4065
    %v4067 = vrot.slane %v4066, 1
    %v4068 = vadd.f32 %v4066, %v4067
    %4069 = vadd.xlane.f32.xlu0 %v4068
    %v4070 = vpop.xlane.xlu0 %4069
    %v4071 = vld [vmem:[#allocation4] sm:$0x1]
    %v4072 = vadd.f32 %v4070, %v4071
    %v4073 = vsub.f32 0.0, %v4072
    %v4074 = vmul.f32 %v4073, 1.442695
    %v4075 = vpow.pop %v4074
    %v4076 = vadd.f32 %v4075, 1.0
    %v4077 = vrcp.pop %v4076
    %v4078 = vmul.f32 %v4076, %v4077
    %v4079 = vsub.f32 1.0, %v4078
    %v4080 = vmul.f32 %v4077, %v4079
    %v4081 = vadd.f32 %v4077, %v4080
    %vm4082 = vweird.f32 %v4076
    %vm4083 = vweird.f32 %v4077
    %vm4084 = vmor %vm4082, %vm4083
    %v4085 = vsel %vm4084, %v4077, %v4081
    %v4086 = vand.u32 2147483647, %v4076
    %vm4087 = vcmp.eq.f32.partialorder %v4086, 8.507059e+37
    %v4088 = vand.u32 %v4076, 2147483648
    %v4089 = vor.u32 1.1754944e-38, %v4088
    %v4090 = vsel %vm4087, %v4089, %v4085
    %v4091 = vmul.f32 1.0, %v4090
    %vm4092 = vcmask 0
    %4093 = vst.msk [vmem:[#allocation5] sm:$0x1] %vm4092, %v4091
    // Predicated region
    $region38: #{pruned_cnn_forward.1} parent=1 // pred_check
      _
    $region39: #{pruned_cnn_forward.1} parent=1 // pred_check_branch
      %4095 = sbr.rel (0) target = $region41
    $region40: #{pruned_cnn_forward.1} parent=1 // pred_region
      %4097 = vsyncadd [#allocation6], 0
      %s4099 = sshll.u32 [#allocation5], 4
      %s4100 = int_to_ptr.vmem [resolvable:$true] %s4099
      %s4101 = sshll.u32 %s9, 4
      %s4102 = int_to_ptr.hbm [resolvable:$true] %s4101
      %4104 = dma.vmem_to_hbm [thread:$0]  %s4100, 16, %s4102, [#allocation6]
    $region41: #{pruned_cnn_forward.1} parent=1 // pred_fallthru
      _
    // Predicated region
    $region42: #{pruned_cnn_forward.1} parent=1 // pred_check
      _
    $region43: #{pruned_cnn_forward.1} parent=1 // pred_check_branch
      %4106 = sbr.rel (0) target = $region45
    $region44: #{pruned_cnn_forward.1} parent=1 // pred_region
      %4108 = dma.done [#allocation6], 16
    $region45: #{pruned_cnn_forward.1} parent=1 // pred_fallthru
      _
    %4109 = vsyncpa [#allocation6], 1

</llo_original>
